<compile_context>
chip_gen: v7x
topology: tpu7x:2x2x1
jax: 0.10.0
libtpu: 0.0.40
codegen_flags: <defaults>
</compile_context>

<pallas_src>
import functools
import math

import jax
import jax.numpy as jnp
from jax.experimental import pallas as pl
from jax.experimental.pallas import tpu as pltpu


# ---------------------------------------------------------------------------
# Generation-aware VMEM budgets (feedback: don't size v5e/v6e tiles for v7x)
# ---------------------------------------------------------------------------
def _vmem_config():
    """Tile budget / vmem_limit / target grid steps per TPU generation.

    v5e/v6e: 128 MiB VMEM, 1 TensorCore  -> big tiles (fewer fixed-overhead grid steps).
    v7x    :  64 MiB VMEM, 2 TensorCores -> conservative tiles, >= 4 grid steps so each
              core keeps >= 2 steps of prefetch/writeback overlap.
    """
    try:
        vmem_bytes = int(pltpu.get_tpu_info().vmem_capacity_bytes)
    except Exception:  # interpret mode / unknown chip -> conservative (v7x-safe)
        vmem_bytes = 64 * 1024 * 1024
    if vmem_bytes >= 100 * 1024 * 1024:          # v5e / v6e class
        return {"tile_budget": 64 * 1024 * 1024,
                "vmem_limit": 96 * 1024 * 1024,
                "target_grid_steps": 2}
    return {"tile_budget": 24 * 1024 * 1024,     # v7x class
            "vmem_limit": 32 * 1024 * 1024,
            "target_grid_steps": 4}


# ---------------------------------------------------------------------------
# Fused Pallas kernel: all TCN levels + residual 1x1 downsample + final ReLU
# ---------------------------------------------------------------------------
def _fused_tcn_kernel(*refs, n_layers, ksize, dilations, t_len):
    """One M-tile of the whole TemporalConvNet per grid step.

    refs = (x, w_0, b_0, ..., w_{L-1}, b_{L-1}, w_down, b_down, out)

      x      : (1, Cin0, T*tm) bf16   lane-dense input tile (channels on sublanes,
                                      flattened (time, row) time-major on lanes)
      w_l    : (K, Cout_l, Cin_l) bf16 (resident, constant index map)
      b_l    : (Cout_l, 1) f32
      w_down : (CoutL, Cin0) bf16,  b_down : (CoutL, 1) f32
      out    : (1, CoutL, T*tm) bf16

    tm is a multiple of 128 (wrapper pads M), so every tap offset c0 = shift*tm is a
    128-aligned lane offset and all stores are unmasked.  No VMEM scratch: taps are
    accumulated as values (zero-shift tap initialises, shifted taps are added as
    lane-aligned zero-padded values), bias+ReLU run on the value, and only the final
    result is stored (bf16).
    """
    x_ref = refs[0]
    layer_refs = refs[1:1 + 2 * n_layers]
    wd_ref = refs[1 + 2 * n_layers]
    bd_ref = refs[2 + 2 * n_layers]
    o_ref = refs[3 + 2 * n_layers]

    cols = x_ref.shape[-1]
    tm = cols // t_len                    # rows (b*n) per tile; multiple of 128

    x0 = x_ref[0]                         # (Cin0, cols) bf16 — reused by the residual
    cur = x0
    y = None
    for l in range(n_layers):
        w_ref = layer_refs[2 * l]         # (K, Cout, Cin) bf16
        b_ref = layer_refs[2 * l + 1]     # (Cout, 1) f32
        cout = w_ref.shape[1]
        d = dilations[l]

        # Tap kw = K-1 has zero time shift: covers every output column -> initialises the
        # value accumulator (no scratch, no zeroing pass).
        acc = jnp.dot(w_ref[ksize - 1], cur, preferred_element_type=jnp.float32)

        # Remaining taps: output time t gets W[kw] @ x[t - s] with s = (K-1-kw)*dilation
        # (left pad + Chomp1d), i.e. a matmul on the first (T-s)*tm columns added at the
        # 128-aligned column offset s*tm — expressed as a lane-aligned zero-pad + add.
        for kw in range(ksize - 1):
            s = (ksize - 1 - kw) * d
            if s >= t_len:
                continue                  # tap reads only the zero padding
            c0 = s * tm
            contrib = jnp.dot(w_ref[kw], cur[:, :cols - c0],
                              preferred_element_type=jnp.float32)
            acc = acc + jnp.concatenate(
                [jnp.zeros((cout, c0), jnp.float32), contrib], axis=1)

        # f32 epilogue: bias + ReLU (dropout = eval-mode identity), then bf16 for the
        # next level's MXU matmul.
        y = jnp.maximum(acc + b_ref[...], 0.0)
        cur = y.astype(jnp.bfloat16)

    # Residual branch: 1x1 conv (pure channel matmul) on the ORIGINAL input, then the
    # final ReLU of relu(network(y) + downsample(y)).  Output stored in bf16.
    z = jnp.dot(wd_ref[...], x0, preferred_element_type=jnp.float32) + bd_ref[...]
    o_ref[0] = jnp.maximum(y + z, 0.0).astype(o_ref.dtype)


# ---------------------------------------------------------------------------
# Tile-size selection: tm is always a multiple of 128 (M padded), budget-aware
# ---------------------------------------------------------------------------
def _choose_tile_m(m, t_len, cin, couts, out_itemsize, budget, target_steps):
    """Pick tm (multiple of 128).  Keeps >= target_steps grid steps when M permits,
    fits the per-tile working set in `budget`, and minimises padded work."""
    cmax = max(couts)
    c_last = couts[-1]

    def tile_bytes(tm):
        cols = t_len * tm
        return (2 * cin * cols * 2                  # input block, bf16, double-buffered
                + 2 * c_last * cols * out_itemsize  # output block, double-buffered
                + 2 * cmax * cols * 4               # live f32 accumulator values
                + 2 * cmax * cols * 2)              # live bf16 activations

    n_tiles_min = -(-m // 128)                       # number of 128-row tiles (ceil)
    g_target = max(1, min(target_steps, n_tiles_min))
    best_tm, best_key = 128, None
    for mult in range(1, n_tiles_min + 1):
        tm = 128 * mult
        if mult > 1 and tile_bytes(tm) > budget:
            break
        g = -(-m // tm)
        if g < g_target:
            continue
        key = (g * tm, -tm)       # minimise padded rows, then prefer fewer/larger tiles
        if best_key is None or key < best_key:
            best_tm, best_key = tm, key
    return best_tm


# ---------------------------------------------------------------------------
# TemporalConvNet (Pallas) — parameter init matches the PyTorch module
# ---------------------------------------------------------------------------
class TemporalConvNetPallas:
    def __init__(self, num_inputs, num_channels, kernel_size=2, *,
                 key, out_dtype=jnp.bfloat16):
        if not num_channels:
            raise ValueError("num_channels must be non-empty")
        self.kernel_size = kernel_size
        self.num_inputs = num_inputs
        self.num_channels = list(num_channels)
        self.out_dtype = out_dtype
        self.layers = []  # (w[K, Cout, Cin] f32, b[Cout, 1] f32, dilation)
        for i, out_ch in enumerate(num_channels):
            in_ch = num_inputs if i == 0 else num_channels[i - 1]
            dilation = 2 ** i
            key, wkey, bkey = jax.random.split(key, 3)
            # Conv2d weight (Cout, Cin, 1, K) ~ N(0, 0.01); stored as (K, Cout, Cin).
            w = 0.01 * jax.random.normal(
                wkey, (kernel_size, out_ch, in_ch), jnp.float32)
            bound = 1.0 / math.sqrt(in_ch * 1 * kernel_size)   # PyTorch default bias init
            b = jax.random.uniform(bkey, (out_ch, 1), jnp.float32, -bound, bound)
            self.layers.append((w, b, dilation))

        if num_inputs != num_channels[-1]:
            key, wkey, bkey = jax.random.split(key, 3)
            wd = 0.01 * jax.random.normal(
                wkey, (num_channels[-1], num_inputs), jnp.float32)
            bound = 1.0 / math.sqrt(num_inputs)
            bd = jax.random.uniform(
                bkey, (num_channels[-1], 1), jnp.float32, -bound, bound)
            self.downsample = (wd, bd)
        else:
            self.downsample = None

    def __call__(self, x):
        """x: (B, N, T, F) -> (B, N, T, num_channels[-1])."""
        b, n, t, f = x.shape

        if self.downsample is None:
            # Faithful PyTorch precedence quirk:
            # F.relu(net(y) + down(y) if down else y) == relu(y) when down is None.
            return jnp.maximum(x, 0.0)

        m = b * n
        couts = [int(w.shape[1]) for (w, _, _) in self.layers]
        cout_last = couts[-1]

        cfg = _vmem_config()
        out_dtype = self.out_dtype
        out_itemsize = jnp.finfo(out_dtype).bits // 8
        tm = _choose_tile_m(m, t, f, couts, out_itemsize,
                            cfg["tile_budget"], cfg["target_grid_steps"])
        g = -(-m // tm)
        m_pad = g * tm
        cols = t * tm

        # Host-side layout prep on the *input* (smallest tensor): pad M up to g*tm, then
        # (M_pad, T, F) -> (G, F, T*tm) with (time, row) flattened time-major so kernel
        # blocks are contiguous lane-dense slabs (tm % 128 == 0 -> unmasked stores).
        x_flat = x.reshape(m, t, f)
        if m_pad != m:
            x_flat = jnp.concatenate(
                [x_flat, jnp.zeros((m_pad - m, t, f), x.dtype)], axis=0)
        x_tiled = (x_flat.reshape(g, tm, t, f)
                         .transpose(0, 3, 2, 1)       # (G, F, T, tm)
                         .reshape(g, f, cols)
                         .astype(jnp.bfloat16))

        in_specs = [pl.BlockSpec((1, f, cols), lambda i: (i, 0, 0))]
        flat_args = [x_tiled]
        for (w, bias, _) in self.layers:
            in_specs.append(pl.BlockSpec(w.shape, lambda i: (0, 0, 0)))   # resident
            in_specs.append(pl.BlockSpec(bias.shape, lambda i: (0, 0)))   # resident
            flat_args.append(w.astype(jnp.bfloat16))
            flat_args.append(bias)                                        # bias stays f32
        wd, bd = self.downsample
        in_specs.append(pl.BlockSpec(wd.shape, lambda i: (0, 0)))
        in_specs.append(pl.BlockSpec(bd.shape, lambda i: (0, 0)))
        flat_args.append(wd.astype(jnp.bfloat16))
        flat_args.append(bd)

        kern = functools.partial(
            _fused_tcn_kernel,
            n_layers=len(self.layers),
            ksize=self.kernel_size,
            dilations=tuple(d for (_, _, d) in self.layers),
            t_len=t)

        out_tiled = pl.pallas_call(
            kern,
            out_shape=jax.ShapeDtypeStruct((g, cout_last, cols), out_dtype),
            grid=(g,),
            in_specs=in_specs,
            out_specs=pl.BlockSpec((1, cout_last, cols), lambda i: (i, 0, 0)),
            compiler_params=pltpu.CompilerParams(
                dimension_semantics=("parallel",),
                vmem_limit_bytes=cfg["vmem_limit"]),
        )(*flat_args)

        # Single re-layout back to the module's (B, N, T, C_out) contract (bf16, half the
        # bytes of the previous f32 version).  TODO(synk): a Pallas ODEG/BatchNorm
        # consumer could take the (G, C, T*tm) tiled layout directly and skip this.
        out = (out_tiled.reshape(g, cout_last, t, tm)
                        .transpose(0, 3, 2, 1)        # (G, tm, T, Cout)
                        .reshape(m_pad, t, cout_last)[:m]
                        .reshape(b, n, t, cout_last))
        return out


# ---------------------------------------------------------------------------
# ODEG (single Euler step) and eval-mode BatchNorm2d — plain JAX (node-coupled, tiny)
# ---------------------------------------------------------------------------
class ODEGJax:
    def __init__(self, feature_dim, temporal_dim, adj, time):
        self.adj = adj.astype(jnp.float32)
        self.time = float(time)
        # PyTorch inits: alpha = 0.8, w = I, d = 1, w2 = I, d2 = 1.
        self.alpha = 0.8 * jnp.ones((adj.shape[1],), jnp.float32)
        self.w = jnp.eye(feature_dim, dtype=jnp.float32)
        self.d = jnp.ones((feature_dim,), jnp.float32)
        self.w2 = jnp.eye(temporal_dim, dtype=jnp.float32)
        self.d2 = jnp.ones((temporal_dim,), jnp.float32)

    def _odefunc(self, x, x0):
        alpha = jax.nn.sigmoid(self.alpha)[None, :, None, None]
        xa = jnp.einsum('ij,bjtf->bitf', self.adj, x)
        d = jnp.clip(self.d, 0.0, 1.0)
        w = (self.w * d) @ self.w.T
        xw = jnp.einsum('bntf,fm->bntm', x, w)
        d2 = jnp.clip(self.d2, 0.0, 1.0)
        w2 = (self.w2 * d2) @ self.w2.T
        xw2 = jnp.einsum('bntf,tm->bnmf', x, w2)
        return alpha / 2.0 * xa - x + xw - x + xw2 - x + x0

    def __call__(self, x):
        x = x.astype(jnp.float32)
        x0 = x
        # torchdiffeq odeint(func, x, t=[0, time], method='euler') with the default grid
        # (= the supplied t) is a single Euler step of size `time`.
        z = x + self.time * self._odefunc(x, x0)
        return jnp.maximum(z, 0.0)


class BatchNorm2dEval:
    """nn.BatchNorm2d over the node axis, eval mode with default running stats."""

    def __init__(self, num_features, eps=1e-5):
        self.gamma = jnp.ones((num_features,), jnp.float32)
        self.beta = jnp.zeros((num_features,), jnp.float32)
        self.mean = jnp.zeros((num_features,), jnp.float32)
        self.var = jnp.ones((num_features,), jnp.float32)
        self.eps = eps

    def __call__(self, x):  # x: (B, N, T, C); BN channel axis = N (axis 1)
        inv = self.gamma / jnp.sqrt(self.var + self.eps)
        scale = inv[None, :, None, None]
        shift = (self.beta - self.mean * inv)[None, :, None, None]
        return x.astype(jnp.float32) * scale + shift


class STGCNBlockPallas:
    def __init__(self, in_channels, out_channels, num_nodes, A_hat, *, key):
        k1, k2 = jax.random.split(key)
        self.temporal1 = TemporalConvNetPallas(in_channels, out_channels, key=k1)
        self.odeg = ODEGJax(out_channels[-1], 12, A_hat, time=6)
        # num_inputs == num_channels[-1] -> downsample is None -> (faithful) pure ReLU.
        self.temporal2 = TemporalConvNetPallas(out_channels[-1], out_channels, key=k2)
        self.batch_norm = BatchNorm2dEval(num_nodes)

    def __call__(self, x):
        t = self.temporal1(x)
        t = self.odeg(t)
        t = self.temporal2(jnp.maximum(t, 0.0))
        return self.batch_norm(t)


# ---------------------------------------------------------------------------
# Pure-JAX references (f32, via conv_general_dilated) for validation
# ---------------------------------------------------------------------------
def reference_tcn(x, model):
    t_len = x.shape[2]
    y = jnp.transpose(x.astype(jnp.float32), (0, 3, 1, 2))  # (B, F, N, T) == NCHW
    if model.downsample is None:
        return jnp.transpose(jnp.maximum(y, 0.0), (0, 2, 3, 1))
    h = y
    for (w, bias, dilation) in model.layers:           # w: (K, Cout, Cin)
        k = w.shape[0]
        pad = (k - 1) * dilation
        w_oihw = jnp.transpose(w, (1, 2, 0))[:, :, None, :]
        h = jax.lax.conv_general_dilated(
            h, w_oihw, window_strides=(1, 1),
            padding=[(0, 0), (pad, pad)], rhs_dilation=(1, dilation),
            dimension_numbers=("NCHW", "OIHW", "NCHW"))
        h = h[:, :, :, :t_len]                          # Chomp1d
        h = h + bias[:, 0][None, :, None, None]
        h = jnp.maximum(h, 0.0)
    wd, bd = model.downsample
    z = jax.lax.conv_general_dilated(
        y, wd[:, :, None, None], (1, 1), [(0, 0), (0, 0)],
        dimension_numbers=("NCHW", "OIHW", "NCHW"))
    z = z + bd[:, 0][None, :, None, None]
    out = jnp.maximum(h + z, 0.0)
    return jnp.transpose(out, (0, 2, 3, 1))


def reference_stgcn_block(x, block):
    t = reference_tcn(x, block.temporal1)
    t = block.odeg(t)
    t = reference_tcn(jnp.maximum(t, 0.0), block.temporal2)
    return block.batch_norm(t)


# ---------------------------------------------------------------------------
if __name__ == "__main__":
    key = jax.random.PRNGKey(0)
    xkey, akey, pkey = jax.random.split(key, 3)

    # (batch, nodes, time, features).  T = 12 matches STGCNBlock's hardcoded temporal_dim.
    # N = 100 -> M = B*N = 200 is NOT a multiple of 128, exercising the pad-to-tm path
    # (tm = 128, grid = 2 parallel steps, 56 padded rows dropped after the kernel).
    B, N, T, F = 2, 100, 12, 4
    out_channels = [16, 16, 32]

    x = jax.random.normal(xkey, (B, N, T, F), jnp.float32)

    # Deterministic row-normalized adjacency A_hat for the graph ODE.
    A = jax.random.uniform(akey, (N, N)) < 0.1
    A = A | A.T | jnp.eye(N, dtype=bool)
    A = A.astype(jnp.float32)
    A_hat = A / A.sum(axis=1, keepdims=True)

    block = STGCNBlockPallas(F, out_channels, N, A_hat, key=pkey)

    out = jax.block_until_ready(block(x))
    assert out.shape == (B, N, T, out_channels[-1]), out.shape

    # 1) Validate the fused Pallas TCN kernel (temporal1) against its f32 reference.
    t1_pallas = block.temporal1(x).astype(jnp.float32)
    t1_ref = reference_tcn(x, block.temporal1)
    err1 = float(jnp.max(jnp.abs(t1_pallas - t1_ref)))
    if not bool(jnp.allclose(t1_pallas, t1_ref, atol=2e-2, rtol=2e-2)):
        raise AssertionError(f"TCN kernel mismatch, max abs err = {err1}")

    # 2) Validate the full STGCNBlock forward (bf16 matmul/output precision inside the
    #    Pallas block is the only difference vs. the f32 reference).
    ref = reference_stgcn_block(x, block)
    err2 = float(jnp.max(jnp.abs(out.astype(jnp.float32) - ref)))
    if not bool(jnp.allclose(out.astype(jnp.float32), ref, atol=3e-2, rtol=3e-2)):
        raise AssertionError(f"STGCNBlock mismatch, max abs err = {err2}")

    print("KERNEL_OK")
</pallas_src>

<mosaic_0001>
module attributes {stable_mosaic.version = 11 : i64} {
  func.func @_fused_tcn_kernel(%arg0: i32, %arg1: memref<1x4x1536xbf16, #tpu.memory_space<vmem>>, %arg2: memref<2x16x4xbf16, #tpu.memory_space<vmem>>, %arg3: memref<16x1xf32, #tpu.memory_space<vmem>>, %arg4: memref<2x16x16xbf16, #tpu.memory_space<vmem>>, %arg5: memref<16x1xf32, #tpu.memory_space<vmem>>, %arg6: memref<2x32x16xbf16, #tpu.memory_space<vmem>>, %arg7: memref<32x1xf32, #tpu.memory_space<vmem>>, %arg8: memref<32x4xbf16, #tpu.memory_space<vmem>>, %arg9: memref<32x1xf32, #tpu.memory_space<vmem>>, %arg10: memref<1x32x1536xbf16, #tpu.memory_space<vmem>>) attributes {dimension_semantics = [#tpu.dimension_semantics<parallel>], iteration_bounds = array<i64: 2>, scalar_prefetch = 0 : i64, scratch_operands = 0 : i64, tpu.core_type = #tpu.core_type<tc>, window_params = [{transform_indices = @transform_0, window_bounds = array<i64: 1, 4, 1536>}, {pipeline_mode = #tpu.pipeline_mode<synchronous>, transform_indices = @transform_1, window_bounds = array<i64: 2, 16, 4>}, {pipeline_mode = #tpu.pipeline_mode<synchronous>, transform_indices = @transform_2, window_bounds = array<i64: 16, 1>}, {pipeline_mode = #tpu.pipeline_mode<synchronous>, transform_indices = @transform_3, window_bounds = array<i64: 2, 16, 16>}, {pipeline_mode = #tpu.pipeline_mode<synchronous>, transform_indices = @transform_4, window_bounds = array<i64: 16, 1>}, {pipeline_mode = #tpu.pipeline_mode<synchronous>, transform_indices = @transform_5, window_bounds = array<i64: 2, 32, 16>}, {pipeline_mode = #tpu.pipeline_mode<synchronous>, transform_indices = @transform_6, window_bounds = array<i64: 32, 1>}, {pipeline_mode = #tpu.pipeline_mode<synchronous>, transform_indices = @transform_7, window_bounds = array<i64: 32, 4>}, {pipeline_mode = #tpu.pipeline_mode<synchronous>, transform_indices = @transform_8, window_bounds = array<i64: 32, 1>}, {transform_indices = @transform_9, window_bounds = array<i64: 1, 32, 1536>}]} {
    %c0 = arith.constant 0 : index
    %c0_0 = arith.constant 0 : index
    %c0_1 = arith.constant 0 : index
    %0 = vector.load %arg1[%c0, %c0_0, %c0_1] : memref<1x4x1536xbf16, #tpu.memory_space<vmem>>, vector<1x4x1536xbf16>
    %1 = vector.shape_cast %0 : vector<1x4x1536xbf16> to vector<4x1536xbf16>
    %c1 = arith.constant 1 : index
    %c0_2 = arith.constant 0 : index
    %c0_3 = arith.constant 0 : index
    %2 = vector.load %arg2[%c1, %c0_2, %c0_3] : memref<2x16x4xbf16, #tpu.memory_space<vmem>>, vector<1x16x4xbf16>
    %3 = vector.shape_cast %2 : vector<1x16x4xbf16> to vector<16x4xbf16>
    %cst = arith.constant dense<0.000000e+00> : vector<16x1536xf32>
    %4 = tpu.matmul %3, %1, %cst {dimension_numbers = #tpu.dot_dimension_numbers<[1], [0], [0], [1], [0, 0, 1, 1], [], []>} : vector<16x4xbf16>, vector<4x1536xbf16>, vector<16x1536xf32> -> vector<16x1536xf32>
    %c0_4 = arith.constant 0 : index
    %c0_5 = arith.constant 0 : index
    %c0_6 = arith.constant 0 : index
    %5 = vector.load %arg2[%c0_4, %c0_5, %c0_6] : memref<2x16x4xbf16, #tpu.memory_space<vmem>>, vector<1x16x4xbf16>
    %6 = vector.shape_cast %5 : vector<1x16x4xbf16> to vector<16x4xbf16>
    %7 = vector.extract_strided_slice %1 {offsets = [0, 0], sizes = [4, 1408], strides = [1, 1]} : vector<4x1536xbf16> to vector<4x1408xbf16>
    %cst_7 = arith.constant dense<0.000000e+00> : vector<16x1408xf32>
    %8 = tpu.matmul %6, %7, %cst_7 {dimension_numbers = #tpu.dot_dimension_numbers<[1], [0], [0], [1], [0, 0, 1, 1], [], []>} : vector<16x4xbf16>, vector<4x1408xbf16>, vector<16x1408xf32> -> vector<16x1408xf32>
    %cst_8 = arith.constant 0.000000e+00 : f32
    %9 = vector.broadcast %cst_8 : f32 to vector<16x128xf32>
    %10 = tpu.concatenate %9, %8 in 1 : vector<16x128xf32>, vector<16x1408xf32> -> vector<16x1536xf32>
    %11 = arith.addf %4, %10 : vector<16x1536xf32>
    %c0_9 = arith.constant 0 : index
    %c0_10 = arith.constant 0 : index
    %12 = vector.load %arg3[%c0_9, %c0_10] : memref<16x1xf32, #tpu.memory_space<vmem>>, vector<16x1xf32>
    %13 = vector.broadcast %12 : vector<16x1xf32> to vector<16x1536xf32>
    %14 = arith.addf %11, %13 : vector<16x1536xf32>
    %cst_11 = arith.constant 0.000000e+00 : f32
    %15 = vector.broadcast %cst_11 : f32 to vector<16x1536xf32>
    %16 = arith.maximumf %14, %15 : vector<16x1536xf32>
    %17 = arith.truncf %16 : vector<16x1536xf32> to vector<16x1536xbf16>
    %c1_12 = arith.constant 1 : index
    %c0_13 = arith.constant 0 : index
    %c0_14 = arith.constant 0 : index
    %18 = vector.load %arg4[%c1_12, %c0_13, %c0_14] : memref<2x16x16xbf16, #tpu.memory_space<vmem>>, vector<1x16x16xbf16>
    %19 = vector.shape_cast %18 : vector<1x16x16xbf16> to vector<16x16xbf16>
    %cst_15 = arith.constant dense<0.000000e+00> : vector<16x1536xf32>
    %20 = tpu.matmul %19, %17, %cst_15 {dimension_numbers = #tpu.dot_dimension_numbers<[1], [0], [0], [1], [0, 0, 1, 1], [], []>} : vector<16x16xbf16>, vector<16x1536xbf16>, vector<16x1536xf32> -> vector<16x1536xf32>
    %c0_16 = arith.constant 0 : index
    %c0_17 = arith.constant 0 : index
    %c0_18 = arith.constant 0 : index
    %21 = vector.load %arg4[%c0_16, %c0_17, %c0_18] : memref<2x16x16xbf16, #tpu.memory_space<vmem>>, vector<1x16x16xbf16>
    %22 = vector.shape_cast %21 : vector<1x16x16xbf16> to vector<16x16xbf16>
    %23 = vector.extract_strided_slice %17 {offsets = [0, 0], sizes = [16, 1280], strides = [1, 1]} : vector<16x1536xbf16> to vector<16x1280xbf16>
    %cst_19 = arith.constant dense<0.000000e+00> : vector<16x1280xf32>
    %24 = tpu.matmul %22, %23, %cst_19 {dimension_numbers = #tpu.dot_dimension_numbers<[1], [0], [0], [1], [0, 0, 1, 1], [], []>} : vector<16x16xbf16>, vector<16x1280xbf16>, vector<16x1280xf32> -> vector<16x1280xf32>
    %cst_20 = arith.constant 0.000000e+00 : f32
    %25 = vector.broadcast %cst_20 : f32 to vector<16x256xf32>
    %26 = tpu.concatenate %25, %24 in 1 : vector<16x256xf32>, vector<16x1280xf32> -> vector<16x1536xf32>
    %27 = arith.addf %20, %26 : vector<16x1536xf32>
    %c0_21 = arith.constant 0 : index
    %c0_22 = arith.constant 0 : index
    %28 = vector.load %arg5[%c0_21, %c0_22] : memref<16x1xf32, #tpu.memory_space<vmem>>, vector<16x1xf32>
    %29 = vector.broadcast %28 : vector<16x1xf32> to vector<16x1536xf32>
    %30 = arith.addf %27, %29 : vector<16x1536xf32>
    %cst_23 = arith.constant 0.000000e+00 : f32
    %31 = vector.broadcast %cst_23 : f32 to vector<16x1536xf32>
    %32 = arith.maximumf %30, %31 : vector<16x1536xf32>
    %33 = arith.truncf %32 : vector<16x1536xf32> to vector<16x1536xbf16>
    %c1_24 = arith.constant 1 : index
    %c0_25 = arith.constant 0 : index
    %c0_26 = arith.constant 0 : index
    %34 = vector.load %arg6[%c1_24, %c0_25, %c0_26] : memref<2x32x16xbf16, #tpu.memory_space<vmem>>, vector<1x32x16xbf16>
    %35 = vector.shape_cast %34 : vector<1x32x16xbf16> to vector<32x16xbf16>
    %cst_27 = arith.constant dense<0.000000e+00> : vector<32x1536xf32>
    %36 = tpu.matmul %35, %33, %cst_27 {dimension_numbers = #tpu.dot_dimension_numbers<[1], [0], [0], [1], [0, 0, 1, 1], [], []>} : vector<32x16xbf16>, vector<16x1536xbf16>, vector<32x1536xf32> -> vector<32x1536xf32>
    %c0_28 = arith.constant 0 : index
    %c0_29 = arith.constant 0 : index
    %c0_30 = arith.constant 0 : index
    %37 = vector.load %arg6[%c0_28, %c0_29, %c0_30] : memref<2x32x16xbf16, #tpu.memory_space<vmem>>, vector<1x32x16xbf16>
    %38 = vector.shape_cast %37 : vector<1x32x16xbf16> to vector<32x16xbf16>
    %39 = vector.extract_strided_slice %33 {offsets = [0, 0], sizes = [16, 1024], strides = [1, 1]} : vector<16x1536xbf16> to vector<16x1024xbf16>
    %cst_31 = arith.constant dense<0.000000e+00> : vector<32x1024xf32>
    %40 = tpu.matmul %38, %39, %cst_31 {dimension_numbers = #tpu.dot_dimension_numbers<[1], [0], [0], [1], [0, 0, 1, 1], [], []>} : vector<32x16xbf16>, vector<16x1024xbf16>, vector<32x1024xf32> -> vector<32x1024xf32>
    %cst_32 = arith.constant 0.000000e+00 : f32
    %41 = vector.broadcast %cst_32 : f32 to vector<32x512xf32>
    %42 = tpu.concatenate %41, %40 in 1 : vector<32x512xf32>, vector<32x1024xf32> -> vector<32x1536xf32>
    %43 = arith.addf %36, %42 : vector<32x1536xf32>
    %c0_33 = arith.constant 0 : index
    %c0_34 = arith.constant 0 : index
    %44 = vector.load %arg7[%c0_33, %c0_34] : memref<32x1xf32, #tpu.memory_space<vmem>>, vector<32x1xf32>
    %45 = vector.broadcast %44 : vector<32x1xf32> to vector<32x1536xf32>
    %46 = arith.addf %43, %45 : vector<32x1536xf32>
    %cst_35 = arith.constant 0.000000e+00 : f32
    %47 = vector.broadcast %cst_35 : f32 to vector<32x1536xf32>
    %48 = arith.maximumf %46, %47 : vector<32x1536xf32>
    %c0_36 = arith.constant 0 : index
    %c0_37 = arith.constant 0 : index
    %49 = vector.load %arg8[%c0_36, %c0_37] : memref<32x4xbf16, #tpu.memory_space<vmem>>, vector<32x4xbf16>
    %cst_38 = arith.constant dense<0.000000e+00> : vector<32x1536xf32>
    %50 = tpu.matmul %49, %1, %cst_38 {dimension_numbers = #tpu.dot_dimension_numbers<[1], [0], [0], [1], [0, 0, 1, 1], [], []>} : vector<32x4xbf16>, vector<4x1536xbf16>, vector<32x1536xf32> -> vector<32x1536xf32>
    %c0_39 = arith.constant 0 : index
    %c0_40 = arith.constant 0 : index
    %51 = vector.load %arg9[%c0_39, %c0_40] : memref<32x1xf32, #tpu.memory_space<vmem>>, vector<32x1xf32>
    %52 = vector.broadcast %51 : vector<32x1xf32> to vector<32x1536xf32>
    %53 = arith.addf %50, %52 : vector<32x1536xf32>
    %54 = arith.addf %48, %53 : vector<32x1536xf32>
    %cst_41 = arith.constant 0.000000e+00 : f32
    %55 = vector.broadcast %cst_41 : f32 to vector<32x1536xf32>
    %56 = arith.maximumf %54, %55 : vector<32x1536xf32>
    %57 = arith.truncf %56 : vector<32x1536xf32> to vector<32x1536xbf16>
    %c0_42 = arith.constant 0 : index
    %c0_43 = arith.constant 0 : index
    %c0_44 = arith.constant 0 : index
    %58 = vector.load %arg10[%c0_42, %c0_43, %c0_44] : memref<1x32x1536xbf16, #tpu.memory_space<vmem>>, vector<1x32x1536xbf16>
    %59 = vector.shape_cast %58 : vector<1x32x1536xbf16> to vector<32x1536xbf16>
    %60 = vector.shape_cast %57 : vector<32x1536xbf16> to vector<1x32x1536xbf16>
    tpu.vector_store %arg10[%c0_42, %c0_43, %c0_44], %60 {strides = array<i32>} : memref<1x32x1536xbf16, #tpu.memory_space<vmem>>, vector<1x32x1536xbf16>,
    return
  }
  func.func @transform_0(%arg0: i32) -> (i32, i32, i32) {
    %c0_i32 = arith.constant 0 : i32
    %c0_i32_0 = arith.constant 0 : i32
    %c0_i32_1 = arith.constant 0 : i32
    return %arg0, %c0_i32, %c0_i32_0 : i32, i32, i32
  }
  func.func @transform_1(%arg0: i32) -> (i32, i32, i32) {
    %c0_i32 = arith.constant 0 : i32
    %c0_i32_0 = arith.constant 0 : i32
    %c0_i32_1 = arith.constant 0 : i32
    %c0_i32_2 = arith.constant 0 : i32
    return %c0_i32, %c0_i32_0, %c0_i32_1 : i32, i32, i32
  }
  func.func @transform_2(%arg0: i32) -> (i32, i32) {
    %c0_i32 = arith.constant 0 : i32
    %c0_i32_0 = arith.constant 0 : i32
    %c0_i32_1 = arith.constant 0 : i32
    return %c0_i32, %c0_i32_0 : i32, i32
  }
  func.func @transform_3(%arg0: i32) -> (i32, i32, i32) {
    %c0_i32 = arith.constant 0 : i32
    %c0_i32_0 = arith.constant 0 : i32
    %c0_i32_1 = arith.constant 0 : i32
    %c0_i32_2 = arith.constant 0 : i32
    return %c0_i32, %c0_i32_0, %c0_i32_1 : i32, i32, i32
  }
  func.func @transform_4(%arg0: i32) -> (i32, i32) {
    %c0_i32 = arith.constant 0 : i32
    %c0_i32_0 = arith.constant 0 : i32
    %c0_i32_1 = arith.constant 0 : i32
    return %c0_i32, %c0_i32_0 : i32, i32
  }
  func.func @transform_5(%arg0: i32) -> (i32, i32, i32) {
    %c0_i32 = arith.constant 0 : i32
    %c0_i32_0 = arith.constant 0 : i32
    %c0_i32_1 = arith.constant 0 : i32
    %c0_i32_2 = arith.constant 0 : i32
    return %c0_i32, %c0_i32_0, %c0_i32_1 : i32, i32, i32
  }
  func.func @transform_6(%arg0: i32) -> (i32, i32) {
    %c0_i32 = arith.constant 0 : i32
    %c0_i32_0 = arith.constant 0 : i32
    %c0_i32_1 = arith.constant 0 : i32
    return %c0_i32, %c0_i32_0 : i32, i32
  }
  func.func @transform_7(%arg0: i32) -> (i32, i32) {
    %c0_i32 = arith.constant 0 : i32
    %c0_i32_0 = arith.constant 0 : i32
    %c0_i32_1 = arith.constant 0 : i32
    return %c0_i32, %c0_i32_0 : i32, i32
  }
  func.func @transform_8(%arg0: i32) -> (i32, i32) {
    %c0_i32 = arith.constant 0 : i32
    %c0_i32_0 = arith.constant 0 : i32
    %c0_i32_1 = arith.constant 0 : i32
    return %c0_i32, %c0_i32_0 : i32, i32
  }
  func.func @transform_9(%arg0: i32) -> (i32, i32, i32) {
    %c0_i32 = arith.constant 0 : i32
    %c0_i32_0 = arith.constant 0 : i32
    %c0_i32_1 = arith.constant 0 : i32
    return %arg0, %c0_i32, %c0_i32_0 : i32, i32, i32
  }
}

</mosaic_0001>

<llo_original>
// kernel: tpu_custom_call.1
$region0: #{tpu_custom_call.1}
  #allocation0 [shape = 'u32[]', space=smem, size = 0x4, offset = 0x4, fixed_abs, tag = 'smem constant byte address 0x4 - core index']
  #allocation1 [shape = 'u32[144,128]{1,0:T(1,128)}', space=vmem, size = 0x12000, scoped, tag = 'internal scratch']
  %s0 = inlined_call_operand.vmem [shape: bf16[2,4,1536], index: 0, kind: input, shape index: {}]
  %s1 = inlined_call_operand.vmem [shape: bf16[2,16,4], index: 1, kind: input, shape index: {}]
  %s2 = inlined_call_operand.vmem [shape: f32[16,1], index: 2, kind: input, shape index: {}]
  %s3 = inlined_call_operand.vmem [shape: bf16[2,16,16], index: 3, kind: input, shape index: {}]
  %s4 = inlined_call_operand.vmem [shape: f32[16,1], index: 4, kind: input, shape index: {}]
  %s5 = inlined_call_operand.vmem [shape: bf16[2,32,16], index: 5, kind: input, shape index: {}]
  %s6 = inlined_call_operand.vmem [shape: f32[32,1], index: 6, kind: input, shape index: {}]
  %s7 = inlined_call_operand.vmem [shape: bf16[32,4], index: 7, kind: input, shape index: {}]
  %s8 = inlined_call_operand.vmem [shape: f32[32,1], index: 8, kind: input, shape index: {}]
  %s9 = inlined_call_operand.hbm [shape: bf16[2,32,1536], index: 9, kind: output, shape index: {}]
  %s10 = sld [smem:[#allocation0]]
  $region69: #{tpu_custom_call.1} parent=0
    _
  %s12 = ssub.s32 1, %s10
  %s13 = scalar_select 0, %s12, %s10
  $region1: #{tpu_custom_call.1} parent=0
    #allocation2 [shape = 'u8[196608]{0}', space=vmem, size = 0x30000, scoped, tag = 'output window, operand 0']
    #allocation3 [shape = 's32[2]{0}', space=sflag, size = 0x8, scoped, tag = 'scoped memory for tpu_custom_call.1']
    %14 = vsyncpa [#allocation3], 0
    %s15 = scalar_lea.sflag [#allocation3], 1
    %16 = vsyncpa %s15, 0
    loop: start=0, step=1, limit=4
    $region2: #{tpu_custom_call.1} parent=1 // loop_pre_header
      _
    $region3: #{tpu_custom_call.1} parent=1 // loop_header
      %s18 = sphi 0, %s22
      %p19 = scmp.ge.s32.totalorder %s18, 4
      %s28 = sphi 0, %s30
      %s31 = sphi 0, %s28
      %s32 = sphi 0, %s31
      %s48 = sphi 0, %s32
      %s52 = sphi 0, %s52
      %s54 = sphi 0, %s52
      %s55 = sphi 0, %s54
      %s69 = sphi 0, %s55
      %s73 = sphi 0, %s73
      %s75 = sphi 0, %s73
      %s76 = sphi 0, %s75
      %s90 = sphi 0, %s76
      %s94 = sphi 0, %s94
      %s96 = sphi 0, %s94
      %s97 = sphi 0, %s96
      %s111 = sphi 0, %s97
      %s115 = sphi 0, %s115
      %s117 = sphi 0, %s115
      %s118 = sphi 0, %s117
      %s132 = sphi 0, %s118
      %s136 = sphi 0, %s136
      %s138 = sphi 0, %s136
      %s139 = sphi 0, %s138
      %s153 = sphi 0, %s139
      %s157 = sphi 0, %s157
      %s159 = sphi 0, %s157
      %s160 = sphi 0, %s159
      %s174 = sphi 0, %s160
      %s178 = sphi 0, %s178
      %s180 = sphi 0, %s178
      %s181 = sphi 0, %s180
      %s195 = sphi 0, %s181
      %s199 = sphi 0, %s199
      %s201 = sphi 0, %s199
      %s202 = sphi 0, %s201
      %s216 = sphi 0, %s202
      %s222 = sphi 0, %s224
      %s225 = sphi 0, %s222
      %s226 = sphi 0, %s225
      %s242 = sphi 0, %s226
    $region4: #{tpu_custom_call.1} parent=1 // loop_header_branch
      %21 = sbr.rel (%p19) target = $region8
    $region5: #{tpu_custom_call.1} parent=1 // loop_body
      %s23 = ssub.s32 %s18, 1
      %s24 = ssub.s32 %s18, 2
      %s25 = sadd.s32 %s18, 1
      %s26 = ssub.s32 %s18, %s25
      %p27 = scmp.eq.s32.totalorder %s26, 0
      %s29 = sadd.s32 %s28, 1
      %s30 = scalar_select %p27, %s28, %s29
      %p33 = pneg %p27
      %p34 = scmp.eq.s32.totalorder %s18, 1
      %p35 = por %p33, %p34
      %p36 = scmp.ne.s32.totalorder %s28, %s31
      %p37 = scmp.eq.s32.totalorder %s18, 0
      %p38 = por %p36, %p37
      %p39 = scmp.ne.s32.totalorder %s28, %s31
      %p40 = scmp.eq.s32.totalorder %s23, 1
      %p41 = por %p39, %p40
      %p42 = scmp.ne.s32.totalorder %s31, %s32
      %p43 = scmp.eq.s32.totalorder %s23, 0
      %p44 = por %p42, %p43
      %p45 = scmp.ne.s32.totalorder %s31, %s32
      %p46 = scmp.eq.s32.totalorder %s24, 1
      %p47 = por %p45, %p46
      %p49 = scmp.ne.s32.totalorder %s32, %s48
      %p50 = scmp.eq.s32.totalorder %s24, 0
      %p51 = por %p49, %p50
      %s53 = sadd.s32 %s52, 1
      %p56 = scmp.eq.s32.totalorder %s18, 1
      %p57 = scmp.ne.s32.totalorder %s52, %s54
      %p58 = scmp.eq.s32.totalorder %s18, 0
      %p59 = por %p57, %p58
      %p60 = scmp.ne.s32.totalorder %s52, %s54
      %p61 = scmp.eq.s32.totalorder %s23, 1
      %p62 = por %p60, %p61
      %p63 = scmp.ne.s32.totalorder %s54, %s55
      %p64 = scmp.eq.s32.totalorder %s23, 0
      %p65 = por %p63, %p64
      %p66 = scmp.ne.s32.totalorder %s54, %s55
      %p67 = scmp.eq.s32.totalorder %s24, 1
      %p68 = por %p66, %p67
      %p70 = scmp.ne.s32.totalorder %s55, %s69
      %p71 = scmp.eq.s32.totalorder %s24, 0
      %p72 = por %p70, %p71
      %s74 = sadd.s32 %s73, 1
      %p77 = scmp.eq.s32.totalorder %s18, 1
      %p78 = scmp.ne.s32.totalorder %s73, %s75
      %p79 = scmp.eq.s32.totalorder %s18, 0
      %p80 = por %p78, %p79
      %p81 = scmp.ne.s32.totalorder %s73, %s75
      %p82 = scmp.eq.s32.totalorder %s23, 1
      %p83 = por %p81, %p82
      %p84 = scmp.ne.s32.totalorder %s75, %s76
      %p85 = scmp.eq.s32.totalorder %s23, 0
      %p86 = por %p84, %p85
      %p87 = scmp.ne.s32.totalorder %s75, %s76
      %p88 = scmp.eq.s32.totalorder %s24, 1
      %p89 = por %p87, %p88
      %p91 = scmp.ne.s32.totalorder %s76, %s90
      %p92 = scmp.eq.s32.totalorder %s24, 0
      %p93 = por %p91, %p92
      %s95 = sadd.s32 %s94, 1
      %p98 = scmp.eq.s32.totalorder %s18, 1
      %p99 = scmp.ne.s32.totalorder %s94, %s96
      %p100 = scmp.eq.s32.totalorder %s18, 0
      %p101 = por %p99, %p100
      %p102 = scmp.ne.s32.totalorder %s94, %s96
      %p103 = scmp.eq.s32.totalorder %s23, 1
      %p104 = por %p102, %p103
      %p105 = scmp.ne.s32.totalorder %s96, %s97
      %p106 = scmp.eq.s32.totalorder %s23, 0
      %p107 = por %p105, %p106
      %p108 = scmp.ne.s32.totalorder %s96, %s97
      %p109 = scmp.eq.s32.totalorder %s24, 1
      %p110 = por %p108, %p109
      %p112 = scmp.ne.s32.totalorder %s97, %s111
      %p113 = scmp.eq.s32.totalorder %s24, 0
      %p114 = por %p112, %p113
      %s116 = sadd.s32 %s115, 1
      %p119 = scmp.eq.s32.totalorder %s18, 1
      %p120 = scmp.ne.s32.totalorder %s115, %s117
      %p121 = scmp.eq.s32.totalorder %s18, 0
      %p122 = por %p120, %p121
      %p123 = scmp.ne.s32.totalorder %s115, %s117
      %p124 = scmp.eq.s32.totalorder %s23, 1
      %p125 = por %p123, %p124
      %p126 = scmp.ne.s32.totalorder %s117, %s118
      %p127 = scmp.eq.s32.totalorder %s23, 0
      %p128 = por %p126, %p127
      %p129 = scmp.ne.s32.totalorder %s117, %s118
      %p130 = scmp.eq.s32.totalorder %s24, 1
      %p131 = por %p129, %p130
      %p133 = scmp.ne.s32.totalorder %s118, %s132
      %p134 = scmp.eq.s32.totalorder %s24, 0
      %p135 = por %p133, %p134
      %s137 = sadd.s32 %s136, 1
      %p140 = scmp.eq.s32.totalorder %s18, 1
      %p141 = scmp.ne.s32.totalorder %s136, %s138
      %p142 = scmp.eq.s32.totalorder %s18, 0
      %p143 = por %p141, %p142
      %p144 = scmp.ne.s32.totalorder %s136, %s138
      %p145 = scmp.eq.s32.totalorder %s23, 1
      %p146 = por %p144, %p145
      %p147 = scmp.ne.s32.totalorder %s138, %s139
      %p148 = scmp.eq.s32.totalorder %s23, 0
      %p149 = por %p147, %p148
      %p150 = scmp.ne.s32.totalorder %s138, %s139
      %p151 = scmp.eq.s32.totalorder %s24, 1
      %p152 = por %p150, %p151
      %p154 = scmp.ne.s32.totalorder %s139, %s153
      %p155 = scmp.eq.s32.totalorder %s24, 0
      %p156 = por %p154, %p155
      %s158 = sadd.s32 %s157, 1
      %p161 = scmp.eq.s32.totalorder %s18, 1
      %p162 = scmp.ne.s32.totalorder %s157, %s159
      %p163 = scmp.eq.s32.totalorder %s18, 0
      %p164 = por %p162, %p163
      %p165 = scmp.ne.s32.totalorder %s157, %s159
      %p166 = scmp.eq.s32.totalorder %s23, 1
      %p167 = por %p165, %p166
      %p168 = scmp.ne.s32.totalorder %s159, %s160
      %p169 = scmp.eq.s32.totalorder %s23, 0
      %p170 = por %p168, %p169
      %p171 = scmp.ne.s32.totalorder %s159, %s160
      %p172 = scmp.eq.s32.totalorder %s24, 1
      %p173 = por %p171, %p172
      %p175 = scmp.ne.s32.totalorder %s160, %s174
      %p176 = scmp.eq.s32.totalorder %s24, 0
      %p177 = por %p175, %p176
      %s179 = sadd.s32 %s178, 1
      %p182 = scmp.eq.s32.totalorder %s18, 1
      %p183 = scmp.ne.s32.totalorder %s178, %s180
      %p184 = scmp.eq.s32.totalorder %s18, 0
      %p185 = por %p183, %p184
      %p186 = scmp.ne.s32.totalorder %s178, %s180
      %p187 = scmp.eq.s32.totalorder %s23, 1
      %p188 = por %p186, %p187
      %p189 = scmp.ne.s32.totalorder %s180, %s181
      %p190 = scmp.eq.s32.totalorder %s23, 0
      %p191 = por %p189, %p190
      %p192 = scmp.ne.s32.totalorder %s180, %s181
      %p193 = scmp.eq.s32.totalorder %s24, 1
      %p194 = por %p192, %p193
      %p196 = scmp.ne.s32.totalorder %s181, %s195
      %p197 = scmp.eq.s32.totalorder %s24, 0
      %p198 = por %p196, %p197
      %s200 = sadd.s32 %s199, 1
      %p203 = scmp.eq.s32.totalorder %s18, 1
      %p204 = scmp.ne.s32.totalorder %s199, %s201
      %p205 = scmp.eq.s32.totalorder %s18, 0
      %p206 = por %p204, %p205
      %p207 = scmp.ne.s32.totalorder %s199, %s201
      %p208 = scmp.eq.s32.totalorder %s23, 1
      %p209 = por %p207, %p208
      %p210 = scmp.ne.s32.totalorder %s201, %s202
      %p211 = scmp.eq.s32.totalorder %s23, 0
      %p212 = por %p210, %p211
      %p213 = scmp.ne.s32.totalorder %s201, %s202
      %p214 = scmp.eq.s32.totalorder %s24, 1
      %p215 = por %p213, %p214
      %p217 = scmp.ne.s32.totalorder %s202, %s216
      %p218 = scmp.eq.s32.totalorder %s24, 0
      %p219 = por %p217, %p218
      %s220 = ssub.s32 %s18, %s25
      %p221 = scmp.eq.s32.totalorder %s220, 0
      %s223 = sadd.s32 %s222, 1
      %s224 = scalar_select %p221, %s222, %s223
      %p227 = pneg %p221
      %p228 = scmp.eq.s32.totalorder %s18, 1
      %p229 = por %p227, %p228
      %p230 = scmp.ne.s32.totalorder %s222, %s225
      %p231 = scmp.eq.s32.totalorder %s18, 0
      %p232 = por %p230, %p231
      %p233 = scmp.ne.s32.totalorder %s222, %s225
      %p234 = scmp.eq.s32.totalorder %s23, 1
      %p235 = por %p233, %p234
      %p236 = scmp.ne.s32.totalorder %s225, %s226
      %p237 = scmp.eq.s32.totalorder %s23, 0
      %p238 = por %p236, %p237
      %p239 = scmp.ne.s32.totalorder %s225, %s226
      %p240 = scmp.eq.s32.totalorder %s24, 1
      %p241 = por %p239, %p240
      %p243 = scmp.ne.s32.totalorder %s226, %s242
      %p244 = scmp.eq.s32.totalorder %s24, 0
      %p245 = por %p243, %p244
      %p246 = scmp.le.s32.totalorder 1, %s18
      %p247 = scmp.lt.s32.totalorder %s18, 3
      %p248 = pnand %p246, %p247
      %p249 = pneg %p248
      // Predicated region
      $region9: #{tpu_custom_call.1} parent=5 // pred_check
        _
      $region10: #{tpu_custom_call.1} parent=5 // pred_check_branch
        %251 = sbr.rel (%p248) target = $region12
      $region11: #{tpu_custom_call.1} parent=5 // pred_region
        %s252 = ssub.s32 %s18, 1
        // Predicated region
        $region13: #{tpu_custom_call.1} parent=11 // pred_check
          %p253 = pneg %p65
        $region14: #{tpu_custom_call.1} parent=11 // pred_check_branch
          %255 = sbr.rel (%p253) target = $region16
        $region15: #{tpu_custom_call.1} parent=11 // pred_region
          _
        $region16: #{tpu_custom_call.1} parent=11 // pred_fallthru
          _
        // Predicated region
        $region17: #{tpu_custom_call.1} parent=11 // pred_check
          %p256 = pneg %p86
        $region18: #{tpu_custom_call.1} parent=11 // pred_check_branch
          %258 = sbr.rel (%p256) target = $region20
        $region19: #{tpu_custom_call.1} parent=11 // pred_region
          _
        $region20: #{tpu_custom_call.1} parent=11 // pred_fallthru
          _
        // Predicated region
        $region21: #{tpu_custom_call.1} parent=11 // pred_check
          %p259 = pneg %p107
        $region22: #{tpu_custom_call.1} parent=11 // pred_check_branch
          %261 = sbr.rel (%p259) target = $region24
        $region23: #{tpu_custom_call.1} parent=11 // pred_region
          _
        $region24: #{tpu_custom_call.1} parent=11 // pred_fallthru
          _
        // Predicated region
        $region25: #{tpu_custom_call.1} parent=11 // pred_check
          %p262 = pneg %p128
        $region26: #{tpu_custom_call.1} parent=11 // pred_check_branch
          %264 = sbr.rel (%p262) target = $region28
        $region27: #{tpu_custom_call.1} parent=11 // pred_region
          _
        $region28: #{tpu_custom_call.1} parent=11 // pred_fallthru
          _
        // Predicated region
        $region29: #{tpu_custom_call.1} parent=11 // pred_check
          %p265 = pneg %p149
        $region30: #{tpu_custom_call.1} parent=11 // pred_check_branch
          %267 = sbr.rel (%p265) target = $region32
        $region31: #{tpu_custom_call.1} parent=11 // pred_region
          _
        $region32: #{tpu_custom_call.1} parent=11 // pred_fallthru
          _
        // Predicated region
        $region33: #{tpu_custom_call.1} parent=11 // pred_check
          %p268 = pneg %p170
        $region34: #{tpu_custom_call.1} parent=11 // pred_check_branch
          %270 = sbr.rel (%p268) target = $region36
        $region35: #{tpu_custom_call.1} parent=11 // pred_region
          _
        $region36: #{tpu_custom_call.1} parent=11 // pred_fallthru
          _
        // Predicated region
        $region37: #{tpu_custom_call.1} parent=11 // pred_check
          %p271 = pneg %p191
        $region38: #{tpu_custom_call.1} parent=11 // pred_check_branch
          %273 = sbr.rel (%p271) target = $region40
        $region39: #{tpu_custom_call.1} parent=11 // pred_region
          _
        $region40: #{tpu_custom_call.1} parent=11 // pred_fallthru
          _
        // Predicated region
        $region41: #{tpu_custom_call.1} parent=11 // pred_check
          %p274 = pneg %p212
        $region42: #{tpu_custom_call.1} parent=11 // pred_check_branch
          %276 = sbr.rel (%p274) target = $region44
        $region43: #{tpu_custom_call.1} parent=11 // pred_region
          _
        $region44: #{tpu_custom_call.1} parent=11 // pred_fallthru
          _
      $region12: #{tpu_custom_call.1} parent=5 // pred_fallthru
        _
      %p277 = scmp.lt.s32.totalorder %s18, 2
      // Predicated region
      $region45: #{tpu_custom_call.1} parent=5 // pred_check
        %p278 = pneg %p277
      $region46: #{tpu_custom_call.1} parent=5 // pred_check_branch
        %280 = sbr.rel (%p278) target = $region48
      $region47: #{tpu_custom_call.1} parent=5 // pred_region
        // Predicated region
        $region49: #{tpu_custom_call.1} parent=47 // pred_check
          %p281 = pneg %p38
        $region50: #{tpu_custom_call.1} parent=47 // pred_check_branch
          %283 = sbr.rel (%p281) target = $region52
        $region51: #{tpu_custom_call.1} parent=47 // pred_region
          %p284 = scmp.lt.s32.totalorder %s18, 1
          %s285 = scalar_select %p284, %s18, 1
          %s286 = smul.addr %s285, 12
          %s287 = smul.addr %s286, 2
          %s288 = scalar_lea.vmem %s0, %s287
        $region52: #{tpu_custom_call.1} parent=47 // pred_fallthru
          _
      $region48: #{tpu_custom_call.1} parent=5 // pred_fallthru
        _
      %p289 = scmp.le.s32.totalorder 1, %s18
      %p290 = scmp.lt.s32.totalorder %s18, 3
      %p291 = pnand %p289, %p290
      %p292 = pneg %p291
      // Predicated region
      $region53: #{tpu_custom_call.1} parent=5 // pred_check
        _
      $region54: #{tpu_custom_call.1} parent=5 // pred_check_branch
        %294 = sbr.rel (%p291) target = $region56
      $region55: #{tpu_custom_call.1} parent=5 // pred_region
        %s295 = ssub.s32 %s18, 1
        %p296 = scmp.lt.s32.totalorder %s23, 1
        %s297 = scalar_select %p296, %s23, 1
        %s298 = smul.addr %s297, 12
        %s299 = smul.addr %s298, 2
        %s300 = scalar_lea.vmem %s0, %s299
        %p301 = pneg %p44
        %p302 = pneg %p41
        %p303 = pneg %p65
        %p304 = pneg %p62
        %p305 = pneg %p86
        %p306 = pneg %p83
        %p307 = pneg %p107
        %p308 = pneg %p104
        %p309 = pneg %p128
        %p310 = pneg %p125
        %p311 = pneg %p149
        %p312 = pneg %p146
        %p313 = pneg %p170
        %p314 = pneg %p167
        %p315 = pneg %p191
        %p316 = pneg %p188
        %p317 = pneg %p212
        %p318 = pneg %p209
        %p319 = pneg %p238
        %p320 = pneg %p235
        %s321 = sand.u32 %s225, 1
        %s322 = scalar_lea.sflag [#allocation3], %s321
        %s323 = sand.u32 %s225, 1
        %s324 = smul.addr %s323, 192
        %s325 = scalar_lea.vmem [#allocation2], %s324
        %p326 = scmp.lt.s32.totalorder %s23, 1
        %s327 = scalar_select %p326, %s23, 1
        %s328 = smul.addr %s327, 12
        %s329 = smul.addr %s328, 2
        %s330 = scalar_lea.vmem %s0, %s329
        %v332 = vld [vmem:[%s330] sm:$0xff]
        %v333 = vld [vmem:[%s330 + $0x8] sm:$0xff]
        %v334 = vld [vmem:[%s330 + $0x10] sm:$0xff]
        %s335 = scalar_lea.vmem %s1, 8
        %v336 = vld [vmem:[%s335] sm:$0xf]
        %v337 = vld [vmem:[%s335 + $0x4] sm:$0xf]
        %v338 = vld [vmem:[%s1] sm:$0xf]
        %v339 = vld [vmem:[%s1 + $0x4] sm:$0xf]
        %v342 = vunpack.c.l.b16 %v338
        %v343 = vunpack.c.l.b16 %v339
        %v344 = vpack.c.b16 %v343, %v342
        %v348 = vcombine.high %v332, %v332
        %v350 = vunpack.c.l.s4 1983009808
        %v351 = vunpack.c.0.s8 %v350
        %v352 = vlaneseq
        %v353 = vshrl.u32 %v352, 7
        %v354 = vsub.s32 %v351, %v353
        %v355 = vrot.slane %v332, %v354
        %v357 = vunpack.c.l.s4 1983009808
        %v358 = vunpack.c.0.s8 %v357
        %v359 = vlaneseq
        %v360 = vshrl.u32 %v359, 7
        %v361 = vsub.s32 %v358, %v360
        %v362 = vrot.slane %v348, %v361
        %v363 = vcombine.high %v355, %v355
        %v364 = vcombine.high %v362, %v362
        %v365 = vcombine.high %v333, %v333
        %v367 = vunpack.c.l.s4 1983009808
        %v368 = vunpack.c.0.s8 %v367
        %v369 = vlaneseq
        %v370 = vshrl.u32 %v369, 7
        %v371 = vsub.s32 %v368, %v370
        %v372 = vrot.slane %v333, %v371
        %v374 = vunpack.c.l.s4 1983009808
        %v375 = vunpack.c.0.s8 %v374
        %v376 = vlaneseq
        %v377 = vshrl.u32 %v376, 7
        %v378 = vsub.s32 %v375, %v377
        %v379 = vrot.slane %v365, %v378
        %v380 = vcombine.high %v372, %v372
        %v381 = vcombine.high %v379, %v379
        %v382 = vcombine.high %v334, %v334
        %v384 = vunpack.c.l.s4 1983009808
        %v385 = vunpack.c.0.s8 %v384
        %v386 = vlaneseq
        %v387 = vshrl.u32 %v386, 7
        %v388 = vsub.s32 %v385, %v387
        %v389 = vrot.slane %v334, %v388
        %v391 = vunpack.c.l.s4 1983009808
        %v392 = vunpack.c.0.s8 %v391
        %v393 = vlaneseq
        %v394 = vshrl.u32 %v393, 7
        %v395 = vsub.s32 %v392, %v394
        %v396 = vrot.slane %v382, %v395
        %v397 = vcombine.high %v389, %v389
        %vm398 = vcmask 31744
        %v400 = vsel %vm398, %v344, 0
        %vm402 = vcmask 1041408
        %v404 = vsel %vm402, %v355, 0
        %v407 = vsel %vm402, %v363, 0
        %v410 = vsel %vm402, %v362, 0
        %v413 = vsel %vm402, %v364, 0
        %v416 = vsel %vm402, %v372, 0
        %v419 = vsel %vm402, %v380, 0
        %v422 = vsel %vm402, %v379, 0
        %v425 = vsel %vm402, %v381, 0
        %v428 = vsel %vm402, %v389, 0
        %v431 = vsel %vm402, %v397, 0
        %v434 = vsel %vm402, %v396, 0
        %436 = vmatprep.subr.bf16.mxu0 %v407
        %437 = vmatpush1.bf16.msra.mxu0 %v404
        %438 = vmatprep.subr.bf16.mxu0 0
        %439 = vmatpush1.bf16.msra.mxu0 0
        %440 = vmatprep.subr.bf16.mxu0 0
        %441 = vmatpush1.bf16.msra.mxu0 0
        %442 = vmatprep.subr.bf16.mxu0 0
        %443 = vmatpush1.bf16.msra.mxu0 0
        %444 = vmatprep.subr.bf16.mxu0 0
        %445 = vmatpush1.bf16.msra.mxu0 0
        %446 = vmatprep.subr.bf16.mxu0 0
        %447 = vmatpush1.bf16.msra.mxu0 0
        %448 = vmatprep.subr.bf16.mxu0 0
        %449 = vmatpush1.bf16.msra.mxu0 0
        %450 = vmatprep.subr.bf16.mxu0 0
        %451 = vmatpush1.bf16.msra.mxu0 0
        %452 = vmatprep.subr.bf16.mxu0 0
        %453 = vmatpush1.bf16.msra.mxu0 0
        %454 = vmatprep.subr.bf16.mxu0 0
        %455 = vmatpush1.bf16.msra.mxu0 0
        %456 = vmatprep.subr.bf16.mxu0 0
        %457 = vmatpush1.bf16.msra.mxu0 0
        %458 = vmatprep.subr.bf16.mxu0 0
        %459 = vmatpush1.bf16.msra.mxu0 0
        %460 = vmatprep.subr.bf16.mxu0 0
        %461 = vmatpush1.bf16.msra.mxu0 0
        %462 = vmatprep.subr.bf16.mxu0 0
        %463 = vmatpush1.bf16.msra.mxu0 0
        %464 = vmatprep.subr.bf16.mxu0 0
        %465 = vmatpush1.bf16.msra.mxu0 0
        %466 = vmatprep.subr.bf16.mxu0 0
        %467 = vmatpush1.bf16.msra.mxu0 0
        %468 = vmatprep.mubr.bf16.mxu0 0
        %469 = vmatmul.mubr.bf16.gmra.mrb[0].mxu0 %v400
        %v470 = vpop.f32.mrb[0].mxu0
        %v471 = vadd.f32 0.0, %v470
        %v472 = vpop.f32.mrb[0].mxu0
        %v473 = vadd.f32 0.0, %v472
        %v474 = vpop.f32.mrb[0].mxu0
        %v475 = vadd.f32 0.0, %v474
        %v476 = vpop.f32.mrb[0].mxu0
        %v477 = vadd.f32 0.0, %v476
        %478 = vdwg.mxu0
        %479 = vmatprep.subr.bf16.mxu0 %v413
        %480 = vmatpush1.bf16.msra.mxu0 %v410
        %481 = vmatprep.subr.bf16.mxu0 0
        %482 = vmatpush1.bf16.msra.mxu0 0
        %483 = vmatprep.subr.bf16.mxu0 0
        %484 = vmatpush1.bf16.msra.mxu0 0
        %485 = vmatprep.subr.bf16.mxu0 0
        %486 = vmatpush1.bf16.msra.mxu0 0
        %487 = vmatprep.subr.bf16.mxu0 0
        %488 = vmatpush1.bf16.msra.mxu0 0
        %489 = vmatprep.subr.bf16.mxu0 0
        %490 = vmatpush1.bf16.msra.mxu0 0
        %491 = vmatprep.subr.bf16.mxu0 0
        %492 = vmatpush1.bf16.msra.mxu0 0
        %493 = vmatprep.subr.bf16.mxu0 0
        %494 = vmatpush1.bf16.msra.mxu0 0
        %495 = vmatprep.subr.bf16.mxu0 0
        %496 = vmatpush1.bf16.msra.mxu0 0
        %497 = vmatprep.subr.bf16.mxu0 0
        %498 = vmatpush1.bf16.msra.mxu0 0
        %499 = vmatprep.subr.bf16.mxu0 0
        %500 = vmatpush1.bf16.msra.mxu0 0
        %501 = vmatprep.subr.bf16.mxu0 0
        %502 = vmatpush1.bf16.msra.mxu0 0
        %503 = vmatprep.subr.bf16.mxu0 0
        %504 = vmatpush1.bf16.msra.mxu0 0
        %505 = vmatprep.subr.bf16.mxu0 0
        %506 = vmatpush1.bf16.msra.mxu0 0
        %507 = vmatprep.subr.bf16.mxu0 0
        %508 = vmatpush1.bf16.msra.mxu0 0
        %509 = vmatprep.subr.bf16.mxu0 0
        %510 = vmatpush1.bf16.msra.mxu0 0
        %511 = vmatprep.mubr.bf16.mxu0 0
        %512 = vmatmul.mubr.bf16.gmra.mrb[0].mxu0 %v400
        %v513 = vpop.f32.mrb[0].mxu0
        %v514 = vadd.f32 0.0, %v513
        %v515 = vpop.f32.mrb[0].mxu0
        %v516 = vadd.f32 0.0, %v515
        %v517 = vpop.f32.mrb[0].mxu0
        %v518 = vadd.f32 0.0, %v517
        %v519 = vpop.f32.mrb[0].mxu0
        %v520 = vadd.f32 0.0, %v519
        %521 = vdwg.mxu0
        %522 = vmatprep.subr.bf16.mxu0 %v419
        %523 = vmatpush1.bf16.msra.mxu0 %v416
        %524 = vmatprep.subr.bf16.mxu0 0
        %525 = vmatpush1.bf16.msra.mxu0 0
        %526 = vmatprep.subr.bf16.mxu0 0
        %527 = vmatpush1.bf16.msra.mxu0 0
        %528 = vmatprep.subr.bf16.mxu0 0
        %529 = vmatpush1.bf16.msra.mxu0 0
        %530 = vmatprep.subr.bf16.mxu0 0
        %531 = vmatpush1.bf16.msra.mxu0 0
        %532 = vmatprep.subr.bf16.mxu0 0
        %533 = vmatpush1.bf16.msra.mxu0 0
        %534 = vmatprep.subr.bf16.mxu0 0
        %535 = vmatpush1.bf16.msra.mxu0 0
        %536 = vmatprep.subr.bf16.mxu0 0
        %537 = vmatpush1.bf16.msra.mxu0 0
        %538 = vmatprep.subr.bf16.mxu0 0
        %539 = vmatpush1.bf16.msra.mxu0 0
        %540 = vmatprep.subr.bf16.mxu0 0
        %541 = vmatpush1.bf16.msra.mxu0 0
        %542 = vmatprep.subr.bf16.mxu0 0
        %543 = vmatpush1.bf16.msra.mxu0 0
        %544 = vmatprep.subr.bf16.mxu0 0
        %545 = vmatpush1.bf16.msra.mxu0 0
        %546 = vmatprep.subr.bf16.mxu0 0
        %547 = vmatpush1.bf16.msra.mxu0 0
        %548 = vmatprep.subr.bf16.mxu0 0
        %549 = vmatpush1.bf16.msra.mxu0 0
        %550 = vmatprep.subr.bf16.mxu0 0
        %551 = vmatpush1.bf16.msra.mxu0 0
        %552 = vmatprep.subr.bf16.mxu0 0
        %553 = vmatpush1.bf16.msra.mxu0 0
        %554 = vmatprep.mubr.bf16.mxu0 0
        %555 = vmatmul.mubr.bf16.gmra.mrb[0].mxu0 %v400
        %v556 = vpop.f32.mrb[0].mxu0
        %v557 = vadd.f32 0.0, %v556
        %v558 = vpop.f32.mrb[0].mxu0
        %v559 = vadd.f32 0.0, %v558
        %v560 = vpop.f32.mrb[0].mxu0
        %v561 = vadd.f32 0.0, %v560
        %v562 = vpop.f32.mrb[0].mxu0
        %v563 = vadd.f32 0.0, %v562
        %564 = vdwg.mxu0
        %565 = vmatprep.subr.bf16.mxu0 %v425
        %566 = vmatpush1.bf16.msra.mxu0 %v422
        %567 = vmatprep.subr.bf16.mxu0 0
        %568 = vmatpush1.bf16.msra.mxu0 0
        %569 = vmatprep.subr.bf16.mxu0 0
        %570 = vmatpush1.bf16.msra.mxu0 0
        %571 = vmatprep.subr.bf16.mxu0 0
        %572 = vmatpush1.bf16.msra.mxu0 0
        %573 = vmatprep.subr.bf16.mxu0 0
        %574 = vmatpush1.bf16.msra.mxu0 0
        %575 = vmatprep.subr.bf16.mxu0 0
        %576 = vmatpush1.bf16.msra.mxu0 0
        %577 = vmatprep.subr.bf16.mxu0 0
        %578 = vmatpush1.bf16.msra.mxu0 0
        %579 = vmatprep.subr.bf16.mxu0 0
        %580 = vmatpush1.bf16.msra.mxu0 0
        %581 = vmatprep.subr.bf16.mxu0 0
        %582 = vmatpush1.bf16.msra.mxu0 0
        %583 = vmatprep.subr.bf16.mxu0 0
        %584 = vmatpush1.bf16.msra.mxu0 0
        %585 = vmatprep.subr.bf16.mxu0 0
        %586 = vmatpush1.bf16.msra.mxu0 0
        %587 = vmatprep.subr.bf16.mxu0 0
        %588 = vmatpush1.bf16.msra.mxu0 0
        %589 = vmatprep.subr.bf16.mxu0 0
        %590 = vmatpush1.bf16.msra.mxu0 0
        %591 = vmatprep.subr.bf16.mxu0 0
        %592 = vmatpush1.bf16.msra.mxu0 0
        %593 = vmatprep.subr.bf16.mxu0 0
        %594 = vmatpush1.bf16.msra.mxu0 0
        %595 = vmatprep.subr.bf16.mxu0 0
        %596 = vmatpush1.bf16.msra.mxu0 0
        %597 = vmatprep.mubr.bf16.mxu0 0
        %598 = vmatmul.mubr.bf16.gmra.mrb[0].mxu0 %v400
        %v599 = vpop.f32.mrb[0].mxu0
        %v600 = vadd.f32 0.0, %v599
        %v601 = vpop.f32.mrb[0].mxu0
        %v602 = vadd.f32 0.0, %v601
        %v603 = vpop.f32.mrb[0].mxu0
        %v604 = vadd.f32 0.0, %v603
        %v605 = vpop.f32.mrb[0].mxu0
        %v606 = vadd.f32 0.0, %v605
        %607 = vdwg.mxu0
        %608 = vmatprep.subr.bf16.mxu0 %v431
        %609 = vmatpush1.bf16.msra.mxu0 %v428
        %610 = vmatprep.subr.bf16.mxu0 0
        %611 = vmatpush1.bf16.msra.mxu0 0
        %612 = vmatprep.subr.bf16.mxu0 0
        %613 = vmatpush1.bf16.msra.mxu0 0
        %614 = vmatprep.subr.bf16.mxu0 0
        %615 = vmatpush1.bf16.msra.mxu0 0
        %616 = vmatprep.subr.bf16.mxu0 0
        %617 = vmatpush1.bf16.msra.mxu0 0
        %618 = vmatprep.subr.bf16.mxu0 0
        %619 = vmatpush1.bf16.msra.mxu0 0
        %620 = vmatprep.subr.bf16.mxu0 0
        %621 = vmatpush1.bf16.msra.mxu0 0
        %622 = vmatprep.subr.bf16.mxu0 0
        %623 = vmatpush1.bf16.msra.mxu0 0
        %624 = vmatprep.subr.bf16.mxu0 0
        %625 = vmatpush1.bf16.msra.mxu0 0
        %626 = vmatprep.subr.bf16.mxu0 0
        %627 = vmatpush1.bf16.msra.mxu0 0
        %628 = vmatprep.subr.bf16.mxu0 0
        %629 = vmatpush1.bf16.msra.mxu0 0
        %630 = vmatprep.subr.bf16.mxu0 0
        %631 = vmatpush1.bf16.msra.mxu0 0
        %632 = vmatprep.subr.bf16.mxu0 0
        %633 = vmatpush1.bf16.msra.mxu0 0
        %634 = vmatprep.subr.bf16.mxu0 0
        %635 = vmatpush1.bf16.msra.mxu0 0
        %636 = vmatprep.subr.bf16.mxu0 0
        %637 = vmatpush1.bf16.msra.mxu0 0
        %638 = vmatprep.subr.bf16.mxu0 0
        %639 = vmatpush1.bf16.msra.mxu0 0
        %640 = vmatprep.mubr.bf16.mxu0 0
        %641 = vmatmul.mubr.bf16.gmra.mrb[0].mxu0 %v400
        %v642 = vpop.f32.mrb[0].mxu0
        %v643 = vadd.f32 0.0, %v642
        %v644 = vpop.f32.mrb[0].mxu0
        %v645 = vadd.f32 0.0, %v644
        %v646 = vpop.f32.mrb[0].mxu0
        %v647 = vadd.f32 0.0, %v646
        %v648 = vpop.f32.mrb[0].mxu0
        %v649 = vadd.f32 0.0, %v648
        %650 = vdwg.mxu0
        %651 = vmatprep.subr.bf16.mxu0 0
        %652 = vmatpush1.bf16.msra.mxu0 %v434
        %653 = vmatprep.subr.bf16.mxu0 0
        %654 = vmatpush1.bf16.msra.mxu0 0
        %655 = vmatprep.subr.bf16.mxu0 0
        %656 = vmatpush1.bf16.msra.mxu0 0
        %657 = vmatprep.subr.bf16.mxu0 0
        %658 = vmatpush1.bf16.msra.mxu0 0
        %659 = vmatprep.subr.bf16.mxu0 0
        %660 = vmatpush1.bf16.msra.mxu0 0
        %661 = vmatprep.subr.bf16.mxu0 0
        %662 = vmatpush1.bf16.msra.mxu0 0
        %663 = vmatprep.subr.bf16.mxu0 0
        %664 = vmatpush1.bf16.msra.mxu0 0
        %665 = vmatprep.subr.bf16.mxu0 0
        %666 = vmatpush1.bf16.msra.mxu0 0
        %667 = vmatprep.subr.bf16.mxu0 0
        %668 = vmatpush1.bf16.msra.mxu0 0
        %669 = vmatprep.subr.bf16.mxu0 0
        %670 = vmatpush1.bf16.msra.mxu0 0
        %671 = vmatprep.subr.bf16.mxu0 0
        %672 = vmatpush1.bf16.msra.mxu0 0
        %673 = vmatprep.subr.bf16.mxu0 0
        %674 = vmatpush1.bf16.msra.mxu0 0
        %675 = vmatprep.subr.bf16.mxu0 0
        %676 = vmatpush1.bf16.msra.mxu0 0
        %677 = vmatprep.subr.bf16.mxu0 0
        %678 = vmatpush1.bf16.msra.mxu0 0
        %679 = vmatprep.subr.bf16.mxu0 0
        %680 = vmatpush1.bf16.msra.mxu0 0
        %681 = vmatprep.subr.bf16.mxu0 0
        %682 = vmatpush1.bf16.msra.mxu0 0
        %683 = vmatprep.mubr.bf16.mxu0 0
        %684 = vmatmul.mubr.bf16.gmra.mrb[0].mxu0 %v400
        %v685 = vpop.f32.mrb[0].mxu0
        %v686 = vadd.f32 0.0, %v685
        %v687 = vpop.f32.mrb[0].mxu0
        %v688 = vpop.f32.mrb[0].mxu0
        %v689 = vadd.f32 0.0, %v688
        %v690 = vpop.f32.mrb[0].mxu0
        %691 = vdwg.mxu0
        %v694 = vunpack.c.l.b16 %v336
        %v695 = vunpack.c.l.b16 %v337
        %v696 = vpack.c.b16 %v695, %v694
        %v697 = vcombine.high %v396, %v396
        %v699 = vsel %vm398, %v696, 0
        %v702 = vsel %vm402, %v697, 0
        %704 = vmatprep.subr.bf16.mxu0 %v407
        %705 = vmatpush1.bf16.msra.mxu0 %v404
        %706 = vmatprep.subr.bf16.mxu0 0
        %707 = vmatpush1.bf16.msra.mxu0 0
        %708 = vmatprep.subr.bf16.mxu0 0
        %709 = vmatpush1.bf16.msra.mxu0 0
        %710 = vmatprep.subr.bf16.mxu0 0
        %711 = vmatpush1.bf16.msra.mxu0 0
        %712 = vmatprep.subr.bf16.mxu0 0
        %713 = vmatpush1.bf16.msra.mxu0 0
        %714 = vmatprep.subr.bf16.mxu0 0
        %715 = vmatpush1.bf16.msra.mxu0 0
        %716 = vmatprep.subr.bf16.mxu0 0
        %717 = vmatpush1.bf16.msra.mxu0 0
        %718 = vmatprep.subr.bf16.mxu0 0
        %719 = vmatpush1.bf16.msra.mxu0 0
        %720 = vmatprep.subr.bf16.mxu0 0
        %721 = vmatpush1.bf16.msra.mxu0 0
        %722 = vmatprep.subr.bf16.mxu0 0
        %723 = vmatpush1.bf16.msra.mxu0 0
        %724 = vmatprep.subr.bf16.mxu0 0
        %725 = vmatpush1.bf16.msra.mxu0 0
        %726 = vmatprep.subr.bf16.mxu0 0
        %727 = vmatpush1.bf16.msra.mxu0 0
        %728 = vmatprep.subr.bf16.mxu0 0
        %729 = vmatpush1.bf16.msra.mxu0 0
        %730 = vmatprep.subr.bf16.mxu0 0
        %731 = vmatpush1.bf16.msra.mxu0 0
        %732 = vmatprep.subr.bf16.mxu0 0
        %733 = vmatpush1.bf16.msra.mxu0 0
        %734 = vmatprep.subr.bf16.mxu0 0
        %735 = vmatpush1.bf16.msra.mxu0 0
        %736 = vmatprep.mubr.bf16.mxu0 0
        %737 = vmatmul.mubr.bf16.gmra.mrb[0].mxu0 %v699
        %v738 = vpop.f32.mrb[0].mxu0
        %v739 = vadd.f32 0.0, %v738
        %v740 = vpop.f32.mrb[0].mxu0
        %v741 = vadd.f32 %v471, %v740
        %v742 = vpop.f32.mrb[0].mxu0
        %v743 = vadd.f32 0.0, %v742
        %v744 = vpop.f32.mrb[0].mxu0
        %v745 = vadd.f32 %v475, %v744
        %746 = vdwg.mxu0
        %747 = vmatprep.subr.bf16.mxu0 %v413
        %748 = vmatpush1.bf16.msra.mxu0 %v410
        %749 = vmatprep.subr.bf16.mxu0 0
        %750 = vmatpush1.bf16.msra.mxu0 0
        %751 = vmatprep.subr.bf16.mxu0 0
        %752 = vmatpush1.bf16.msra.mxu0 0
        %753 = vmatprep.subr.bf16.mxu0 0
        %754 = vmatpush1.bf16.msra.mxu0 0
        %755 = vmatprep.subr.bf16.mxu0 0
        %756 = vmatpush1.bf16.msra.mxu0 0
        %757 = vmatprep.subr.bf16.mxu0 0
        %758 = vmatpush1.bf16.msra.mxu0 0
        %759 = vmatprep.subr.bf16.mxu0 0
        %760 = vmatpush1.bf16.msra.mxu0 0
        %761 = vmatprep.subr.bf16.mxu0 0
        %762 = vmatpush1.bf16.msra.mxu0 0
        %763 = vmatprep.subr.bf16.mxu0 0
        %764 = vmatpush1.bf16.msra.mxu0 0
        %765 = vmatprep.subr.bf16.mxu0 0
        %766 = vmatpush1.bf16.msra.mxu0 0
        %767 = vmatprep.subr.bf16.mxu0 0
        %768 = vmatpush1.bf16.msra.mxu0 0
        %769 = vmatprep.subr.bf16.mxu0 0
        %770 = vmatpush1.bf16.msra.mxu0 0
        %771 = vmatprep.subr.bf16.mxu0 0
        %772 = vmatpush1.bf16.msra.mxu0 0
        %773 = vmatprep.subr.bf16.mxu0 0
        %774 = vmatpush1.bf16.msra.mxu0 0
        %775 = vmatprep.subr.bf16.mxu0 0
        %776 = vmatpush1.bf16.msra.mxu0 0
        %777 = vmatprep.subr.bf16.mxu0 0
        %778 = vmatpush1.bf16.msra.mxu0 0
        %779 = vmatprep.mubr.bf16.mxu0 0
        %780 = vmatmul.mubr.bf16.gmra.mrb[0].mxu0 %v699
        %v781 = vpop.f32.mrb[0].mxu0
        %v782 = vadd.f32 %v473, %v781
        %v783 = vpop.f32.mrb[0].mxu0
        %v784 = vadd.f32 %v514, %v783
        %v785 = vpop.f32.mrb[0].mxu0
        %v786 = vadd.f32 %v477, %v785
        %v787 = vpop.f32.mrb[0].mxu0
        %v788 = vadd.f32 %v518, %v787
        %789 = vdwg.mxu0
        %790 = vmatprep.subr.bf16.mxu0 %v419
        %791 = vmatpush1.bf16.msra.mxu0 %v416
        %792 = vmatprep.subr.bf16.mxu0 0
        %793 = vmatpush1.bf16.msra.mxu0 0
        %794 = vmatprep.subr.bf16.mxu0 0
        %795 = vmatpush1.bf16.msra.mxu0 0
        %796 = vmatprep.subr.bf16.mxu0 0
        %797 = vmatpush1.bf16.msra.mxu0 0
        %798 = vmatprep.subr.bf16.mxu0 0
        %799 = vmatpush1.bf16.msra.mxu0 0
        %800 = vmatprep.subr.bf16.mxu0 0
        %801 = vmatpush1.bf16.msra.mxu0 0
        %802 = vmatprep.subr.bf16.mxu0 0
        %803 = vmatpush1.bf16.msra.mxu0 0
        %804 = vmatprep.subr.bf16.mxu0 0
        %805 = vmatpush1.bf16.msra.mxu0 0
        %806 = vmatprep.subr.bf16.mxu0 0
        %807 = vmatpush1.bf16.msra.mxu0 0
        %808 = vmatprep.subr.bf16.mxu0 0
        %809 = vmatpush1.bf16.msra.mxu0 0
        %810 = vmatprep.subr.bf16.mxu0 0
        %811 = vmatpush1.bf16.msra.mxu0 0
        %812 = vmatprep.subr.bf16.mxu0 0
        %813 = vmatpush1.bf16.msra.mxu0 0
        %814 = vmatprep.subr.bf16.mxu0 0
        %815 = vmatpush1.bf16.msra.mxu0 0
        %816 = vmatprep.subr.bf16.mxu0 0
        %817 = vmatpush1.bf16.msra.mxu0 0
        %818 = vmatprep.subr.bf16.mxu0 0
        %819 = vmatpush1.bf16.msra.mxu0 0
        %820 = vmatprep.subr.bf16.mxu0 0
        %821 = vmatpush1.bf16.msra.mxu0 0
        %822 = vmatprep.mubr.bf16.mxu0 0
        %823 = vmatmul.mubr.bf16.gmra.mrb[0].mxu0 %v699
        %v824 = vpop.f32.mrb[0].mxu0
        %v825 = vadd.f32 %v516, %v824
        %v826 = vpop.f32.mrb[0].mxu0
        %v827 = vadd.f32 %v557, %v826
        %v828 = vpop.f32.mrb[0].mxu0
        %v829 = vadd.f32 %v520, %v828
        %v830 = vpop.f32.mrb[0].mxu0
        %v831 = vadd.f32 %v561, %v830
        %832 = vdwg.mxu0
        %833 = vmatprep.subr.bf16.mxu0 %v425
        %834 = vmatpush1.bf16.msra.mxu0 %v422
        %835 = vmatprep.subr.bf16.mxu0 0
        %836 = vmatpush1.bf16.msra.mxu0 0
        %837 = vmatprep.subr.bf16.mxu0 0
        %838 = vmatpush1.bf16.msra.mxu0 0
        %839 = vmatprep.subr.bf16.mxu0 0
        %840 = vmatpush1.bf16.msra.mxu0 0
        %841 = vmatprep.subr.bf16.mxu0 0
        %842 = vmatpush1.bf16.msra.mxu0 0
        %843 = vmatprep.subr.bf16.mxu0 0
        %844 = vmatpush1.bf16.msra.mxu0 0
        %845 = vmatprep.subr.bf16.mxu0 0
        %846 = vmatpush1.bf16.msra.mxu0 0
        %847 = vmatprep.subr.bf16.mxu0 0
        %848 = vmatpush1.bf16.msra.mxu0 0
        %849 = vmatprep.subr.bf16.mxu0 0
        %850 = vmatpush1.bf16.msra.mxu0 0
        %851 = vmatprep.subr.bf16.mxu0 0
        %852 = vmatpush1.bf16.msra.mxu0 0
        %853 = vmatprep.subr.bf16.mxu0 0
        %854 = vmatpush1.bf16.msra.mxu0 0
        %855 = vmatprep.subr.bf16.mxu0 0
        %856 = vmatpush1.bf16.msra.mxu0 0
        %857 = vmatprep.subr.bf16.mxu0 0
        %858 = vmatpush1.bf16.msra.mxu0 0
        %859 = vmatprep.subr.bf16.mxu0 0
        %860 = vmatpush1.bf16.msra.mxu0 0
        %861 = vmatprep.subr.bf16.mxu0 0
        %862 = vmatpush1.bf16.msra.mxu0 0
        %863 = vmatprep.subr.bf16.mxu0 0
        %864 = vmatpush1.bf16.msra.mxu0 0
        %865 = vmatprep.mubr.bf16.mxu0 0
        %866 = vmatmul.mubr.bf16.gmra.mrb[0].mxu0 %v699
        %v867 = vpop.f32.mrb[0].mxu0
        %v868 = vadd.f32 %v559, %v867
        %v869 = vpop.f32.mrb[0].mxu0
        %v870 = vadd.f32 %v600, %v869
        %v871 = vpop.f32.mrb[0].mxu0
        %v872 = vadd.f32 %v563, %v871
        %v873 = vpop.f32.mrb[0].mxu0
        %v874 = vadd.f32 %v604, %v873
        %875 = vdwg.mxu0
        %876 = vmatprep.subr.bf16.mxu0 %v431
        %877 = vmatpush1.bf16.msra.mxu0 %v428
        %878 = vmatprep.subr.bf16.mxu0 0
        %879 = vmatpush1.bf16.msra.mxu0 0
        %880 = vmatprep.subr.bf16.mxu0 0
        %881 = vmatpush1.bf16.msra.mxu0 0
        %882 = vmatprep.subr.bf16.mxu0 0
        %883 = vmatpush1.bf16.msra.mxu0 0
        %884 = vmatprep.subr.bf16.mxu0 0
        %885 = vmatpush1.bf16.msra.mxu0 0
        %886 = vmatprep.subr.bf16.mxu0 0
        %887 = vmatpush1.bf16.msra.mxu0 0
        %888 = vmatprep.subr.bf16.mxu0 0
        %889 = vmatpush1.bf16.msra.mxu0 0
        %890 = vmatprep.subr.bf16.mxu0 0
        %891 = vmatpush1.bf16.msra.mxu0 0
        %892 = vmatprep.subr.bf16.mxu0 0
        %893 = vmatpush1.bf16.msra.mxu0 0
        %894 = vmatprep.subr.bf16.mxu0 0
        %895 = vmatpush1.bf16.msra.mxu0 0
        %896 = vmatprep.subr.bf16.mxu0 0
        %897 = vmatpush1.bf16.msra.mxu0 0
        %898 = vmatprep.subr.bf16.mxu0 0
        %899 = vmatpush1.bf16.msra.mxu0 0
        %900 = vmatprep.subr.bf16.mxu0 0
        %901 = vmatpush1.bf16.msra.mxu0 0
        %902 = vmatprep.subr.bf16.mxu0 0
        %903 = vmatpush1.bf16.msra.mxu0 0
        %904 = vmatprep.subr.bf16.mxu0 0
        %905 = vmatpush1.bf16.msra.mxu0 0
        %906 = vmatprep.subr.bf16.mxu0 0
        %907 = vmatpush1.bf16.msra.mxu0 0
        %908 = vmatprep.mubr.bf16.mxu0 0
        %909 = vmatmul.mubr.bf16.gmra.mrb[0].mxu0 %v699
        %v910 = vpop.f32.mrb[0].mxu0
        %v911 = vadd.f32 %v602, %v910
        %v912 = vpop.f32.mrb[0].mxu0
        %v913 = vadd.f32 %v643, %v912
        %v914 = vpop.f32.mrb[0].mxu0
        %v915 = vadd.f32 %v606, %v914
        %v916 = vpop.f32.mrb[0].mxu0
        %v917 = vadd.f32 %v647, %v916
        %918 = vdwg.mxu0
        %919 = vmatprep.subr.bf16.mxu0 %v702
        %920 = vmatpush1.bf16.msra.mxu0 %v434
        %921 = vmatprep.subr.bf16.mxu0 0
        %922 = vmatpush1.bf16.msra.mxu0 0
        %923 = vmatprep.subr.bf16.mxu0 0
        %924 = vmatpush1.bf16.msra.mxu0 0
        %925 = vmatprep.subr.bf16.mxu0 0
        %926 = vmatpush1.bf16.msra.mxu0 0
        %927 = vmatprep.subr.bf16.mxu0 0
        %928 = vmatpush1.bf16.msra.mxu0 0
        %929 = vmatprep.subr.bf16.mxu0 0
        %930 = vmatpush1.bf16.msra.mxu0 0
        %931 = vmatprep.subr.bf16.mxu0 0
        %932 = vmatpush1.bf16.msra.mxu0 0
        %933 = vmatprep.subr.bf16.mxu0 0
        %934 = vmatpush1.bf16.msra.mxu0 0
        %935 = vmatprep.subr.bf16.mxu0 0
        %936 = vmatpush1.bf16.msra.mxu0 0
        %937 = vmatprep.subr.bf16.mxu0 0
        %938 = vmatpush1.bf16.msra.mxu0 0
        %939 = vmatprep.subr.bf16.mxu0 0
        %940 = vmatpush1.bf16.msra.mxu0 0
        %941 = vmatprep.subr.bf16.mxu0 0
        %942 = vmatpush1.bf16.msra.mxu0 0
        %943 = vmatprep.subr.bf16.mxu0 0
        %944 = vmatpush1.bf16.msra.mxu0 0
        %945 = vmatprep.subr.bf16.mxu0 0
        %946 = vmatpush1.bf16.msra.mxu0 0
        %947 = vmatprep.subr.bf16.mxu0 0
        %948 = vmatpush1.bf16.msra.mxu0 0
        %949 = vmatprep.subr.bf16.mxu0 0
        %950 = vmatpush1.bf16.msra.mxu0 0
        %951 = vmatprep.mubr.bf16.mxu0 0
        %952 = vmatmul.mubr.bf16.gmra.mrb[0].mxu0 %v699
        %v953 = vpop.f32.mrb[0].mxu0
        %v954 = vadd.f32 %v645, %v953
        %v955 = vpop.f32.mrb[0].mxu0
        %v956 = vadd.f32 %v686, %v955
        %v957 = vpop.f32.mrb[0].mxu0
        %v958 = vadd.f32 %v649, %v957
        %v959 = vpop.f32.mrb[0].mxu0
        %v960 = vadd.f32 %v689, %v959
        %961 = vdwg.mxu0
        %v962 = vld [vmem:[%s2] sm:$0xff]
        %v963 = vld [vmem:[%s2 + $0x8] sm:$0xff]
        %965 = vset.pattern.permute.xlu0 0
        %966 = vperm.xlu0 %965, %v962
        %v967 = vpop.permute.xlu0 %966
        %970 = vset.pattern.permute.xlu0 0
        %971 = vperm.xlu0 %970, %v963
        %v972 = vpop.permute.xlu0 %971
        %v974 = vadd.f32 %v739, %v967
        %v975 = vadd.f32 %v741, %v967
        %v976 = vadd.f32 %v782, %v967
        %v977 = vadd.f32 %v784, %v967
        %v978 = vadd.f32 %v825, %v967
        %v979 = vadd.f32 %v827, %v967
        %v980 = vadd.f32 %v868, %v967
        %v981 = vadd.f32 %v870, %v967
        %v982 = vadd.f32 %v911, %v967
        %v983 = vadd.f32 %v913, %v967
        %v984 = vadd.f32 %v954, %v967
        %v985 = vadd.f32 %v956, %v967
        %v986 = vadd.f32 %v743, %v972
        %v987 = vadd.f32 %v745, %v972
        %v988 = vadd.f32 %v786, %v972
        %v989 = vadd.f32 %v788, %v972
        %v990 = vadd.f32 %v829, %v972
        %v991 = vadd.f32 %v831, %v972
        %v992 = vadd.f32 %v872, %v972
        %v993 = vadd.f32 %v874, %v972
        %v994 = vadd.f32 %v915, %v972
        %v995 = vadd.f32 %v917, %v972
        %v996 = vadd.f32 %v958, %v972
        %v997 = vadd.f32 %v960, %v972
        %v998 = vmax.f32 %v974, 0.0
        %v999 = vmax.f32 %v975, 0.0
        %v1000 = vmax.f32 %v976, 0.0
        %v1001 = vmax.f32 %v977, 0.0
        %v1002 = vmax.f32 %v978, 0.0
        %v1003 = vmax.f32 %v979, 0.0
        %v1004 = vmax.f32 %v980, 0.0
        %v1005 = vmax.f32 %v981, 0.0
        %v1006 = vmax.f32 %v982, 0.0
        %v1007 = vmax.f32 %v983, 0.0
        %v1008 = vmax.f32 %v984, 0.0
        %v1009 = vmax.f32 %v985, 0.0
        %v1010 = vmax.f32 %v986, 0.0
        %v1011 = vmax.f32 %v987, 0.0
        %v1012 = vmax.f32 %v988, 0.0
        %v1013 = vmax.f32 %v989, 0.0
        %v1014 = vmax.f32 %v990, 0.0
        %v1015 = vmax.f32 %v991, 0.0
        %v1016 = vmax.f32 %v992, 0.0
        %v1017 = vmax.f32 %v993, 0.0
        %v1018 = vmax.f32 %v994, 0.0
        %v1019 = vmax.f32 %v995, 0.0
        %v1020 = vmax.f32 %v996, 0.0
        %v1021 = vmax.f32 %v997, 0.0
        %v1022 = vpack.c.bf16 %v1010, %v998
        %v1023 = vpack.c.bf16 %v1011, %v999
        %v1024 = vpack.c.bf16 %v1012, %v1000
        %v1025 = vpack.c.bf16 %v1013, %v1001
        %v1026 = vpack.c.bf16 %v1014, %v1002
        %v1027 = vpack.c.bf16 %v1015, %v1003
        %v1028 = vpack.c.bf16 %v1016, %v1004
        %v1029 = vpack.c.bf16 %v1017, %v1005
        %v1030 = vpack.c.bf16 %v1018, %v1006
        %v1031 = vpack.c.bf16 %v1019, %v1007
        %v1032 = vpack.c.bf16 %v1020, %v1008
        %v1033 = vpack.c.bf16 %v1021, %v1009
        %s1034 = scalar_lea.vmem %s3, 8
        %v1035 = vld [vmem:[%s1034] sm:$0xf]
        %v1036 = vld [vmem:[%s1034 + $0x4] sm:$0xf]
        %v1037 = vld [vmem:[%s3] sm:$0xf]
        %v1038 = vld [vmem:[%s3 + $0x4] sm:$0xf]
        %v1041 = vunpack.c.l.b16 %v1037
        %v1042 = vunpack.c.l.b16 %v1038
        %v1043 = vpack.c.b16 %v1042, %v1041
        %vm1044 = vcmask 130048
        %v1046 = vsel %vm1044, %v1043, 0
        %1048 = vmatprep.subr.bf16.mxu0 %v1023
        %1049 = vmatpush1.bf16.msra.mxu0 %v1022
        %1050 = vmatprep.subr.bf16.mxu0 0
        %1051 = vmatpush1.bf16.msra.mxu0 0
        %1052 = vmatprep.subr.bf16.mxu0 0
        %1053 = vmatpush1.bf16.msra.mxu0 0
        %1054 = vmatprep.subr.bf16.mxu0 0
        %1055 = vmatpush1.bf16.msra.mxu0 0
        %1056 = vmatprep.subr.bf16.mxu0 0
        %1057 = vmatpush1.bf16.msra.mxu0 0
        %1058 = vmatprep.subr.bf16.mxu0 0
        %1059 = vmatpush1.bf16.msra.mxu0 0
        %1060 = vmatprep.subr.bf16.mxu0 0
        %1061 = vmatpush1.bf16.msra.mxu0 0
        %1062 = vmatprep.subr.bf16.mxu0 0
        %1063 = vmatpush1.bf16.msra.mxu0 0
        %1064 = vmatprep.subr.bf16.mxu0 0
        %1065 = vmatpush1.bf16.msra.mxu0 0
        %1066 = vmatprep.subr.bf16.mxu0 0
        %1067 = vmatpush1.bf16.msra.mxu0 0
        %1068 = vmatprep.subr.bf16.mxu0 0
        %1069 = vmatpush1.bf16.msra.mxu0 0
        %1070 = vmatprep.subr.bf16.mxu0 0
        %1071 = vmatpush1.bf16.msra.mxu0 0
        %1072 = vmatprep.subr.bf16.mxu0 0
        %1073 = vmatpush1.bf16.msra.mxu0 0
        %1074 = vmatprep.subr.bf16.mxu0 0
        %1075 = vmatpush1.bf16.msra.mxu0 0
        %1076 = vmatprep.subr.bf16.mxu0 0
        %1077 = vmatpush1.bf16.msra.mxu0 0
        %1078 = vmatprep.subr.bf16.mxu0 0
        %1079 = vmatpush1.bf16.msra.mxu0 0
        %1080 = vmatprep.mubr.bf16.mxu0 0
        %1081 = vmatmul.mubr.bf16.gmra.mrb[0].mxu0 %v1046
        %v1082 = vpop.f32.mrb[0].mxu0
        %v1083 = vadd.f32 0.0, %v1082
        %v1084 = vpop.f32.mrb[0].mxu0
        %v1085 = vadd.f32 0.0, %v1084
        %v1086 = vpop.f32.mrb[0].mxu0
        %v1087 = vadd.f32 0.0, %v1086
        %v1088 = vpop.f32.mrb[0].mxu0
        %v1089 = vadd.f32 0.0, %v1088
        %1090 = vdwg.mxu0
        %1091 = vmatprep.subr.bf16.mxu0 %v1025
        %1092 = vmatpush1.bf16.msra.mxu0 %v1024
        %1093 = vmatprep.subr.bf16.mxu0 0
        %1094 = vmatpush1.bf16.msra.mxu0 0
        %1095 = vmatprep.subr.bf16.mxu0 0
        %1096 = vmatpush1.bf16.msra.mxu0 0
        %1097 = vmatprep.subr.bf16.mxu0 0
        %1098 = vmatpush1.bf16.msra.mxu0 0
        %1099 = vmatprep.subr.bf16.mxu0 0
        %1100 = vmatpush1.bf16.msra.mxu0 0
        %1101 = vmatprep.subr.bf16.mxu0 0
        %1102 = vmatpush1.bf16.msra.mxu0 0
        %1103 = vmatprep.subr.bf16.mxu0 0
        %1104 = vmatpush1.bf16.msra.mxu0 0
        %1105 = vmatprep.subr.bf16.mxu0 0
        %1106 = vmatpush1.bf16.msra.mxu0 0
        %1107 = vmatprep.subr.bf16.mxu0 0
        %1108 = vmatpush1.bf16.msra.mxu0 0
        %1109 = vmatprep.subr.bf16.mxu0 0
        %1110 = vmatpush1.bf16.msra.mxu0 0
        %1111 = vmatprep.subr.bf16.mxu0 0
        %1112 = vmatpush1.bf16.msra.mxu0 0
        %1113 = vmatprep.subr.bf16.mxu0 0
        %1114 = vmatpush1.bf16.msra.mxu0 0
        %1115 = vmatprep.subr.bf16.mxu0 0
        %1116 = vmatpush1.bf16.msra.mxu0 0
        %1117 = vmatprep.subr.bf16.mxu0 0
        %1118 = vmatpush1.bf16.msra.mxu0 0
        %1119 = vmatprep.subr.bf16.mxu0 0
        %1120 = vmatpush1.bf16.msra.mxu0 0
        %1121 = vmatprep.subr.bf16.mxu0 0
        %1122 = vmatpush1.bf16.msra.mxu0 0
        %1123 = vmatprep.mubr.bf16.mxu0 0
        %1124 = vmatmul.mubr.bf16.gmra.mrb[0].mxu0 %v1046
        %v1125 = vpop.f32.mrb[0].mxu0
        %v1126 = vadd.f32 0.0, %v1125
        %v1127 = vpop.f32.mrb[0].mxu0
        %v1128 = vadd.f32 0.0, %v1127
        %v1129 = vpop.f32.mrb[0].mxu0
        %v1130 = vadd.f32 0.0, %v1129
        %v1131 = vpop.f32.mrb[0].mxu0
        %v1132 = vadd.f32 0.0, %v1131
        %1133 = vdwg.mxu0
        %1134 = vmatprep.subr.bf16.mxu0 %v1027
        %1135 = vmatpush1.bf16.msra.mxu0 %v1026
        %1136 = vmatprep.subr.bf16.mxu0 0
        %1137 = vmatpush1.bf16.msra.mxu0 0
        %1138 = vmatprep.subr.bf16.mxu0 0
        %1139 = vmatpush1.bf16.msra.mxu0 0
        %1140 = vmatprep.subr.bf16.mxu0 0
        %1141 = vmatpush1.bf16.msra.mxu0 0
        %1142 = vmatprep.subr.bf16.mxu0 0
        %1143 = vmatpush1.bf16.msra.mxu0 0
        %1144 = vmatprep.subr.bf16.mxu0 0
        %1145 = vmatpush1.bf16.msra.mxu0 0
        %1146 = vmatprep.subr.bf16.mxu0 0
        %1147 = vmatpush1.bf16.msra.mxu0 0
        %1148 = vmatprep.subr.bf16.mxu0 0
        %1149 = vmatpush1.bf16.msra.mxu0 0
        %1150 = vmatprep.subr.bf16.mxu0 0
        %1151 = vmatpush1.bf16.msra.mxu0 0
        %1152 = vmatprep.subr.bf16.mxu0 0
        %1153 = vmatpush1.bf16.msra.mxu0 0
        %1154 = vmatprep.subr.bf16.mxu0 0
        %1155 = vmatpush1.bf16.msra.mxu0 0
        %1156 = vmatprep.subr.bf16.mxu0 0
        %1157 = vmatpush1.bf16.msra.mxu0 0
        %1158 = vmatprep.subr.bf16.mxu0 0
        %1159 = vmatpush1.bf16.msra.mxu0 0
        %1160 = vmatprep.subr.bf16.mxu0 0
        %1161 = vmatpush1.bf16.msra.mxu0 0
        %1162 = vmatprep.subr.bf16.mxu0 0
        %1163 = vmatpush1.bf16.msra.mxu0 0
        %1164 = vmatprep.subr.bf16.mxu0 0
        %1165 = vmatpush1.bf16.msra.mxu0 0
        %1166 = vmatprep.mubr.bf16.mxu0 0
        %1167 = vmatmul.mubr.bf16.gmra.mrb[0].mxu0 %v1046
        %v1168 = vpop.f32.mrb[0].mxu0
        %v1169 = vadd.f32 0.0, %v1168
        %v1170 = vpop.f32.mrb[0].mxu0
        %v1171 = vadd.f32 0.0, %v1170
        %v1172 = vpop.f32.mrb[0].mxu0
        %v1173 = vadd.f32 0.0, %v1172
        %v1174 = vpop.f32.mrb[0].mxu0
        %v1175 = vadd.f32 0.0, %v1174
        %1176 = vdwg.mxu0
        %1177 = vmatprep.subr.bf16.mxu0 %v1029
        %1178 = vmatpush1.bf16.msra.mxu0 %v1028
        %1179 = vmatprep.subr.bf16.mxu0 0
        %1180 = vmatpush1.bf16.msra.mxu0 0
        %1181 = vmatprep.subr.bf16.mxu0 0
        %1182 = vmatpush1.bf16.msra.mxu0 0
        %1183 = vmatprep.subr.bf16.mxu0 0
        %1184 = vmatpush1.bf16.msra.mxu0 0
        %1185 = vmatprep.subr.bf16.mxu0 0
        %1186 = vmatpush1.bf16.msra.mxu0 0
        %1187 = vmatprep.subr.bf16.mxu0 0
        %1188 = vmatpush1.bf16.msra.mxu0 0
        %1189 = vmatprep.subr.bf16.mxu0 0
        %1190 = vmatpush1.bf16.msra.mxu0 0
        %1191 = vmatprep.subr.bf16.mxu0 0
        %1192 = vmatpush1.bf16.msra.mxu0 0
        %1193 = vmatprep.subr.bf16.mxu0 0
        %1194 = vmatpush1.bf16.msra.mxu0 0
        %1195 = vmatprep.subr.bf16.mxu0 0
        %1196 = vmatpush1.bf16.msra.mxu0 0
        %1197 = vmatprep.subr.bf16.mxu0 0
        %1198 = vmatpush1.bf16.msra.mxu0 0
        %1199 = vmatprep.subr.bf16.mxu0 0
        %1200 = vmatpush1.bf16.msra.mxu0 0
        %1201 = vmatprep.subr.bf16.mxu0 0
        %1202 = vmatpush1.bf16.msra.mxu0 0
        %1203 = vmatprep.subr.bf16.mxu0 0
        %1204 = vmatpush1.bf16.msra.mxu0 0
        %1205 = vmatprep.subr.bf16.mxu0 0
        %1206 = vmatpush1.bf16.msra.mxu0 0
        %1207 = vmatprep.subr.bf16.mxu0 0
        %1208 = vmatpush1.bf16.msra.mxu0 0
        %1209 = vmatprep.mubr.bf16.mxu0 0
        %1210 = vmatmul.mubr.bf16.gmra.mrb[0].mxu0 %v1046
        %v1211 = vpop.f32.mrb[0].mxu0
        %v1212 = vadd.f32 0.0, %v1211
        %v1213 = vpop.f32.mrb[0].mxu0
        %v1214 = vadd.f32 0.0, %v1213
        %v1215 = vpop.f32.mrb[0].mxu0
        %v1216 = vadd.f32 0.0, %v1215
        %v1217 = vpop.f32.mrb[0].mxu0
        %v1218 = vadd.f32 0.0, %v1217
        %1219 = vdwg.mxu0
        %1220 = vmatprep.subr.bf16.mxu0 %v1031
        %1221 = vmatpush1.bf16.msra.mxu0 %v1030
        %1222 = vmatprep.subr.bf16.mxu0 0
        %1223 = vmatpush1.bf16.msra.mxu0 0
        %1224 = vmatprep.subr.bf16.mxu0 0
        %1225 = vmatpush1.bf16.msra.mxu0 0
        %1226 = vmatprep.subr.bf16.mxu0 0
        %1227 = vmatpush1.bf16.msra.mxu0 0
        %1228 = vmatprep.subr.bf16.mxu0 0
        %1229 = vmatpush1.bf16.msra.mxu0 0
        %1230 = vmatprep.subr.bf16.mxu0 0
        %1231 = vmatpush1.bf16.msra.mxu0 0
        %1232 = vmatprep.subr.bf16.mxu0 0
        %1233 = vmatpush1.bf16.msra.mxu0 0
        %1234 = vmatprep.subr.bf16.mxu0 0
        %1235 = vmatpush1.bf16.msra.mxu0 0
        %1236 = vmatprep.subr.bf16.mxu0 0
        %1237 = vmatpush1.bf16.msra.mxu0 0
        %1238 = vmatprep.subr.bf16.mxu0 0
        %1239 = vmatpush1.bf16.msra.mxu0 0
        %1240 = vmatprep.subr.bf16.mxu0 0
        %1241 = vmatpush1.bf16.msra.mxu0 0
        %1242 = vmatprep.subr.bf16.mxu0 0
        %1243 = vmatpush1.bf16.msra.mxu0 0
        %1244 = vmatprep.subr.bf16.mxu0 0
        %1245 = vmatpush1.bf16.msra.mxu0 0
        %1246 = vmatprep.subr.bf16.mxu0 0
        %1247 = vmatpush1.bf16.msra.mxu0 0
        %1248 = vmatprep.subr.bf16.mxu0 0
        %1249 = vmatpush1.bf16.msra.mxu0 0
        %1250 = vmatprep.subr.bf16.mxu0 0
        %1251 = vmatpush1.bf16.msra.mxu0 0
        %1252 = vmatprep.mubr.bf16.mxu0 0
        %1253 = vmatmul.mubr.bf16.gmra.mrb[0].mxu0 %v1046
        %v1254 = vpop.f32.mrb[0].mxu0
        %v1255 = vadd.f32 0.0, %v1254
        %v1256 = vpop.f32.mrb[0].mxu0
        %v1257 = vadd.f32 0.0, %v1256
        %v1258 = vpop.f32.mrb[0].mxu0
        %v1259 = vadd.f32 0.0, %v1258
        %v1260 = vpop.f32.mrb[0].mxu0
        %v1261 = vadd.f32 0.0, %v1260
        %1262 = vdwg.mxu0
        %v1265 = vunpack.c.l.b16 %v1035
        %v1266 = vunpack.c.l.b16 %v1036
        %v1267 = vpack.c.b16 %v1266, %v1265
        %v1269 = vsel %vm1044, %v1267, 0
        %1271 = vmatprep.subr.bf16.mxu0 %v1023
        %1272 = vmatpush1.bf16.msra.mxu0 %v1022
        %1273 = vmatprep.subr.bf16.mxu0 0
        %1274 = vmatpush1.bf16.msra.mxu0 0
        %1275 = vmatprep.subr.bf16.mxu0 0
        %1276 = vmatpush1.bf16.msra.mxu0 0
        %1277 = vmatprep.subr.bf16.mxu0 0
        %1278 = vmatpush1.bf16.msra.mxu0 0
        %1279 = vmatprep.subr.bf16.mxu0 0
        %1280 = vmatpush1.bf16.msra.mxu0 0
        %1281 = vmatprep.subr.bf16.mxu0 0
        %1282 = vmatpush1.bf16.msra.mxu0 0
        %1283 = vmatprep.subr.bf16.mxu0 0
        %1284 = vmatpush1.bf16.msra.mxu0 0
        %1285 = vmatprep.subr.bf16.mxu0 0
        %1286 = vmatpush1.bf16.msra.mxu0 0
        %1287 = vmatprep.subr.bf16.mxu0 0
        %1288 = vmatpush1.bf16.msra.mxu0 0
        %1289 = vmatprep.subr.bf16.mxu0 0
        %1290 = vmatpush1.bf16.msra.mxu0 0
        %1291 = vmatprep.subr.bf16.mxu0 0
        %1292 = vmatpush1.bf16.msra.mxu0 0
        %1293 = vmatprep.subr.bf16.mxu0 0
        %1294 = vmatpush1.bf16.msra.mxu0 0
        %1295 = vmatprep.subr.bf16.mxu0 0
        %1296 = vmatpush1.bf16.msra.mxu0 0
        %1297 = vmatprep.subr.bf16.mxu0 0
        %1298 = vmatpush1.bf16.msra.mxu0 0
        %1299 = vmatprep.subr.bf16.mxu0 0
        %1300 = vmatpush1.bf16.msra.mxu0 0
        %1301 = vmatprep.subr.bf16.mxu0 0
        %1302 = vmatpush1.bf16.msra.mxu0 0
        %1303 = vmatprep.mubr.bf16.mxu0 0
        %1304 = vmatmul.mubr.bf16.gmra.mrb[0].mxu0 %v1269
        %v1305 = vpop.f32.mrb[0].mxu0
        %v1306 = vadd.f32 0.0, %v1305
        %v1307 = vpop.f32.mrb[0].mxu0
        %v1308 = vadd.f32 0.0, %v1307
        %v1309 = vpop.f32.mrb[0].mxu0
        %v1310 = vadd.f32 0.0, %v1309
        %v1311 = vpop.f32.mrb[0].mxu0
        %v1312 = vadd.f32 0.0, %v1311
        %1313 = vdwg.mxu0
        %1314 = vmatprep.subr.bf16.mxu0 %v1025
        %1315 = vmatpush1.bf16.msra.mxu0 %v1024
        %1316 = vmatprep.subr.bf16.mxu0 0
        %1317 = vmatpush1.bf16.msra.mxu0 0
        %1318 = vmatprep.subr.bf16.mxu0 0
        %1319 = vmatpush1.bf16.msra.mxu0 0
        %1320 = vmatprep.subr.bf16.mxu0 0
        %1321 = vmatpush1.bf16.msra.mxu0 0
        %1322 = vmatprep.subr.bf16.mxu0 0
        %1323 = vmatpush1.bf16.msra.mxu0 0
        %1324 = vmatprep.subr.bf16.mxu0 0
        %1325 = vmatpush1.bf16.msra.mxu0 0
        %1326 = vmatprep.subr.bf16.mxu0 0
        %1327 = vmatpush1.bf16.msra.mxu0 0
        %1328 = vmatprep.subr.bf16.mxu0 0
        %1329 = vmatpush1.bf16.msra.mxu0 0
        %1330 = vmatprep.subr.bf16.mxu0 0
        %1331 = vmatpush1.bf16.msra.mxu0 0
        %1332 = vmatprep.subr.bf16.mxu0 0
        %1333 = vmatpush1.bf16.msra.mxu0 0
        %1334 = vmatprep.subr.bf16.mxu0 0
        %1335 = vmatpush1.bf16.msra.mxu0 0
        %1336 = vmatprep.subr.bf16.mxu0 0
        %1337 = vmatpush1.bf16.msra.mxu0 0
        %1338 = vmatprep.subr.bf16.mxu0 0
        %1339 = vmatpush1.bf16.msra.mxu0 0
        %1340 = vmatprep.subr.bf16.mxu0 0
        %1341 = vmatpush1.bf16.msra.mxu0 0
        %1342 = vmatprep.subr.bf16.mxu0 0
        %1343 = vmatpush1.bf16.msra.mxu0 0
        %1344 = vmatprep.subr.bf16.mxu0 0
        %1345 = vmatpush1.bf16.msra.mxu0 0
        %1346 = vmatprep.mubr.bf16.mxu0 0
        %1347 = vmatmul.mubr.bf16.gmra.mrb[0].mxu0 %v1269
        %v1348 = vpop.f32.mrb[0].mxu0
        %v1349 = vadd.f32 %v1083, %v1348
        %v1350 = vpop.f32.mrb[0].mxu0
        %v1351 = vadd.f32 %v1085, %v1350
        %v1352 = vpop.f32.mrb[0].mxu0
        %v1353 = vadd.f32 %v1087, %v1352
        %v1354 = vpop.f32.mrb[0].mxu0
        %v1355 = vadd.f32 %v1089, %v1354
        %1356 = vdwg.mxu0
        %1357 = vmatprep.subr.bf16.mxu0 %v1027
        %1358 = vmatpush1.bf16.msra.mxu0 %v1026
        %1359 = vmatprep.subr.bf16.mxu0 0
        %1360 = vmatpush1.bf16.msra.mxu0 0
        %1361 = vmatprep.subr.bf16.mxu0 0
        %1362 = vmatpush1.bf16.msra.mxu0 0
        %1363 = vmatprep.subr.bf16.mxu0 0
        %1364 = vmatpush1.bf16.msra.mxu0 0
        %1365 = vmatprep.subr.bf16.mxu0 0
        %1366 = vmatpush1.bf16.msra.mxu0 0
        %1367 = vmatprep.subr.bf16.mxu0 0
        %1368 = vmatpush1.bf16.msra.mxu0 0
        %1369 = vmatprep.subr.bf16.mxu0 0
        %1370 = vmatpush1.bf16.msra.mxu0 0
        %1371 = vmatprep.subr.bf16.mxu0 0
        %1372 = vmatpush1.bf16.msra.mxu0 0
        %1373 = vmatprep.subr.bf16.mxu0 0
        %1374 = vmatpush1.bf16.msra.mxu0 0
        %1375 = vmatprep.subr.bf16.mxu0 0
        %1376 = vmatpush1.bf16.msra.mxu0 0
        %1377 = vmatprep.subr.bf16.mxu0 0
        %1378 = vmatpush1.bf16.msra.mxu0 0
        %1379 = vmatprep.subr.bf16.mxu0 0
        %1380 = vmatpush1.bf16.msra.mxu0 0
        %1381 = vmatprep.subr.bf16.mxu0 0
        %1382 = vmatpush1.bf16.msra.mxu0 0
        %1383 = vmatprep.subr.bf16.mxu0 0
        %1384 = vmatpush1.bf16.msra.mxu0 0
        %1385 = vmatprep.subr.bf16.mxu0 0
        %1386 = vmatpush1.bf16.msra.mxu0 0
        %1387 = vmatprep.subr.bf16.mxu0 0
        %1388 = vmatpush1.bf16.msra.mxu0 0
        %1389 = vmatprep.mubr.bf16.mxu0 0
        %1390 = vmatmul.mubr.bf16.gmra.mrb[0].mxu0 %v1269
        %v1391 = vpop.f32.mrb[0].mxu0
        %v1392 = vadd.f32 %v1126, %v1391
        %v1393 = vpop.f32.mrb[0].mxu0
        %v1394 = vadd.f32 %v1128, %v1393
        %v1395 = vpop.f32.mrb[0].mxu0
        %v1396 = vadd.f32 %v1130, %v1395
        %v1397 = vpop.f32.mrb[0].mxu0
        %v1398 = vadd.f32 %v1132, %v1397
        %1399 = vdwg.mxu0
        %1400 = vmatprep.subr.bf16.mxu0 %v1029
        %1401 = vmatpush1.bf16.msra.mxu0 %v1028
        %1402 = vmatprep.subr.bf16.mxu0 0
        %1403 = vmatpush1.bf16.msra.mxu0 0
        %1404 = vmatprep.subr.bf16.mxu0 0
        %1405 = vmatpush1.bf16.msra.mxu0 0
        %1406 = vmatprep.subr.bf16.mxu0 0
        %1407 = vmatpush1.bf16.msra.mxu0 0
        %1408 = vmatprep.subr.bf16.mxu0 0
        %1409 = vmatpush1.bf16.msra.mxu0 0
        %1410 = vmatprep.subr.bf16.mxu0 0
        %1411 = vmatpush1.bf16.msra.mxu0 0
        %1412 = vmatprep.subr.bf16.mxu0 0
        %1413 = vmatpush1.bf16.msra.mxu0 0
        %1414 = vmatprep.subr.bf16.mxu0 0
        %1415 = vmatpush1.bf16.msra.mxu0 0
        %1416 = vmatprep.subr.bf16.mxu0 0
        %1417 = vmatpush1.bf16.msra.mxu0 0
        %1418 = vmatprep.subr.bf16.mxu0 0
        %1419 = vmatpush1.bf16.msra.mxu0 0
        %1420 = vmatprep.subr.bf16.mxu0 0
        %1421 = vmatpush1.bf16.msra.mxu0 0
        %1422 = vmatprep.subr.bf16.mxu0 0
        %1423 = vmatpush1.bf16.msra.mxu0 0
        %1424 = vmatprep.subr.bf16.mxu0 0
        %1425 = vmatpush1.bf16.msra.mxu0 0
        %1426 = vmatprep.subr.bf16.mxu0 0
        %1427 = vmatpush1.bf16.msra.mxu0 0
        %1428 = vmatprep.subr.bf16.mxu0 0
        %1429 = vmatpush1.bf16.msra.mxu0 0
        %1430 = vmatprep.subr.bf16.mxu0 0
        %1431 = vmatpush1.bf16.msra.mxu0 0
        %1432 = vmatprep.mubr.bf16.mxu0 0
        %1433 = vmatmul.mubr.bf16.gmra.mrb[0].mxu0 %v1269
        %v1434 = vpop.f32.mrb[0].mxu0
        %v1435 = vadd.f32 %v1169, %v1434
        %v1436 = vpop.f32.mrb[0].mxu0
        %v1437 = vadd.f32 %v1171, %v1436
        %v1438 = vpop.f32.mrb[0].mxu0
        %v1439 = vadd.f32 %v1173, %v1438
        %v1440 = vpop.f32.mrb[0].mxu0
        %v1441 = vadd.f32 %v1175, %v1440
        %1442 = vdwg.mxu0
        %1443 = vmatprep.subr.bf16.mxu0 %v1031
        %1444 = vmatpush1.bf16.msra.mxu0 %v1030
        %1445 = vmatprep.subr.bf16.mxu0 0
        %1446 = vmatpush1.bf16.msra.mxu0 0
        %1447 = vmatprep.subr.bf16.mxu0 0
        %1448 = vmatpush1.bf16.msra.mxu0 0
        %1449 = vmatprep.subr.bf16.mxu0 0
        %1450 = vmatpush1.bf16.msra.mxu0 0
        %1451 = vmatprep.subr.bf16.mxu0 0
        %1452 = vmatpush1.bf16.msra.mxu0 0
        %1453 = vmatprep.subr.bf16.mxu0 0
        %1454 = vmatpush1.bf16.msra.mxu0 0
        %1455 = vmatprep.subr.bf16.mxu0 0
        %1456 = vmatpush1.bf16.msra.mxu0 0
        %1457 = vmatprep.subr.bf16.mxu0 0
        %1458 = vmatpush1.bf16.msra.mxu0 0
        %1459 = vmatprep.subr.bf16.mxu0 0
        %1460 = vmatpush1.bf16.msra.mxu0 0
        %1461 = vmatprep.subr.bf16.mxu0 0
        %1462 = vmatpush1.bf16.msra.mxu0 0
        %1463 = vmatprep.subr.bf16.mxu0 0
        %1464 = vmatpush1.bf16.msra.mxu0 0
        %1465 = vmatprep.subr.bf16.mxu0 0
        %1466 = vmatpush1.bf16.msra.mxu0 0
        %1467 = vmatprep.subr.bf16.mxu0 0
        %1468 = vmatpush1.bf16.msra.mxu0 0
        %1469 = vmatprep.subr.bf16.mxu0 0
        %1470 = vmatpush1.bf16.msra.mxu0 0
        %1471 = vmatprep.subr.bf16.mxu0 0
        %1472 = vmatpush1.bf16.msra.mxu0 0
        %1473 = vmatprep.subr.bf16.mxu0 0
        %1474 = vmatpush1.bf16.msra.mxu0 0
        %1475 = vmatprep.mubr.bf16.mxu0 0
        %1476 = vmatmul.mubr.bf16.gmra.mrb[0].mxu0 %v1269
        %v1477 = vpop.f32.mrb[0].mxu0
        %v1478 = vadd.f32 %v1212, %v1477
        %v1479 = vpop.f32.mrb[0].mxu0
        %v1480 = vadd.f32 %v1214, %v1479
        %v1481 = vpop.f32.mrb[0].mxu0
        %v1482 = vadd.f32 %v1216, %v1481
        %v1483 = vpop.f32.mrb[0].mxu0
        %v1484 = vadd.f32 %v1218, %v1483
        %1485 = vdwg.mxu0
        %1486 = vmatprep.subr.bf16.mxu0 %v1033
        %1487 = vmatpush1.bf16.msra.mxu0 %v1032
        %1488 = vmatprep.subr.bf16.mxu0 0
        %1489 = vmatpush1.bf16.msra.mxu0 0
        %1490 = vmatprep.subr.bf16.mxu0 0
        %1491 = vmatpush1.bf16.msra.mxu0 0
        %1492 = vmatprep.subr.bf16.mxu0 0
        %1493 = vmatpush1.bf16.msra.mxu0 0
        %1494 = vmatprep.subr.bf16.mxu0 0
        %1495 = vmatpush1.bf16.msra.mxu0 0
        %1496 = vmatprep.subr.bf16.mxu0 0
        %1497 = vmatpush1.bf16.msra.mxu0 0
        %1498 = vmatprep.subr.bf16.mxu0 0
        %1499 = vmatpush1.bf16.msra.mxu0 0
        %1500 = vmatprep.subr.bf16.mxu0 0
        %1501 = vmatpush1.bf16.msra.mxu0 0
        %1502 = vmatprep.subr.bf16.mxu0 0
        %1503 = vmatpush1.bf16.msra.mxu0 0
        %1504 = vmatprep.subr.bf16.mxu0 0
        %1505 = vmatpush1.bf16.msra.mxu0 0
        %1506 = vmatprep.subr.bf16.mxu0 0
        %1507 = vmatpush1.bf16.msra.mxu0 0
        %1508 = vmatprep.subr.bf16.mxu0 0
        %1509 = vmatpush1.bf16.msra.mxu0 0
        %1510 = vmatprep.subr.bf16.mxu0 0
        %1511 = vmatpush1.bf16.msra.mxu0 0
        %1512 = vmatprep.subr.bf16.mxu0 0
        %1513 = vmatpush1.bf16.msra.mxu0 0
        %1514 = vmatprep.subr.bf16.mxu0 0
        %1515 = vmatpush1.bf16.msra.mxu0 0
        %1516 = vmatprep.subr.bf16.mxu0 0
        %1517 = vmatpush1.bf16.msra.mxu0 0
        %1518 = vmatprep.mubr.bf16.mxu0 0
        %1519 = vmatmul.mubr.bf16.gmra.mrb[0].mxu0 %v1269
        %v1520 = vpop.f32.mrb[0].mxu0
        %v1521 = vadd.f32 %v1255, %v1520
        %v1522 = vpop.f32.mrb[0].mxu0
        %v1523 = vadd.f32 %v1257, %v1522
        %v1524 = vpop.f32.mrb[0].mxu0
        %v1525 = vadd.f32 %v1259, %v1524
        %v1526 = vpop.f32.mrb[0].mxu0
        %v1527 = vadd.f32 %v1261, %v1526
        %1528 = vdwg.mxu0
        %v1529 = vld [vmem:[%s4] sm:$0xff]
        %v1530 = vld [vmem:[%s4 + $0x8] sm:$0xff]
        %1532 = vset.pattern.permute.xlu0 0
        %1533 = vperm.xlu0 %1532, %v1529
        %v1534 = vpop.permute.xlu0 %1533
        %1537 = vset.pattern.permute.xlu0 0
        %1538 = vperm.xlu0 %1537, %v1530
        %v1539 = vpop.permute.xlu0 %1538
        %v1541 = vadd.f32 %v1306, %v1534
        %v1542 = vadd.f32 %v1308, %v1534
        %v1543 = vadd.f32 %v1349, %v1534
        %v1544 = vadd.f32 %v1351, %v1534
        %v1545 = vadd.f32 %v1392, %v1534
        %v1546 = vadd.f32 %v1394, %v1534
        %v1547 = vadd.f32 %v1435, %v1534
        %v1548 = vadd.f32 %v1437, %v1534
        %v1549 = vadd.f32 %v1478, %v1534
        %v1550 = vadd.f32 %v1480, %v1534
        %v1551 = vadd.f32 %v1521, %v1534
        %v1552 = vadd.f32 %v1523, %v1534
        %v1553 = vadd.f32 %v1310, %v1539
        %v1554 = vadd.f32 %v1312, %v1539
        %v1555 = vadd.f32 %v1353, %v1539
        %v1556 = vadd.f32 %v1355, %v1539
        %v1557 = vadd.f32 %v1396, %v1539
        %v1558 = vadd.f32 %v1398, %v1539
        %v1559 = vadd.f32 %v1439, %v1539
        %v1560 = vadd.f32 %v1441, %v1539
        %v1561 = vadd.f32 %v1482, %v1539
        %v1562 = vadd.f32 %v1484, %v1539
        %v1563 = vadd.f32 %v1525, %v1539
        %v1564 = vadd.f32 %v1527, %v1539
        %v1565 = vmax.f32 %v1541, 0.0
        %v1566 = vmax.f32 %v1542, 0.0
        %v1567 = vmax.f32 %v1543, 0.0
        %v1568 = vmax.f32 %v1544, 0.0
        %v1569 = vmax.f32 %v1545, 0.0
        %v1570 = vmax.f32 %v1546, 0.0
        %v1571 = vmax.f32 %v1547, 0.0
        %v1572 = vmax.f32 %v1548, 0.0
        %v1573 = vmax.f32 %v1549, 0.0
        %v1574 = vmax.f32 %v1550, 0.0
        %v1575 = vmax.f32 %v1551, 0.0
        %v1576 = vmax.f32 %v1552, 0.0
        %v1577 = vmax.f32 %v1553, 0.0
        %v1578 = vmax.f32 %v1554, 0.0
        %v1579 = vmax.f32 %v1555, 0.0
        %v1580 = vmax.f32 %v1556, 0.0
        %v1581 = vmax.f32 %v1557, 0.0
        %v1582 = vmax.f32 %v1558, 0.0
        %v1583 = vmax.f32 %v1559, 0.0
        %v1584 = vmax.f32 %v1560, 0.0
        %v1585 = vmax.f32 %v1561, 0.0
        %v1586 = vmax.f32 %v1562, 0.0
        %v1587 = vmax.f32 %v1563, 0.0
        %v1588 = vmax.f32 %v1564, 0.0
        %v1589 = vpack.c.bf16 %v1577, %v1565
        %v1590 = vpack.c.bf16 %v1578, %v1566
        %v1591 = vpack.c.bf16 %v1579, %v1567
        %v1592 = vpack.c.bf16 %v1580, %v1568
        %v1593 = vpack.c.bf16 %v1581, %v1569
        %v1594 = vpack.c.bf16 %v1582, %v1570
        %v1595 = vpack.c.bf16 %v1583, %v1571
        %v1596 = vpack.c.bf16 %v1584, %v1572
        %v1597 = vpack.c.bf16 %v1585, %v1573
        %v1598 = vpack.c.bf16 %v1586, %v1574
        %v1599 = vpack.c.bf16 %v1587, %v1575
        %v1600 = vpack.c.bf16 %v1588, %v1576
        %s1601 = scalar_lea.vmem %s5, 16
        %v1602 = vld [vmem:[%s1601] sm:$0xf]
        %v1603 = vld [vmem:[%s1601 + $0x4] sm:$0xf]
        %v1604 = vld [vmem:[%s1601 + $0x8] sm:$0xf]
        %v1605 = vld [vmem:[%s1601 + $0xc] sm:$0xf]
        %v1606 = vld [vmem:[%s5] sm:$0xf]
        %v1607 = vld [vmem:[%s5 + $0x4] sm:$0xf]
        %v1608 = vld [vmem:[%s5 + $0x8] sm:$0xf]
        %v1609 = vld [vmem:[%s5 + $0xc] sm:$0xf]
        %v1614 = vunpack.c.l.b16 %v1606
        %v1615 = vunpack.c.l.b16 %v1607
        %v1616 = vunpack.c.l.b16 %v1608
        %v1617 = vunpack.c.l.b16 %v1609
        %v1618 = vpack.c.b16 %v1615, %v1614
        %v1619 = vpack.c.b16 %v1617, %v1616
        %v1621 = vsel %vm1044, %v1618, 0
        %v1624 = vsel %vm1044, %v1619, 0
        %1626 = vmatprep.subr.bf16.mxu0 %v1590
        %1627 = vmatpush1.bf16.msra.mxu0 %v1589
        %1628 = vmatprep.subr.bf16.mxu0 0
        %1629 = vmatpush1.bf16.msra.mxu0 0
        %1630 = vmatprep.subr.bf16.mxu0 0
        %1631 = vmatpush1.bf16.msra.mxu0 0
        %1632 = vmatprep.subr.bf16.mxu0 0
        %1633 = vmatpush1.bf16.msra.mxu0 0
        %1634 = vmatprep.subr.bf16.mxu0 0
        %1635 = vmatpush1.bf16.msra.mxu0 0
        %1636 = vmatprep.subr.bf16.mxu0 0
        %1637 = vmatpush1.bf16.msra.mxu0 0
        %1638 = vmatprep.subr.bf16.mxu0 0
        %1639 = vmatpush1.bf16.msra.mxu0 0
        %1640 = vmatprep.subr.bf16.mxu0 0
        %1641 = vmatpush1.bf16.msra.mxu0 0
        %1642 = vmatprep.subr.bf16.mxu0 0
        %1643 = vmatpush1.bf16.msra.mxu0 0
        %1644 = vmatprep.subr.bf16.mxu0 0
        %1645 = vmatpush1.bf16.msra.mxu0 0
        %1646 = vmatprep.subr.bf16.mxu0 0
        %1647 = vmatpush1.bf16.msra.mxu0 0
        %1648 = vmatprep.subr.bf16.mxu0 0
        %1649 = vmatpush1.bf16.msra.mxu0 0
        %1650 = vmatprep.subr.bf16.mxu0 0
        %1651 = vmatpush1.bf16.msra.mxu0 0
        %1652 = vmatprep.subr.bf16.mxu0 0
        %1653 = vmatpush1.bf16.msra.mxu0 0
        %1654 = vmatprep.subr.bf16.mxu0 0
        %1655 = vmatpush1.bf16.msra.mxu0 0
        %1656 = vmatprep.subr.bf16.mxu0 0
        %1657 = vmatpush1.bf16.msra.mxu0 0
        %1658 = vmatprep.mubr.bf16.mxu0 0
        %1659 = vmatmul.mubr.bf16.gmra.mrb[0].mxu0 %v1621
        %v1660 = vpop.f32.mrb[0].mxu0
        %v1661 = vadd.f32 0.0, %v1660
        %v1662 = vpop.f32.mrb[0].mxu0
        %v1663 = vadd.f32 0.0, %v1662
        %v1664 = vpop.f32.mrb[0].mxu0
        %v1665 = vadd.f32 0.0, %v1664
        %v1666 = vpop.f32.mrb[0].mxu0
        %v1667 = vadd.f32 0.0, %v1666
        %1668 = vmatprep.mubr.bf16.mxu0 0
        %1669 = vmatmul.mubr.bf16.gmra.mrb[0].mxu0 %v1624
        %v1670 = vpop.f32.mrb[0].mxu0
        %v1671 = vadd.f32 0.0, %v1670
        %v1672 = vpop.f32.mrb[0].mxu0
        %v1673 = vadd.f32 0.0, %v1672
        %v1674 = vpop.f32.mrb[0].mxu0
        %v1675 = vadd.f32 0.0, %v1674
        %v1676 = vpop.f32.mrb[0].mxu0
        %v1677 = vadd.f32 0.0, %v1676
        %1678 = vdwg.mxu0
        %1679 = vmatprep.subr.bf16.mxu0 %v1592
        %1680 = vmatpush1.bf16.msra.mxu0 %v1591
        %1681 = vmatprep.subr.bf16.mxu0 0
        %1682 = vmatpush1.bf16.msra.mxu0 0
        %1683 = vmatprep.subr.bf16.mxu0 0
        %1684 = vmatpush1.bf16.msra.mxu0 0
        %1685 = vmatprep.subr.bf16.mxu0 0
        %1686 = vmatpush1.bf16.msra.mxu0 0
        %1687 = vmatprep.subr.bf16.mxu0 0
        %1688 = vmatpush1.bf16.msra.mxu0 0
        %1689 = vmatprep.subr.bf16.mxu0 0
        %1690 = vmatpush1.bf16.msra.mxu0 0
        %1691 = vmatprep.subr.bf16.mxu0 0
        %1692 = vmatpush1.bf16.msra.mxu0 0
        %1693 = vmatprep.subr.bf16.mxu0 0
        %1694 = vmatpush1.bf16.msra.mxu0 0
        %1695 = vmatprep.subr.bf16.mxu0 0
        %1696 = vmatpush1.bf16.msra.mxu0 0
        %1697 = vmatprep.subr.bf16.mxu0 0
        %1698 = vmatpush1.bf16.msra.mxu0 0
        %1699 = vmatprep.subr.bf16.mxu0 0
        %1700 = vmatpush1.bf16.msra.mxu0 0
        %1701 = vmatprep.subr.bf16.mxu0 0
        %1702 = vmatpush1.bf16.msra.mxu0 0
        %1703 = vmatprep.subr.bf16.mxu0 0
        %1704 = vmatpush1.bf16.msra.mxu0 0
        %1705 = vmatprep.subr.bf16.mxu0 0
        %1706 = vmatpush1.bf16.msra.mxu0 0
        %1707 = vmatprep.subr.bf16.mxu0 0
        %1708 = vmatpush1.bf16.msra.mxu0 0
        %1709 = vmatprep.subr.bf16.mxu0 0
        %1710 = vmatpush1.bf16.msra.mxu0 0
        %1711 = vmatprep.mubr.bf16.mxu0 0
        %1712 = vmatmul.mubr.bf16.gmra.mrb[0].mxu0 %v1621
        %v1713 = vpop.f32.mrb[0].mxu0
        %v1714 = vadd.f32 0.0, %v1713
        %v1715 = vpop.f32.mrb[0].mxu0
        %v1716 = vadd.f32 0.0, %v1715
        %v1717 = vpop.f32.mrb[0].mxu0
        %v1718 = vadd.f32 0.0, %v1717
        %v1719 = vpop.f32.mrb[0].mxu0
        %v1720 = vadd.f32 0.0, %v1719
        %1721 = vmatprep.mubr.bf16.mxu0 0
        %1722 = vmatmul.mubr.bf16.gmra.mrb[0].mxu0 %v1624
        %v1723 = vpop.f32.mrb[0].mxu0
        %v1724 = vadd.f32 0.0, %v1723
        %v1725 = vpop.f32.mrb[0].mxu0
        %v1726 = vadd.f32 0.0, %v1725
        %v1727 = vpop.f32.mrb[0].mxu0
        %v1728 = vadd.f32 0.0, %v1727
        %v1729 = vpop.f32.mrb[0].mxu0
        %v1730 = vadd.f32 0.0, %v1729
        %1731 = vdwg.mxu0
        %1732 = vmatprep.subr.bf16.mxu0 %v1594
        %1733 = vmatpush1.bf16.msra.mxu0 %v1593
        %1734 = vmatprep.subr.bf16.mxu0 0
        %1735 = vmatpush1.bf16.msra.mxu0 0
        %1736 = vmatprep.subr.bf16.mxu0 0
        %1737 = vmatpush1.bf16.msra.mxu0 0
        %1738 = vmatprep.subr.bf16.mxu0 0
        %1739 = vmatpush1.bf16.msra.mxu0 0
        %1740 = vmatprep.subr.bf16.mxu0 0
        %1741 = vmatpush1.bf16.msra.mxu0 0
        %1742 = vmatprep.subr.bf16.mxu0 0
        %1743 = vmatpush1.bf16.msra.mxu0 0
        %1744 = vmatprep.subr.bf16.mxu0 0
        %1745 = vmatpush1.bf16.msra.mxu0 0
        %1746 = vmatprep.subr.bf16.mxu0 0
        %1747 = vmatpush1.bf16.msra.mxu0 0
        %1748 = vmatprep.subr.bf16.mxu0 0
        %1749 = vmatpush1.bf16.msra.mxu0 0
        %1750 = vmatprep.subr.bf16.mxu0 0
        %1751 = vmatpush1.bf16.msra.mxu0 0
        %1752 = vmatprep.subr.bf16.mxu0 0
        %1753 = vmatpush1.bf16.msra.mxu0 0
        %1754 = vmatprep.subr.bf16.mxu0 0
        %1755 = vmatpush1.bf16.msra.mxu0 0
        %1756 = vmatprep.subr.bf16.mxu0 0
        %1757 = vmatpush1.bf16.msra.mxu0 0
        %1758 = vmatprep.subr.bf16.mxu0 0
        %1759 = vmatpush1.bf16.msra.mxu0 0
        %1760 = vmatprep.subr.bf16.mxu0 0
        %1761 = vmatpush1.bf16.msra.mxu0 0
        %1762 = vmatprep.subr.bf16.mxu0 0
        %1763 = vmatpush1.bf16.msra.mxu0 0
        %1764 = vmatprep.mubr.bf16.mxu0 0
        %1765 = vmatmul.mubr.bf16.gmra.mrb[0].mxu0 %v1621
        %v1766 = vpop.f32.mrb[0].mxu0
        %v1767 = vadd.f32 0.0, %v1766
        %v1768 = vpop.f32.mrb[0].mxu0
        %v1769 = vadd.f32 0.0, %v1768
        %v1770 = vpop.f32.mrb[0].mxu0
        %v1771 = vadd.f32 0.0, %v1770
        %v1772 = vpop.f32.mrb[0].mxu0
        %v1773 = vadd.f32 0.0, %v1772
        %1774 = vmatprep.mubr.bf16.mxu0 0
        %1775 = vmatmul.mubr.bf16.gmra.mrb[0].mxu0 %v1624
        %v1776 = vpop.f32.mrb[0].mxu0
        %v1777 = vadd.f32 0.0, %v1776
        %v1778 = vpop.f32.mrb[0].mxu0
        %v1779 = vadd.f32 0.0, %v1778
        %v1780 = vpop.f32.mrb[0].mxu0
        %v1781 = vadd.f32 0.0, %v1780
        %v1782 = vpop.f32.mrb[0].mxu0
        %v1783 = vadd.f32 0.0, %v1782
        %1784 = vdwg.mxu0
        %1785 = vmatprep.subr.bf16.mxu0 %v1596
        %1786 = vmatpush1.bf16.msra.mxu0 %v1595
        %1787 = vmatprep.subr.bf16.mxu0 0
        %1788 = vmatpush1.bf16.msra.mxu0 0
        %1789 = vmatprep.subr.bf16.mxu0 0
        %1790 = vmatpush1.bf16.msra.mxu0 0
        %1791 = vmatprep.subr.bf16.mxu0 0
        %1792 = vmatpush1.bf16.msra.mxu0 0
        %1793 = vmatprep.subr.bf16.mxu0 0
        %1794 = vmatpush1.bf16.msra.mxu0 0
        %1795 = vmatprep.subr.bf16.mxu0 0
        %1796 = vmatpush1.bf16.msra.mxu0 0
        %1797 = vmatprep.subr.bf16.mxu0 0
        %1798 = vmatpush1.bf16.msra.mxu0 0
        %1799 = vmatprep.subr.bf16.mxu0 0
        %1800 = vmatpush1.bf16.msra.mxu0 0
        %1801 = vmatprep.subr.bf16.mxu0 0
        %1802 = vmatpush1.bf16.msra.mxu0 0
        %1803 = vmatprep.subr.bf16.mxu0 0
        %1804 = vmatpush1.bf16.msra.mxu0 0
        %1805 = vmatprep.subr.bf16.mxu0 0
        %1806 = vmatpush1.bf16.msra.mxu0 0
        %1807 = vmatprep.subr.bf16.mxu0 0
        %1808 = vmatpush1.bf16.msra.mxu0 0
        %1809 = vmatprep.subr.bf16.mxu0 0
        %1810 = vmatpush1.bf16.msra.mxu0 0
        %1811 = vmatprep.subr.bf16.mxu0 0
        %1812 = vmatpush1.bf16.msra.mxu0 0
        %1813 = vmatprep.subr.bf16.mxu0 0
        %1814 = vmatpush1.bf16.msra.mxu0 0
        %1815 = vmatprep.subr.bf16.mxu0 0
        %1816 = vmatpush1.bf16.msra.mxu0 0
        %1817 = vmatprep.mubr.bf16.mxu0 0
        %1818 = vmatmul.mubr.bf16.gmra.mrb[0].mxu0 %v1621
        %v1819 = vpop.f32.mrb[0].mxu0
        %v1820 = vadd.f32 0.0, %v1819
        %v1821 = vpop.f32.mrb[0].mxu0
        %v1822 = vadd.f32 0.0, %v1821
        %v1823 = vpop.f32.mrb[0].mxu0
        %v1824 = vadd.f32 0.0, %v1823
        %v1825 = vpop.f32.mrb[0].mxu0
        %v1826 = vadd.f32 0.0, %v1825
        %1827 = vmatprep.mubr.bf16.mxu0 0
        %1828 = vmatmul.mubr.bf16.gmra.mrb[0].mxu0 %v1624
        %v1829 = vpop.f32.mrb[0].mxu0
        %v1830 = vadd.f32 0.0, %v1829
        %v1831 = vpop.f32.mrb[0].mxu0
        %v1832 = vadd.f32 0.0, %v1831
        %v1833 = vpop.f32.mrb[0].mxu0
        %v1834 = vadd.f32 0.0, %v1833
        %v1835 = vpop.f32.mrb[0].mxu0
        %v1836 = vadd.f32 0.0, %v1835
        %1837 = vdwg.mxu0
        %v1842 = vunpack.c.l.b16 %v1602
        %v1843 = vunpack.c.l.b16 %v1603
        %v1844 = vunpack.c.l.b16 %v1604
        %v1845 = vunpack.c.l.b16 %v1605
        %v1846 = vpack.c.b16 %v1843, %v1842
        %v1847 = vpack.c.b16 %v1845, %v1844
        %v1849 = vsel %vm1044, %v1846, 0
        %v1852 = vsel %vm1044, %v1847, 0
        %1854 = vmatprep.subr.bf16.mxu0 %v1590
        %1855 = vmatpush1.bf16.msra.mxu0 %v1589
        %1856 = vmatprep.subr.bf16.mxu0 0
        %1857 = vmatpush1.bf16.msra.mxu0 0
        %1858 = vmatprep.subr.bf16.mxu0 0
        %1859 = vmatpush1.bf16.msra.mxu0 0
        %1860 = vmatprep.subr.bf16.mxu0 0
        %1861 = vmatpush1.bf16.msra.mxu0 0
        %1862 = vmatprep.subr.bf16.mxu0 0
        %1863 = vmatpush1.bf16.msra.mxu0 0
        %1864 = vmatprep.subr.bf16.mxu0 0
        %1865 = vmatpush1.bf16.msra.mxu0 0
        %1866 = vmatprep.subr.bf16.mxu0 0
        %1867 = vmatpush1.bf16.msra.mxu0 0
        %1868 = vmatprep.subr.bf16.mxu0 0
        %1869 = vmatpush1.bf16.msra.mxu0 0
        %1870 = vmatprep.subr.bf16.mxu0 0
        %1871 = vmatpush1.bf16.msra.mxu0 0
        %1872 = vmatprep.subr.bf16.mxu0 0
        %1873 = vmatpush1.bf16.msra.mxu0 0
        %1874 = vmatprep.subr.bf16.mxu0 0
        %1875 = vmatpush1.bf16.msra.mxu0 0
        %1876 = vmatprep.subr.bf16.mxu0 0
        %1877 = vmatpush1.bf16.msra.mxu0 0
        %1878 = vmatprep.subr.bf16.mxu0 0
        %1879 = vmatpush1.bf16.msra.mxu0 0
        %1880 = vmatprep.subr.bf16.mxu0 0
        %1881 = vmatpush1.bf16.msra.mxu0 0
        %1882 = vmatprep.subr.bf16.mxu0 0
        %1883 = vmatpush1.bf16.msra.mxu0 0
        %1884 = vmatprep.subr.bf16.mxu0 0
        %1885 = vmatpush1.bf16.msra.mxu0 0
        %1886 = vmatprep.mubr.bf16.mxu0 0
        %1887 = vmatmul.mubr.bf16.gmra.mrb[0].mxu0 %v1849
        %v1888 = vpop.f32.mrb[0].mxu0
        %v1889 = vadd.f32 0.0, %v1888
        %v1890 = vpop.f32.mrb[0].mxu0
        %v1891 = vadd.f32 0.0, %v1890
        %v1892 = vpop.f32.mrb[0].mxu0
        %v1893 = vadd.f32 0.0, %v1892
        %v1894 = vpop.f32.mrb[0].mxu0
        %v1895 = vadd.f32 0.0, %v1894
        %1896 = vmatprep.mubr.bf16.mxu0 0
        %1897 = vmatmul.mubr.bf16.gmra.mrb[0].mxu0 %v1852
        %v1898 = vpop.f32.mrb[0].mxu0
        %v1899 = vadd.f32 0.0, %v1898
        %v1900 = vpop.f32.mrb[0].mxu0
        %v1901 = vadd.f32 0.0, %v1900
        %v1902 = vpop.f32.mrb[0].mxu0
        %v1903 = vadd.f32 0.0, %v1902
        %v1904 = vpop.f32.mrb[0].mxu0
        %v1905 = vadd.f32 0.0, %v1904
        %1906 = vdwg.mxu0
        %1907 = vmatprep.subr.bf16.mxu0 %v1592
        %1908 = vmatpush1.bf16.msra.mxu0 %v1591
        %1909 = vmatprep.subr.bf16.mxu0 0
        %1910 = vmatpush1.bf16.msra.mxu0 0
        %1911 = vmatprep.subr.bf16.mxu0 0
        %1912 = vmatpush1.bf16.msra.mxu0 0
        %1913 = vmatprep.subr.bf16.mxu0 0
        %1914 = vmatpush1.bf16.msra.mxu0 0
        %1915 = vmatprep.subr.bf16.mxu0 0
        %1916 = vmatpush1.bf16.msra.mxu0 0
        %1917 = vmatprep.subr.bf16.mxu0 0
        %1918 = vmatpush1.bf16.msra.mxu0 0
        %1919 = vmatprep.subr.bf16.mxu0 0
        %1920 = vmatpush1.bf16.msra.mxu0 0
        %1921 = vmatprep.subr.bf16.mxu0 0
        %1922 = vmatpush1.bf16.msra.mxu0 0
        %1923 = vmatprep.subr.bf16.mxu0 0
        %1924 = vmatpush1.bf16.msra.mxu0 0
        %1925 = vmatprep.subr.bf16.mxu0 0
        %1926 = vmatpush1.bf16.msra.mxu0 0
        %1927 = vmatprep.subr.bf16.mxu0 0
        %1928 = vmatpush1.bf16.msra.mxu0 0
        %1929 = vmatprep.subr.bf16.mxu0 0
        %1930 = vmatpush1.bf16.msra.mxu0 0
        %1931 = vmatprep.subr.bf16.mxu0 0
        %1932 = vmatpush1.bf16.msra.mxu0 0
        %1933 = vmatprep.subr.bf16.mxu0 0
        %1934 = vmatpush1.bf16.msra.mxu0 0
        %1935 = vmatprep.subr.bf16.mxu0 0
        %1936 = vmatpush1.bf16.msra.mxu0 0
        %1937 = vmatprep.subr.bf16.mxu0 0
        %1938 = vmatpush1.bf16.msra.mxu0 0
        %1939 = vmatprep.mubr.bf16.mxu0 0
        %1940 = vmatmul.mubr.bf16.gmra.mrb[0].mxu0 %v1849
        %v1941 = vpop.f32.mrb[0].mxu0
        %v1942 = vadd.f32 0.0, %v1941
        %v1943 = vpop.f32.mrb[0].mxu0
        %v1944 = vadd.f32 0.0, %v1943
        %v1945 = vpop.f32.mrb[0].mxu0
        %v1946 = vadd.f32 0.0, %v1945
        %v1947 = vpop.f32.mrb[0].mxu0
        %v1948 = vadd.f32 0.0, %v1947
        %1949 = vmatprep.mubr.bf16.mxu0 0
        %1950 = vmatmul.mubr.bf16.gmra.mrb[0].mxu0 %v1852
        %v1951 = vpop.f32.mrb[0].mxu0
        %v1952 = vadd.f32 0.0, %v1951
        %v1953 = vpop.f32.mrb[0].mxu0
        %v1954 = vadd.f32 0.0, %v1953
        %v1955 = vpop.f32.mrb[0].mxu0
        %v1956 = vadd.f32 0.0, %v1955
        %v1957 = vpop.f32.mrb[0].mxu0
        %v1958 = vadd.f32 0.0, %v1957
        %1959 = vdwg.mxu0
        %1960 = vmatprep.subr.bf16.mxu0 %v1594
        %1961 = vmatpush1.bf16.msra.mxu0 %v1593
        %1962 = vmatprep.subr.bf16.mxu0 0
        %1963 = vmatpush1.bf16.msra.mxu0 0
        %1964 = vmatprep.subr.bf16.mxu0 0
        %1965 = vmatpush1.bf16.msra.mxu0 0
        %1966 = vmatprep.subr.bf16.mxu0 0
        %1967 = vmatpush1.bf16.msra.mxu0 0
        %1968 = vmatprep.subr.bf16.mxu0 0
        %1969 = vmatpush1.bf16.msra.mxu0 0
        %1970 = vmatprep.subr.bf16.mxu0 0
        %1971 = vmatpush1.bf16.msra.mxu0 0
        %1972 = vmatprep.subr.bf16.mxu0 0
        %1973 = vmatpush1.bf16.msra.mxu0 0
        %1974 = vmatprep.subr.bf16.mxu0 0
        %1975 = vmatpush1.bf16.msra.mxu0 0
        %1976 = vmatprep.subr.bf16.mxu0 0
        %1977 = vmatpush1.bf16.msra.mxu0 0
        %1978 = vmatprep.subr.bf16.mxu0 0
        %1979 = vmatpush1.bf16.msra.mxu0 0
        %1980 = vmatprep.subr.bf16.mxu0 0
        %1981 = vmatpush1.bf16.msra.mxu0 0
        %1982 = vmatprep.subr.bf16.mxu0 0
        %1983 = vmatpush1.bf16.msra.mxu0 0
        %1984 = vmatprep.subr.bf16.mxu0 0
        %1985 = vmatpush1.bf16.msra.mxu0 0
        %1986 = vmatprep.subr.bf16.mxu0 0
        %1987 = vmatpush1.bf16.msra.mxu0 0
        %1988 = vmatprep.subr.bf16.mxu0 0
        %1989 = vmatpush1.bf16.msra.mxu0 0
        %1990 = vmatprep.subr.bf16.mxu0 0
        %1991 = vmatpush1.bf16.msra.mxu0 0
        %1992 = vmatprep.mubr.bf16.mxu0 0
        %1993 = vmatmul.mubr.bf16.gmra.mrb[0].mxu0 %v1849
        %v1994 = vpop.f32.mrb[0].mxu0
        %v1995 = vadd.f32 %v1661, %v1994
        %v1996 = vpop.f32.mrb[0].mxu0
        %v1997 = vadd.f32 %v1663, %v1996
        %v1998 = vpop.f32.mrb[0].mxu0
        %v1999 = vadd.f32 %v1665, %v1998
        %v2000 = vpop.f32.mrb[0].mxu0
        %v2001 = vadd.f32 %v1667, %v2000
        %2002 = vmatprep.mubr.bf16.mxu0 0
        %2003 = vmatmul.mubr.bf16.gmra.mrb[0].mxu0 %v1852
        %v2004 = vpop.f32.mrb[0].mxu0
        %v2005 = vadd.f32 %v1671, %v2004
        %v2006 = vpop.f32.mrb[0].mxu0
        %v2007 = vadd.f32 %v1673, %v2006
        %v2008 = vpop.f32.mrb[0].mxu0
        %v2009 = vadd.f32 %v1675, %v2008
        %v2010 = vpop.f32.mrb[0].mxu0
        %v2011 = vadd.f32 %v1677, %v2010
        %2012 = vdwg.mxu0
        %2013 = vmatprep.subr.bf16.mxu0 %v1596
        %2014 = vmatpush1.bf16.msra.mxu0 %v1595
        %2015 = vmatprep.subr.bf16.mxu0 0
        %2016 = vmatpush1.bf16.msra.mxu0 0
        %2017 = vmatprep.subr.bf16.mxu0 0
        %2018 = vmatpush1.bf16.msra.mxu0 0
        %2019 = vmatprep.subr.bf16.mxu0 0
        %2020 = vmatpush1.bf16.msra.mxu0 0
        %2021 = vmatprep.subr.bf16.mxu0 0
        %2022 = vmatpush1.bf16.msra.mxu0 0
        %2023 = vmatprep.subr.bf16.mxu0 0
        %2024 = vmatpush1.bf16.msra.mxu0 0
        %2025 = vmatprep.subr.bf16.mxu0 0
        %2026 = vmatpush1.bf16.msra.mxu0 0
        %2027 = vmatprep.subr.bf16.mxu0 0
        %2028 = vmatpush1.bf16.msra.mxu0 0
        %2029 = vmatprep.subr.bf16.mxu0 0
        %2030 = vmatpush1.bf16.msra.mxu0 0
        %2031 = vmatprep.subr.bf16.mxu0 0
        %2032 = vmatpush1.bf16.msra.mxu0 0
        %2033 = vmatprep.subr.bf16.mxu0 0
        %2034 = vmatpush1.bf16.msra.mxu0 0
        %2035 = vmatprep.subr.bf16.mxu0 0
        %2036 = vmatpush1.bf16.msra.mxu0 0
        %2037 = vmatprep.subr.bf16.mxu0 0
        %2038 = vmatpush1.bf16.msra.mxu0 0
        %2039 = vmatprep.subr.bf16.mxu0 0
        %2040 = vmatpush1.bf16.msra.mxu0 0
        %2041 = vmatprep.subr.bf16.mxu0 0
        %2042 = vmatpush1.bf16.msra.mxu0 0
        %2043 = vmatprep.subr.bf16.mxu0 0
        %2044 = vmatpush1.bf16.msra.mxu0 0
        %2045 = vmatprep.mubr.bf16.mxu0 0
        %2046 = vmatmul.mubr.bf16.gmra.mrb[0].mxu0 %v1849
        %v2047 = vpop.f32.mrb[0].mxu0
        %v2048 = vadd.f32 %v1714, %v2047
        %v2049 = vpop.f32.mrb[0].mxu0
        %v2050 = vadd.f32 %v1716, %v2049
        %v2051 = vpop.f32.mrb[0].mxu0
        %v2052 = vadd.f32 %v1718, %v2051
        %v2053 = vpop.f32.mrb[0].mxu0
        %v2054 = vadd.f32 %v1720, %v2053
        %2055 = vmatprep.mubr.bf16.mxu0 0
        %2056 = vmatmul.mubr.bf16.gmra.mrb[0].mxu0 %v1852
        %v2057 = vpop.f32.mrb[0].mxu0
        %v2058 = vadd.f32 %v1724, %v2057
        %v2059 = vpop.f32.mrb[0].mxu0
        %v2060 = vadd.f32 %v1726, %v2059
        %v2061 = vpop.f32.mrb[0].mxu0
        %v2062 = vadd.f32 %v1728, %v2061
        %v2063 = vpop.f32.mrb[0].mxu0
        %v2064 = vadd.f32 %v1730, %v2063
        %2065 = vdwg.mxu0
        %2066 = vmatprep.subr.bf16.mxu0 %v1598
        %2067 = vmatpush1.bf16.msra.mxu0 %v1597
        %2068 = vmatprep.subr.bf16.mxu0 0
        %2069 = vmatpush1.bf16.msra.mxu0 0
        %2070 = vmatprep.subr.bf16.mxu0 0
        %2071 = vmatpush1.bf16.msra.mxu0 0
        %2072 = vmatprep.subr.bf16.mxu0 0
        %2073 = vmatpush1.bf16.msra.mxu0 0
        %2074 = vmatprep.subr.bf16.mxu0 0
        %2075 = vmatpush1.bf16.msra.mxu0 0
        %2076 = vmatprep.subr.bf16.mxu0 0
        %2077 = vmatpush1.bf16.msra.mxu0 0
        %2078 = vmatprep.subr.bf16.mxu0 0
        %2079 = vmatpush1.bf16.msra.mxu0 0
        %2080 = vmatprep.subr.bf16.mxu0 0
        %2081 = vmatpush1.bf16.msra.mxu0 0
        %2082 = vmatprep.subr.bf16.mxu0 0
        %2083 = vmatpush1.bf16.msra.mxu0 0
        %2084 = vmatprep.subr.bf16.mxu0 0
        %2085 = vmatpush1.bf16.msra.mxu0 0
        %2086 = vmatprep.subr.bf16.mxu0 0
        %2087 = vmatpush1.bf16.msra.mxu0 0
        %2088 = vmatprep.subr.bf16.mxu0 0
        %2089 = vmatpush1.bf16.msra.mxu0 0
        %2090 = vmatprep.subr.bf16.mxu0 0
        %2091 = vmatpush1.bf16.msra.mxu0 0
        %2092 = vmatprep.subr.bf16.mxu0 0
        %2093 = vmatpush1.bf16.msra.mxu0 0
        %2094 = vmatprep.subr.bf16.mxu0 0
        %2095 = vmatpush1.bf16.msra.mxu0 0
        %2096 = vmatprep.subr.bf16.mxu0 0
        %2097 = vmatpush1.bf16.msra.mxu0 0
        %2098 = vmatprep.mubr.bf16.mxu0 0
        %2099 = vmatmul.mubr.bf16.gmra.mrb[0].mxu0 %v1849
        %v2100 = vpop.f32.mrb[0].mxu0
        %v2101 = vadd.f32 %v1767, %v2100
        %v2102 = vpop.f32.mrb[0].mxu0
        %v2103 = vadd.f32 %v1769, %v2102
        %v2104 = vpop.f32.mrb[0].mxu0
        %v2105 = vadd.f32 %v1771, %v2104
        %v2106 = vpop.f32.mrb[0].mxu0
        %v2107 = vadd.f32 %v1773, %v2106
        %2108 = vmatprep.mubr.bf16.mxu0 0
        %2109 = vmatmul.mubr.bf16.gmra.mrb[0].mxu0 %v1852
        %v2110 = vpop.f32.mrb[0].mxu0
        %v2111 = vadd.f32 %v1777, %v2110
        %v2112 = vpop.f32.mrb[0].mxu0
        %v2113 = vadd.f32 %v1779, %v2112
        %v2114 = vpop.f32.mrb[0].mxu0
        %v2115 = vadd.f32 %v1781, %v2114
        %v2116 = vpop.f32.mrb[0].mxu0
        %v2117 = vadd.f32 %v1783, %v2116
        %2118 = vdwg.mxu0
        %2119 = vmatprep.subr.bf16.mxu0 %v1600
        %2120 = vmatpush1.bf16.msra.mxu0 %v1599
        %2121 = vmatprep.subr.bf16.mxu0 0
        %2122 = vmatpush1.bf16.msra.mxu0 0
        %2123 = vmatprep.subr.bf16.mxu0 0
        %2124 = vmatpush1.bf16.msra.mxu0 0
        %2125 = vmatprep.subr.bf16.mxu0 0
        %2126 = vmatpush1.bf16.msra.mxu0 0
        %2127 = vmatprep.subr.bf16.mxu0 0
        %2128 = vmatpush1.bf16.msra.mxu0 0
        %2129 = vmatprep.subr.bf16.mxu0 0
        %2130 = vmatpush1.bf16.msra.mxu0 0
        %2131 = vmatprep.subr.bf16.mxu0 0
        %2132 = vmatpush1.bf16.msra.mxu0 0
        %2133 = vmatprep.subr.bf16.mxu0 0
        %2134 = vmatpush1.bf16.msra.mxu0 0
        %2135 = vmatprep.subr.bf16.mxu0 0
        %2136 = vmatpush1.bf16.msra.mxu0 0
        %2137 = vmatprep.subr.bf16.mxu0 0
        %2138 = vmatpush1.bf16.msra.mxu0 0
        %2139 = vmatprep.subr.bf16.mxu0 0
        %2140 = vmatpush1.bf16.msra.mxu0 0
        %2141 = vmatprep.subr.bf16.mxu0 0
        %2142 = vmatpush1.bf16.msra.mxu0 0
        %2143 = vmatprep.subr.bf16.mxu0 0
        %2144 = vmatpush1.bf16.msra.mxu0 0
        %2145 = vmatprep.subr.bf16.mxu0 0
        %2146 = vmatpush1.bf16.msra.mxu0 0
        %2147 = vmatprep.subr.bf16.mxu0 0
        %2148 = vmatpush1.bf16.msra.mxu0 0
        %2149 = vmatprep.subr.bf16.mxu0 0
        %2150 = vmatpush1.bf16.msra.mxu0 0
        %2151 = vmatprep.mubr.bf16.mxu0 0
        %2152 = vmatmul.mubr.bf16.gmra.mrb[0].mxu0 %v1849
        %v2153 = vpop.f32.mrb[0].mxu0
        %v2154 = vadd.f32 %v1820, %v2153
        %v2155 = vpop.f32.mrb[0].mxu0
        %v2156 = vadd.f32 %v1822, %v2155
        %v2157 = vpop.f32.mrb[0].mxu0
        %v2158 = vadd.f32 %v1824, %v2157
        %v2159 = vpop.f32.mrb[0].mxu0
        %v2160 = vadd.f32 %v1826, %v2159
        %2161 = vmatprep.mubr.bf16.mxu0 0
        %2162 = vmatmul.mubr.bf16.gmra.mrb[0].mxu0 %v1852
        %v2163 = vpop.f32.mrb[0].mxu0
        %v2164 = vadd.f32 %v1830, %v2163
        %v2165 = vpop.f32.mrb[0].mxu0
        %v2166 = vadd.f32 %v1832, %v2165
        %v2167 = vpop.f32.mrb[0].mxu0
        %v2168 = vadd.f32 %v1834, %v2167
        %v2169 = vpop.f32.mrb[0].mxu0
        %v2170 = vadd.f32 %v1836, %v2169
        %2171 = vdwg.mxu0
        %v2172 = vld [vmem:[%s6] sm:$0xff]
        %v2173 = vld [vmem:[%s6 + $0x8] sm:$0xff]
        %v2174 = vld [vmem:[%s6 + $0x10] sm:$0xff]
        %v2175 = vld [vmem:[%s6 + $0x18] sm:$0xff]
        %2177 = vset.pattern.permute.xlu0 0
        %2178 = vperm.xlu0 %2177, %v2172
        %v2179 = vpop.permute.xlu0 %2178
        %2182 = vset.pattern.permute.xlu0 0
        %2183 = vperm.xlu0 %2182, %v2173
        %v2184 = vpop.permute.xlu0 %2183
        %2187 = vset.pattern.permute.xlu0 0
        %2188 = vperm.xlu0 %2187, %v2174
        %v2189 = vpop.permute.xlu0 %2188
        %2192 = vset.pattern.permute.xlu0 0
        %2193 = vperm.xlu0 %2192, %v2175
        %v2194 = vpop.permute.xlu0 %2193
        %v2196 = vadd.f32 %v1889, %v2179
        %v2197 = vadd.f32 %v1891, %v2179
        %v2198 = vadd.f32 %v1942, %v2179
        %v2199 = vadd.f32 %v1944, %v2179
        %v2200 = vadd.f32 %v1995, %v2179
        %v2201 = vadd.f32 %v1997, %v2179
        %v2202 = vadd.f32 %v2048, %v2179
        %v2203 = vadd.f32 %v2050, %v2179
        %v2204 = vadd.f32 %v2101, %v2179
        %v2205 = vadd.f32 %v2103, %v2179
        %v2206 = vadd.f32 %v2154, %v2179
        %v2207 = vadd.f32 %v2156, %v2179
        %v2208 = vadd.f32 %v1893, %v2184
        %v2209 = vadd.f32 %v1895, %v2184
        %v2210 = vadd.f32 %v1946, %v2184
        %v2211 = vadd.f32 %v1948, %v2184
        %v2212 = vadd.f32 %v1999, %v2184
        %v2213 = vadd.f32 %v2001, %v2184
        %v2214 = vadd.f32 %v2052, %v2184
        %v2215 = vadd.f32 %v2054, %v2184
        %v2216 = vadd.f32 %v2105, %v2184
        %v2217 = vadd.f32 %v2107, %v2184
        %v2218 = vadd.f32 %v2158, %v2184
        %v2219 = vadd.f32 %v2160, %v2184
        %v2220 = vadd.f32 %v1899, %v2189
        %v2221 = vadd.f32 %v1901, %v2189
        %v2222 = vadd.f32 %v1952, %v2189
        %v2223 = vadd.f32 %v1954, %v2189
        %v2224 = vadd.f32 %v2005, %v2189
        %v2225 = vadd.f32 %v2007, %v2189
        %v2226 = vadd.f32 %v2058, %v2189
        %v2227 = vadd.f32 %v2060, %v2189
        %v2228 = vadd.f32 %v2111, %v2189
        %v2229 = vadd.f32 %v2113, %v2189
        %v2230 = vadd.f32 %v2164, %v2189
        %v2231 = vadd.f32 %v2166, %v2189
        %v2232 = vadd.f32 %v1903, %v2194
        %v2233 = vadd.f32 %v1905, %v2194
        %v2234 = vadd.f32 %v1956, %v2194
        %v2235 = vadd.f32 %v1958, %v2194
        %v2236 = vadd.f32 %v2009, %v2194
        %v2237 = vadd.f32 %v2011, %v2194
        %v2238 = vadd.f32 %v2062, %v2194
        %v2239 = vadd.f32 %v2064, %v2194
        %v2240 = vadd.f32 %v2115, %v2194
        %v2241 = vadd.f32 %v2117, %v2194
        %v2242 = vadd.f32 %v2168, %v2194
        %v2243 = vadd.f32 %v2170, %v2194
        %v2244 = vmax.f32 %v2196, 0.0
        %v2245 = vmax.f32 %v2197, 0.0
        %v2246 = vmax.f32 %v2198, 0.0
        %v2247 = vmax.f32 %v2199, 0.0
        %v2248 = vmax.f32 %v2200, 0.0
        %v2249 = vmax.f32 %v2201, 0.0
        %v2250 = vmax.f32 %v2202, 0.0
        %v2251 = vmax.f32 %v2203, 0.0
        %v2252 = vmax.f32 %v2204, 0.0
        %v2253 = vmax.f32 %v2205, 0.0
        %v2254 = vmax.f32 %v2206, 0.0
        %v2255 = vmax.f32 %v2207, 0.0
        %v2256 = vmax.f32 %v2208, 0.0
        %v2257 = vmax.f32 %v2209, 0.0
        %v2258 = vmax.f32 %v2210, 0.0
        %v2259 = vmax.f32 %v2211, 0.0
        %v2260 = vmax.f32 %v2212, 0.0
        %v2261 = vmax.f32 %v2213, 0.0
        %v2262 = vmax.f32 %v2214, 0.0
        %v2263 = vmax.f32 %v2215, 0.0
        %v2264 = vmax.f32 %v2216, 0.0
        %v2265 = vmax.f32 %v2217, 0.0
        %v2266 = vmax.f32 %v2218, 0.0
        %v2267 = vmax.f32 %v2219, 0.0
        %v2268 = vmax.f32 %v2220, 0.0
        %v2269 = vmax.f32 %v2221, 0.0
        %v2270 = vmax.f32 %v2222, 0.0
        %v2271 = vmax.f32 %v2223, 0.0
        %v2272 = vmax.f32 %v2224, 0.0
        %v2273 = vmax.f32 %v2225, 0.0
        %v2274 = vmax.f32 %v2226, 0.0
        %v2275 = vmax.f32 %v2227, 0.0
        %v2276 = vmax.f32 %v2228, 0.0
        %v2277 = vmax.f32 %v2229, 0.0
        %v2278 = vmax.f32 %v2230, 0.0
        %v2279 = vmax.f32 %v2231, 0.0
        %v2280 = vmax.f32 %v2232, 0.0
        %v2281 = vmax.f32 %v2233, 0.0
        %v2282 = vmax.f32 %v2234, 0.0
        %v2283 = vmax.f32 %v2235, 0.0
        %v2284 = vmax.f32 %v2236, 0.0
        %v2285 = vmax.f32 %v2237, 0.0
        %v2286 = vmax.f32 %v2238, 0.0
        %v2287 = vmax.f32 %v2239, 0.0
        %v2288 = vmax.f32 %v2240, 0.0
        %v2289 = vmax.f32 %v2241, 0.0
        %v2290 = vmax.f32 %v2242, 0.0
        %v2291 = vmax.f32 %v2243, 0.0
        %v2292 = vld [vmem:[%s7] sm:$0xf]
        %v2293 = vld [vmem:[%s7 + $0x4] sm:$0xf]
        %v2294 = vld [vmem:[%s7 + $0x8] sm:$0xf]
        %v2295 = vld [vmem:[%s7 + $0xc] sm:$0xf]
        %v2296 = vld [vmem:[%s8] sm:$0xff]
        %v2297 = vld [vmem:[%s8 + $0x8] sm:$0xff]
        %v2298 = vld [vmem:[%s8 + $0x10] sm:$0xff]
        %v2299 = vld [vmem:[%s8 + $0x18] sm:$0xff]
        %2301 = vset.pattern.permute.xlu0 0
        %2302 = vperm.xlu0 %2301, %v2296
        %v2303 = vpop.permute.xlu0 %2302
        %2306 = vset.pattern.permute.xlu0 0
        %2307 = vperm.xlu0 %2306, %v2297
        %v2308 = vpop.permute.xlu0 %2307
        %2311 = vset.pattern.permute.xlu0 0
        %2312 = vperm.xlu0 %2311, %v2298
        %v2313 = vpop.permute.xlu0 %2312
        %2316 = vset.pattern.permute.xlu0 0
        %2317 = vperm.xlu0 %2316, %v2299
        %v2318 = vpop.permute.xlu0 %2317
        %v2324 = vunpack.c.l.b16 %v2292
        %v2325 = vunpack.c.l.b16 %v2293
        %v2326 = vunpack.c.l.b16 %v2294
        %v2327 = vunpack.c.l.b16 %v2295
        %v2328 = vpack.c.b16 %v2325, %v2324
        %v2329 = vpack.c.b16 %v2327, %v2326
        %v2331 = vsel %vm398, %v2328, 0
        %v2334 = vsel %vm398, %v2329, 0
        %2336 = vmatprep.subr.bf16.mxu0 %v407
        %2337 = vmatpush1.bf16.msra.mxu0 %v404
        %2338 = vmatprep.subr.bf16.mxu0 0
        %2339 = vmatpush1.bf16.msra.mxu0 0
        %2340 = vmatprep.subr.bf16.mxu0 0
        %2341 = vmatpush1.bf16.msra.mxu0 0
        %2342 = vmatprep.subr.bf16.mxu0 0
        %2343 = vmatpush1.bf16.msra.mxu0 0
        %2344 = vmatprep.subr.bf16.mxu0 0
        %2345 = vmatpush1.bf16.msra.mxu0 0
        %2346 = vmatprep.subr.bf16.mxu0 0
        %2347 = vmatpush1.bf16.msra.mxu0 0
        %2348 = vmatprep.subr.bf16.mxu0 0
        %2349 = vmatpush1.bf16.msra.mxu0 0
        %2350 = vmatprep.subr.bf16.mxu0 0
        %2351 = vmatpush1.bf16.msra.mxu0 0
        %2352 = vmatprep.subr.bf16.mxu0 0
        %2353 = vmatpush1.bf16.msra.mxu0 0
        %2354 = vmatprep.subr.bf16.mxu0 0
        %2355 = vmatpush1.bf16.msra.mxu0 0
        %2356 = vmatprep.subr.bf16.mxu0 0
        %2357 = vmatpush1.bf16.msra.mxu0 0
        %2358 = vmatprep.subr.bf16.mxu0 0
        %2359 = vmatpush1.bf16.msra.mxu0 0
        %2360 = vmatprep.subr.bf16.mxu0 0
        %2361 = vmatpush1.bf16.msra.mxu0 0
        %2362 = vmatprep.subr.bf16.mxu0 0
        %2363 = vmatpush1.bf16.msra.mxu0 0
        %2364 = vmatprep.subr.bf16.mxu0 0
        %2365 = vmatpush1.bf16.msra.mxu0 0
        %2366 = vmatprep.subr.bf16.mxu0 0
        %2367 = vmatpush1.bf16.msra.mxu0 0
        %2368 = vmatprep.mubr.bf16.mxu0 0
        %2369 = vmatmul.mubr.bf16.gmra.mrb[0].mxu0 %v2331
        %v2370 = vpop.f32.mrb[0].mxu0
        %v2371 = vadd.f32 %v2303, %v2370
        %v2372 = vpop.f32.mrb[0].mxu0
        %v2373 = vadd.f32 %v2303, %v2372
        %v2374 = vpop.f32.mrb[0].mxu0
        %v2375 = vadd.f32 %v2308, %v2374
        %v2376 = vpop.f32.mrb[0].mxu0
        %v2377 = vadd.f32 %v2308, %v2376
        %2378 = vmatprep.mubr.bf16.mxu0 0
        %2379 = vmatmul.mubr.bf16.gmra.mrb[0].mxu0 %v2334
        %v2380 = vpop.f32.mrb[0].mxu0
        %v2381 = vadd.f32 %v2313, %v2380
        %v2382 = vpop.f32.mrb[0].mxu0
        %v2383 = vadd.f32 %v2313, %v2382
        %v2384 = vpop.f32.mrb[0].mxu0
        %v2385 = vadd.f32 %v2318, %v2384
        %v2386 = vpop.f32.mrb[0].mxu0
        %v2387 = vadd.f32 %v2318, %v2386
        %2388 = vdwg.mxu0
        %2389 = vmatprep.subr.bf16.mxu0 %v413
        %2390 = vmatpush1.bf16.msra.mxu0 %v410
        %2391 = vmatprep.subr.bf16.mxu0 0
        %2392 = vmatpush1.bf16.msra.mxu0 0
        %2393 = vmatprep.subr.bf16.mxu0 0
        %2394 = vmatpush1.bf16.msra.mxu0 0
        %2395 = vmatprep.subr.bf16.mxu0 0
        %2396 = vmatpush1.bf16.msra.mxu0 0
        %2397 = vmatprep.subr.bf16.mxu0 0
        %2398 = vmatpush1.bf16.msra.mxu0 0
        %2399 = vmatprep.subr.bf16.mxu0 0
        %2400 = vmatpush1.bf16.msra.mxu0 0
        %2401 = vmatprep.subr.bf16.mxu0 0
        %2402 = vmatpush1.bf16.msra.mxu0 0
        %2403 = vmatprep.subr.bf16.mxu0 0
        %2404 = vmatpush1.bf16.msra.mxu0 0
        %2405 = vmatprep.subr.bf16.mxu0 0
        %2406 = vmatpush1.bf16.msra.mxu0 0
        %2407 = vmatprep.subr.bf16.mxu0 0
        %2408 = vmatpush1.bf16.msra.mxu0 0
        %2409 = vmatprep.subr.bf16.mxu0 0
        %2410 = vmatpush1.bf16.msra.mxu0 0
        %2411 = vmatprep.subr.bf16.mxu0 0
        %2412 = vmatpush1.bf16.msra.mxu0 0
        %2413 = vmatprep.subr.bf16.mxu0 0
        %2414 = vmatpush1.bf16.msra.mxu0 0
        %2415 = vmatprep.subr.bf16.mxu0 0
        %2416 = vmatpush1.bf16.msra.mxu0 0
        %2417 = vmatprep.subr.bf16.mxu0 0
        %2418 = vmatpush1.bf16.msra.mxu0 0
        %2419 = vmatprep.subr.bf16.mxu0 0
        %2420 = vmatpush1.bf16.msra.mxu0 0
        %2421 = vmatprep.mubr.bf16.mxu0 0
        %2422 = vmatmul.mubr.bf16.gmra.mrb[0].mxu0 %v2331
        %v2423 = vpop.f32.mrb[0].mxu0
        %v2424 = vadd.f32 %v2303, %v2423
        %v2425 = vpop.f32.mrb[0].mxu0
        %v2426 = vadd.f32 %v2303, %v2425
        %v2427 = vpop.f32.mrb[0].mxu0
        %v2428 = vadd.f32 %v2308, %v2427
        %v2429 = vpop.f32.mrb[0].mxu0
        %v2430 = vadd.f32 %v2308, %v2429
        %2431 = vmatprep.mubr.bf16.mxu0 0
        %2432 = vmatmul.mubr.bf16.gmra.mrb[0].mxu0 %v2334
        %v2433 = vpop.f32.mrb[0].mxu0
        %v2434 = vadd.f32 %v2313, %v2433
        %v2435 = vpop.f32.mrb[0].mxu0
        %v2436 = vadd.f32 %v2313, %v2435
        %v2437 = vpop.f32.mrb[0].mxu0
        %v2438 = vadd.f32 %v2318, %v2437
        %v2439 = vpop.f32.mrb[0].mxu0
        %v2440 = vadd.f32 %v2318, %v2439
        %2441 = vdwg.mxu0
        %2442 = vmatprep.subr.bf16.mxu0 %v419
        %2443 = vmatpush1.bf16.msra.mxu0 %v416
        %2444 = vmatprep.subr.bf16.mxu0 0
        %2445 = vmatpush1.bf16.msra.mxu0 0
        %2446 = vmatprep.subr.bf16.mxu0 0
        %2447 = vmatpush1.bf16.msra.mxu0 0
        %2448 = vmatprep.subr.bf16.mxu0 0
        %2449 = vmatpush1.bf16.msra.mxu0 0
        %2450 = vmatprep.subr.bf16.mxu0 0
        %2451 = vmatpush1.bf16.msra.mxu0 0
        %2452 = vmatprep.subr.bf16.mxu0 0
        %2453 = vmatpush1.bf16.msra.mxu0 0
        %2454 = vmatprep.subr.bf16.mxu0 0
        %2455 = vmatpush1.bf16.msra.mxu0 0
        %2456 = vmatprep.subr.bf16.mxu0 0
        %2457 = vmatpush1.bf16.msra.mxu0 0
        %2458 = vmatprep.subr.bf16.mxu0 0
        %2459 = vmatpush1.bf16.msra.mxu0 0
        %2460 = vmatprep.subr.bf16.mxu0 0
        %2461 = vmatpush1.bf16.msra.mxu0 0
        %2462 = vmatprep.subr.bf16.mxu0 0
        %2463 = vmatpush1.bf16.msra.mxu0 0
        %2464 = vmatprep.subr.bf16.mxu0 0
        %2465 = vmatpush1.bf16.msra.mxu0 0
        %2466 = vmatprep.subr.bf16.mxu0 0
        %2467 = vmatpush1.bf16.msra.mxu0 0
        %2468 = vmatprep.subr.bf16.mxu0 0
        %2469 = vmatpush1.bf16.msra.mxu0 0
        %2470 = vmatprep.subr.bf16.mxu0 0
        %2471 = vmatpush1.bf16.msra.mxu0 0
        %2472 = vmatprep.subr.bf16.mxu0 0
        %2473 = vmatpush1.bf16.msra.mxu0 0
        %2474 = vmatprep.mubr.bf16.mxu0 0
        %2475 = vmatmul.mubr.bf16.gmra.mrb[0].mxu0 %v2331
        %v2476 = vpop.f32.mrb[0].mxu0
        %v2477 = vadd.f32 %v2303, %v2476
        %v2478 = vpop.f32.mrb[0].mxu0
        %v2479 = vadd.f32 %v2303, %v2478
        %v2480 = vpop.f32.mrb[0].mxu0
        %v2481 = vadd.f32 %v2308, %v2480
        %v2482 = vpop.f32.mrb[0].mxu0
        %v2483 = vadd.f32 %v2308, %v2482
        %2484 = vmatprep.mubr.bf16.mxu0 0
        %2485 = vmatmul.mubr.bf16.gmra.mrb[0].mxu0 %v2334
        %v2486 = vpop.f32.mrb[0].mxu0
        %v2487 = vadd.f32 %v2313, %v2486
        %v2488 = vpop.f32.mrb[0].mxu0
        %v2489 = vadd.f32 %v2313, %v2488
        %v2490 = vpop.f32.mrb[0].mxu0
        %v2491 = vadd.f32 %v2318, %v2490
        %v2492 = vpop.f32.mrb[0].mxu0
        %v2493 = vadd.f32 %v2318, %v2492
        %2494 = vdwg.mxu0
        %2495 = vmatprep.subr.bf16.mxu0 %v425
        %2496 = vmatpush1.bf16.msra.mxu0 %v422
        %2497 = vmatprep.subr.bf16.mxu0 0
        %2498 = vmatpush1.bf16.msra.mxu0 0
        %2499 = vmatprep.subr.bf16.mxu0 0
        %2500 = vmatpush1.bf16.msra.mxu0 0
        %2501 = vmatprep.subr.bf16.mxu0 0
        %2502 = vmatpush1.bf16.msra.mxu0 0
        %2503 = vmatprep.subr.bf16.mxu0 0
        %2504 = vmatpush1.bf16.msra.mxu0 0
        %2505 = vmatprep.subr.bf16.mxu0 0
        %2506 = vmatpush1.bf16.msra.mxu0 0
        %2507 = vmatprep.subr.bf16.mxu0 0
        %2508 = vmatpush1.bf16.msra.mxu0 0
        %2509 = vmatprep.subr.bf16.mxu0 0
        %2510 = vmatpush1.bf16.msra.mxu0 0
        %2511 = vmatprep.subr.bf16.mxu0 0
        %2512 = vmatpush1.bf16.msra.mxu0 0
        %2513 = vmatprep.subr.bf16.mxu0 0
        %2514 = vmatpush1.bf16.msra.mxu0 0
        %2515 = vmatprep.subr.bf16.mxu0 0
        %2516 = vmatpush1.bf16.msra.mxu0 0
        %2517 = vmatprep.subr.bf16.mxu0 0
        %2518 = vmatpush1.bf16.msra.mxu0 0
        %2519 = vmatprep.subr.bf16.mxu0 0
        %2520 = vmatpush1.bf16.msra.mxu0 0
        %2521 = vmatprep.subr.bf16.mxu0 0
        %2522 = vmatpush1.bf16.msra.mxu0 0
        %2523 = vmatprep.subr.bf16.mxu0 0
        %2524 = vmatpush1.bf16.msra.mxu0 0
        %2525 = vmatprep.subr.bf16.mxu0 0
        %2526 = vmatpush1.bf16.msra.mxu0 0
        %2527 = vmatprep.mubr.bf16.mxu0 0
        %2528 = vmatmul.mubr.bf16.gmra.mrb[0].mxu0 %v2331
        %v2529 = vpop.f32.mrb[0].mxu0
        %v2530 = vadd.f32 %v2303, %v2529
        %v2531 = vpop.f32.mrb[0].mxu0
        %v2532 = vadd.f32 %v2303, %v2531
        %v2533 = vpop.f32.mrb[0].mxu0
        %v2534 = vadd.f32 %v2308, %v2533
        %v2535 = vpop.f32.mrb[0].mxu0
        %v2536 = vadd.f32 %v2308, %v2535
        %2537 = vmatprep.mubr.bf16.mxu0 0
        %2538 = vmatmul.mubr.bf16.gmra.mrb[0].mxu0 %v2334
        %v2539 = vpop.f32.mrb[0].mxu0
        %v2540 = vadd.f32 %v2313, %v2539
        %v2541 = vpop.f32.mrb[0].mxu0
        %v2542 = vadd.f32 %v2313, %v2541
        %v2543 = vpop.f32.mrb[0].mxu0
        %v2544 = vadd.f32 %v2318, %v2543
        %v2545 = vpop.f32.mrb[0].mxu0
        %v2546 = vadd.f32 %v2318, %v2545
        %2547 = vdwg.mxu0
        %2548 = vmatprep.subr.bf16.mxu0 %v431
        %2549 = vmatpush1.bf16.msra.mxu0 %v428
        %2550 = vmatprep.subr.bf16.mxu0 0
        %2551 = vmatpush1.bf16.msra.mxu0 0
        %2552 = vmatprep.subr.bf16.mxu0 0
        %2553 = vmatpush1.bf16.msra.mxu0 0
        %2554 = vmatprep.subr.bf16.mxu0 0
        %2555 = vmatpush1.bf16.msra.mxu0 0
        %2556 = vmatprep.subr.bf16.mxu0 0
        %2557 = vmatpush1.bf16.msra.mxu0 0
        %2558 = vmatprep.subr.bf16.mxu0 0
        %2559 = vmatpush1.bf16.msra.mxu0 0
        %2560 = vmatprep.subr.bf16.mxu0 0
        %2561 = vmatpush1.bf16.msra.mxu0 0
        %2562 = vmatprep.subr.bf16.mxu0 0
        %2563 = vmatpush1.bf16.msra.mxu0 0
        %2564 = vmatprep.subr.bf16.mxu0 0
        %2565 = vmatpush1.bf16.msra.mxu0 0
        %2566 = vmatprep.subr.bf16.mxu0 0
        %2567 = vmatpush1.bf16.msra.mxu0 0
        %2568 = vmatprep.subr.bf16.mxu0 0
        %2569 = vmatpush1.bf16.msra.mxu0 0
        %2570 = vmatprep.subr.bf16.mxu0 0
        %2571 = vmatpush1.bf16.msra.mxu0 0
        %2572 = vmatprep.subr.bf16.mxu0 0
        %2573 = vmatpush1.bf16.msra.mxu0 0
        %2574 = vmatprep.subr.bf16.mxu0 0
        %2575 = vmatpush1.bf16.msra.mxu0 0
        %2576 = vmatprep.subr.bf16.mxu0 0
        %2577 = vmatpush1.bf16.msra.mxu0 0
        %2578 = vmatprep.subr.bf16.mxu0 0
        %2579 = vmatpush1.bf16.msra.mxu0 0
        %2580 = vmatprep.mubr.bf16.mxu0 0
        %2581 = vmatmul.mubr.bf16.gmra.mrb[0].mxu0 %v2331
        %v2582 = vpop.f32.mrb[0].mxu0
        %v2583 = vadd.f32 %v2303, %v2582
        %v2584 = vpop.f32.mrb[0].mxu0
        %v2585 = vadd.f32 %v2303, %v2584
        %v2586 = vpop.f32.mrb[0].mxu0
        %v2587 = vadd.f32 %v2308, %v2586
        %v2588 = vpop.f32.mrb[0].mxu0
        %v2589 = vadd.f32 %v2308, %v2588
        %2590 = vmatprep.mubr.bf16.mxu0 0
        %2591 = vmatmul.mubr.bf16.gmra.mrb[0].mxu0 %v2334
        %v2592 = vpop.f32.mrb[0].mxu0
        %v2593 = vadd.f32 %v2313, %v2592
        %v2594 = vpop.f32.mrb[0].mxu0
        %v2595 = vadd.f32 %v2313, %v2594
        %v2596 = vpop.f32.mrb[0].mxu0
        %v2597 = vadd.f32 %v2318, %v2596
        %v2598 = vpop.f32.mrb[0].mxu0
        %v2599 = vadd.f32 %v2318, %v2598
        %2600 = vdwg.mxu0
        %2601 = vmatprep.subr.bf16.mxu0 %v702
        %2602 = vmatpush1.bf16.msra.mxu0 %v434
        %2603 = vmatprep.subr.bf16.mxu0 0
        %2604 = vmatpush1.bf16.msra.mxu0 0
        %2605 = vmatprep.subr.bf16.mxu0 0
        %2606 = vmatpush1.bf16.msra.mxu0 0
        %2607 = vmatprep.subr.bf16.mxu0 0
        %2608 = vmatpush1.bf16.msra.mxu0 0
        %2609 = vmatprep.subr.bf16.mxu0 0
        %2610 = vmatpush1.bf16.msra.mxu0 0
        %2611 = vmatprep.subr.bf16.mxu0 0
        %2612 = vmatpush1.bf16.msra.mxu0 0
        %2613 = vmatprep.subr.bf16.mxu0 0
        %2614 = vmatpush1.bf16.msra.mxu0 0
        %2615 = vmatprep.subr.bf16.mxu0 0
        %2616 = vmatpush1.bf16.msra.mxu0 0
        %2617 = vmatprep.subr.bf16.mxu0 0
        %2618 = vmatpush1.bf16.msra.mxu0 0
        %2619 = vmatprep.subr.bf16.mxu0 0
        %2620 = vmatpush1.bf16.msra.mxu0 0
        %2621 = vmatprep.subr.bf16.mxu0 0
        %2622 = vmatpush1.bf16.msra.mxu0 0
        %2623 = vmatprep.subr.bf16.mxu0 0
        %2624 = vmatpush1.bf16.msra.mxu0 0
        %2625 = vmatprep.subr.bf16.mxu0 0
        %2626 = vmatpush1.bf16.msra.mxu0 0
        %2627 = vmatprep.subr.bf16.mxu0 0
        %2628 = vmatpush1.bf16.msra.mxu0 0
        %2629 = vmatprep.subr.bf16.mxu0 0
        %2630 = vmatpush1.bf16.msra.mxu0 0
        %2631 = vmatprep.subr.bf16.mxu0 0
        %2632 = vmatpush1.bf16.msra.mxu0 0
        %2633 = vmatprep.mubr.bf16.mxu0 0
        %2634 = vmatmul.mubr.bf16.gmra.mrb[0].mxu0 %v2331
        %v2635 = vpop.f32.mrb[0].mxu0
        %v2636 = vadd.f32 %v2303, %v2635
        %v2637 = vpop.f32.mrb[0].mxu0
        %v2638 = vadd.f32 %v2303, %v2637
        %v2639 = vpop.f32.mrb[0].mxu0
        %v2640 = vadd.f32 %v2308, %v2639
        %v2641 = vpop.f32.mrb[0].mxu0
        %v2642 = vadd.f32 %v2308, %v2641
        %2643 = vmatprep.mubr.bf16.mxu0 0
        %2644 = vmatmul.mubr.bf16.gmra.mrb[0].mxu0 %v2334
        %v2645 = vpop.f32.mrb[0].mxu0
        %v2646 = vadd.f32 %v2313, %v2645
        %v2647 = vpop.f32.mrb[0].mxu0
        %v2648 = vadd.f32 %v2313, %v2647
        %v2649 = vpop.f32.mrb[0].mxu0
        %v2650 = vadd.f32 %v2318, %v2649
        %v2651 = vpop.f32.mrb[0].mxu0
        %v2652 = vadd.f32 %v2318, %v2651
        %2653 = vdwg.mxu0
        %v2654 = vadd.f32 %v2244, %v2371
        %v2655 = vadd.f32 %v2245, %v2373
        %v2656 = vadd.f32 %v2246, %v2424
        %v2657 = vadd.f32 %v2247, %v2426
        %v2658 = vadd.f32 %v2248, %v2477
        %v2659 = vadd.f32 %v2249, %v2479
        %v2660 = vadd.f32 %v2250, %v2530
        %v2661 = vadd.f32 %v2251, %v2532
        %v2662 = vadd.f32 %v2252, %v2583
        %v2663 = vadd.f32 %v2253, %v2585
        %v2664 = vadd.f32 %v2254, %v2636
        %v2665 = vadd.f32 %v2255, %v2638
        %v2666 = vadd.f32 %v2256, %v2375
        %v2667 = vadd.f32 %v2257, %v2377
        %v2668 = vadd.f32 %v2258, %v2428
        %v2669 = vadd.f32 %v2259, %v2430
        %v2670 = vadd.f32 %v2260, %v2481
        %v2671 = vadd.f32 %v2261, %v2483
        %v2672 = vadd.f32 %v2262, %v2534
        %v2673 = vadd.f32 %v2263, %v2536
        %v2674 = vadd.f32 %v2264, %v2587
        %v2675 = vadd.f32 %v2265, %v2589
        %v2676 = vadd.f32 %v2266, %v2640
        %v2677 = vadd.f32 %v2267, %v2642
        %v2678 = vadd.f32 %v2268, %v2381
        %v2679 = vadd.f32 %v2269, %v2383
        %v2680 = vadd.f32 %v2270, %v2434
        %v2681 = vadd.f32 %v2271, %v2436
        %v2682 = vadd.f32 %v2272, %v2487
        %v2683 = vadd.f32 %v2273, %v2489
        %v2684 = vadd.f32 %v2274, %v2540
        %v2685 = vadd.f32 %v2275, %v2542
        %v2686 = vadd.f32 %v2276, %v2593
        %v2687 = vadd.f32 %v2277, %v2595
        %v2688 = vadd.f32 %v2278, %v2646
        %v2689 = vadd.f32 %v2279, %v2648
        %v2690 = vadd.f32 %v2280, %v2385
        %v2691 = vadd.f32 %v2281, %v2387
        %v2692 = vadd.f32 %v2282, %v2438
        %v2693 = vadd.f32 %v2283, %v2440
        %v2694 = vadd.f32 %v2284, %v2491
        %v2695 = vadd.f32 %v2285, %v2493
        %v2696 = vadd.f32 %v2286, %v2544
        %v2697 = vadd.f32 %v2287, %v2546
        %v2698 = vadd.f32 %v2288, %v2597
        %v2699 = vadd.f32 %v2289, %v2599
        %v2700 = vadd.f32 %v2290, %v2650
        %v2701 = vadd.f32 %v2291, %v2652
        %v2702 = vmax.f32 %v2654, 0.0
        %v2703 = vmax.f32 %v2655, 0.0
        %v2704 = vmax.f32 %v2656, 0.0
        %v2705 = vmax.f32 %v2657, 0.0
        %v2706 = vmax.f32 %v2658, 0.0
        %v2707 = vmax.f32 %v2659, 0.0
        %v2708 = vmax.f32 %v2660, 0.0
        %v2709 = vmax.f32 %v2661, 0.0
        %v2710 = vmax.f32 %v2662, 0.0
        %v2711 = vmax.f32 %v2663, 0.0
        %v2712 = vmax.f32 %v2664, 0.0
        %v2713 = vmax.f32 %v2665, 0.0
        %v2714 = vmax.f32 %v2666, 0.0
        %v2715 = vmax.f32 %v2667, 0.0
        %v2716 = vmax.f32 %v2668, 0.0
        %v2717 = vmax.f32 %v2669, 0.0
        %v2718 = vmax.f32 %v2670, 0.0
        %v2719 = vmax.f32 %v2671, 0.0
        %v2720 = vmax.f32 %v2672, 0.0
        %v2721 = vmax.f32 %v2673, 0.0
        %v2722 = vmax.f32 %v2674, 0.0
        %v2723 = vmax.f32 %v2675, 0.0
        %v2724 = vmax.f32 %v2676, 0.0
        %v2725 = vmax.f32 %v2677, 0.0
        %v2726 = vmax.f32 %v2678, 0.0
        %v2727 = vmax.f32 %v2679, 0.0
        %v2728 = vmax.f32 %v2680, 0.0
        %v2729 = vmax.f32 %v2681, 0.0
        %v2730 = vmax.f32 %v2682, 0.0
        %v2731 = vmax.f32 %v2683, 0.0
        %v2732 = vmax.f32 %v2684, 0.0
        %v2733 = vmax.f32 %v2685, 0.0
        %v2734 = vmax.f32 %v2686, 0.0
        %v2735 = vmax.f32 %v2687, 0.0
        %v2736 = vmax.f32 %v2688, 0.0
        %v2737 = vmax.f32 %v2689, 0.0
        %v2738 = vmax.f32 %v2690, 0.0
        %v2739 = vmax.f32 %v2691, 0.0
        %v2740 = vmax.f32 %v2692, 0.0
        %v2741 = vmax.f32 %v2693, 0.0
        %v2742 = vmax.f32 %v2694, 0.0
        %v2743 = vmax.f32 %v2695, 0.0
        %v2744 = vmax.f32 %v2696, 0.0
        %v2745 = vmax.f32 %v2697, 0.0
        %v2746 = vmax.f32 %v2698, 0.0
        %v2747 = vmax.f32 %v2699, 0.0
        %v2748 = vmax.f32 %v2700, 0.0
        %v2749 = vmax.f32 %v2701, 0.0
        %v2750 = vpack.c.bf16 %v2714, %v2702
        %v2751 = vpack.c.bf16 %v2715, %v2703
        %v2752 = vpack.c.bf16 %v2716, %v2704
        %v2753 = vpack.c.bf16 %v2717, %v2705
        %v2754 = vpack.c.bf16 %v2718, %v2706
        %v2755 = vpack.c.bf16 %v2719, %v2707
        %v2756 = vpack.c.bf16 %v2720, %v2708
        %v2757 = vpack.c.bf16 %v2721, %v2709
        %v2758 = vpack.c.bf16 %v2722, %v2710
        %v2759 = vpack.c.bf16 %v2723, %v2711
        %v2760 = vpack.c.bf16 %v2724, %v2712
        %v2761 = vpack.c.bf16 %v2725, %v2713
        %v2762 = vpack.c.bf16 %v2738, %v2726
        %v2763 = vpack.c.bf16 %v2739, %v2727
        %v2764 = vpack.c.bf16 %v2740, %v2728
        %v2765 = vpack.c.bf16 %v2741, %v2729
        %v2766 = vpack.c.bf16 %v2742, %v2730
        %v2767 = vpack.c.bf16 %v2743, %v2731
        %v2768 = vpack.c.bf16 %v2744, %v2732
        %v2769 = vpack.c.bf16 %v2745, %v2733
        %v2770 = vpack.c.bf16 %v2746, %v2734
        %v2771 = vpack.c.bf16 %v2747, %v2735
        %v2772 = vpack.c.bf16 %v2748, %v2736
        %v2773 = vpack.c.bf16 %v2749, %v2737
        %v2798 = vunpack.c.l.b16 %v2750
        %v2799 = vunpack.c.l.b16 %v2751
        %v2800 = vunpack.c.l.b16 %v2752
        %v2801 = vunpack.c.l.b16 %v2753
        %v2802 = vunpack.c.l.b16 %v2754
        %v2803 = vunpack.c.l.b16 %v2755
        %v2804 = vunpack.c.l.b16 %v2756
        %v2805 = vunpack.c.l.b16 %v2757
        %v2806 = vunpack.c.l.b16 %v2758
        %v2807 = vunpack.c.l.b16 %v2759
        %v2808 = vunpack.c.l.b16 %v2760
        %v2809 = vunpack.c.l.b16 %v2761
        %v2810 = vunpack.c.h.b16 %v2750
        %v2811 = vunpack.c.h.b16 %v2751
        %v2812 = vunpack.c.h.b16 %v2752
        %v2813 = vunpack.c.h.b16 %v2753
        %v2814 = vunpack.c.h.b16 %v2754
        %v2815 = vunpack.c.h.b16 %v2755
        %v2816 = vunpack.c.h.b16 %v2756
        %v2817 = vunpack.c.h.b16 %v2757
        %v2818 = vunpack.c.h.b16 %v2758
        %v2819 = vunpack.c.h.b16 %v2759
        %v2820 = vunpack.c.h.b16 %v2760
        %v2821 = vunpack.c.h.b16 %v2761
        %v2822 = vunpack.c.l.b16 %v2762
        %v2823 = vunpack.c.l.b16 %v2763
        %v2824 = vunpack.c.l.b16 %v2764
        %v2825 = vunpack.c.l.b16 %v2765
        %v2826 = vunpack.c.l.b16 %v2766
        %v2827 = vunpack.c.l.b16 %v2767
        %v2828 = vunpack.c.l.b16 %v2768
        %v2829 = vunpack.c.l.b16 %v2769
        %v2830 = vunpack.c.l.b16 %v2770
        %v2831 = vunpack.c.l.b16 %v2771
        %v2832 = vunpack.c.l.b16 %v2772
        %v2833 = vunpack.c.l.b16 %v2773
        %v2834 = vunpack.c.h.b16 %v2762
        %v2835 = vunpack.c.h.b16 %v2763
        %v2836 = vunpack.c.h.b16 %v2764
        %v2837 = vunpack.c.h.b16 %v2765
        %v2838 = vunpack.c.h.b16 %v2766
        %v2839 = vunpack.c.h.b16 %v2767
        %v2840 = vunpack.c.h.b16 %v2768
        %v2841 = vunpack.c.h.b16 %v2769
        %v2842 = vunpack.c.h.b16 %v2770
        %v2843 = vunpack.c.h.b16 %v2771
        %v2844 = vunpack.c.h.b16 %v2772
        %v2845 = vunpack.c.h.b16 %v2773
        %v2846 = vpack.c.b16 %v2799, %v2798
        %v2847 = vpack.c.b16 %v2801, %v2800
        %v2848 = vpack.c.b16 %v2803, %v2802
        %v2849 = vpack.c.b16 %v2805, %v2804
        %v2850 = vpack.c.b16 %v2807, %v2806
        %v2851 = vpack.c.b16 %v2809, %v2808
        %v2852 = vpack.c.b16 %v2811, %v2810
        %v2853 = vpack.c.b16 %v2813, %v2812
        %v2854 = vpack.c.b16 %v2815, %v2814
        %v2855 = vpack.c.b16 %v2817, %v2816
        %v2856 = vpack.c.b16 %v2819, %v2818
        %v2857 = vpack.c.b16 %v2821, %v2820
        %v2858 = vpack.c.b16 %v2823, %v2822
        %v2859 = vpack.c.b16 %v2825, %v2824
        %v2860 = vpack.c.b16 %v2827, %v2826
        %v2861 = vpack.c.b16 %v2829, %v2828
        %v2862 = vpack.c.b16 %v2831, %v2830
        %v2863 = vpack.c.b16 %v2833, %v2832
        %v2864 = vpack.c.b16 %v2835, %v2834
        %v2865 = vpack.c.b16 %v2837, %v2836
        %v2866 = vpack.c.b16 %v2839, %v2838
        %v2867 = vpack.c.b16 %v2841, %v2840
        %v2868 = vpack.c.b16 %v2843, %v2842
        %v2869 = vpack.c.b16 %v2845, %v2844
        %2894 = vst [vmem:[%s325] sm:$0xff] %v2846
        %2895 = vst [vmem:[%s325 + $0x8] sm:$0xff] %v2847
        %2896 = vst [vmem:[%s325 + $0x10] sm:$0xff] %v2848
        %2897 = vst [vmem:[%s325 + $0x18] sm:$0xff] %v2849
        %2898 = vst [vmem:[%s325 + $0x20] sm:$0xff] %v2850
        %2899 = vst [vmem:[%s325 + $0x28] sm:$0xff] %v2851
        %2900 = vst [vmem:[%s325 + $0x30] sm:$0xff] %v2852
        %2901 = vst [vmem:[%s325 + $0x38] sm:$0xff] %v2853
        %2902 = vst [vmem:[%s325 + $0x40] sm:$0xff] %v2854
        %2903 = vst [vmem:[%s325 + $0x48] sm:$0xff] %v2855
        %2904 = vst [vmem:[%s325 + $0x50] sm:$0xff] %v2856
        %2905 = vst [vmem:[%s325 + $0x58] sm:$0xff] %v2857
        %2906 = vst [vmem:[%s325 + $0x60] sm:$0xff] %v2858
        %2907 = vst [vmem:[%s325 + $0x68] sm:$0xff] %v2859
        %2908 = vst [vmem:[%s325 + $0x70] sm:$0xff] %v2860
        %2909 = vst [vmem:[%s325 + $0x78] sm:$0xff] %v2861
        %2910 = vst [vmem:[%s325 + $0x80] sm:$0xff] %v2862
        %2911 = vst [vmem:[%s325 + $0x88] sm:$0xff] %v2863
        %2912 = vst [vmem:[%s325 + $0x90] sm:$0xff] %v2864
        %2913 = vst [vmem:[%s325 + $0x98] sm:$0xff] %v2865
        %2914 = vst [vmem:[%s325 + $0xa0] sm:$0xff] %v2866
        %2915 = vst [vmem:[%s325 + $0xa8] sm:$0xff] %v2867
        %2916 = vst [vmem:[%s325 + $0xb0] sm:$0xff] %v2868
        %2917 = vst [vmem:[%s325 + $0xb8] sm:$0xff] %v2869
        %s2918 = sand.u32 %s225, 1
        %s2919 = scalar_lea.sflag [#allocation3], %s2918
        %s2920 = sand.u32 %s225, 1
        %s2921 = smul.addr %s2920, 192
        %s2922 = scalar_lea.vmem [#allocation2], %s2921
        // Predicated region
        $region57: #{tpu_custom_call.1} parent=55 // pred_check
          %p2923 = pneg %p235
        $region58: #{tpu_custom_call.1} parent=55 // pred_check_branch
          %2925 = sbr.rel (%p2923) target = $region60
        $region59: #{tpu_custom_call.1} parent=55 // pred_region
          %s2927 = ssub.s32 3072, 3072
          %2928 = vsyncadd %s2919, %s2927
          %s2929 = smul.addr %s23, 48
          %s2930 = smul.addr %s2929, 64
          %s2931 = scalar_lea.hbm %s9, %s2930
          %s2932 = sshll.u32 %s2922, 4
          %s2933 = int_to_ptr.vmem [resolvable:$true] %s2932
          %2938 = dma.vmem_to_hbm [thread:$0]  %s2933, 3072, %s2931, %s2919, 768, 768, 48
        $region60: #{tpu_custom_call.1} parent=55 // pred_fallthru
          _
      $region56: #{tpu_custom_call.1} parent=5 // pred_fallthru
        _
      %p2939 = scmp.le.s32.totalorder 2, %s18
      // Predicated region
      $region61: #{tpu_custom_call.1} parent=5 // pred_check
        %p2940 = pneg %p2939
      $region62: #{tpu_custom_call.1} parent=5 // pred_check_branch
        %2942 = sbr.rel (%p2940) target = $region64
      $region63: #{tpu_custom_call.1} parent=5 // pred_region
        %s2943 = ssub.s32 %s18, 2
        // Predicated region
        $region65: #{tpu_custom_call.1} parent=63 // pred_check
          %p2944 = pneg %p241
        $region66: #{tpu_custom_call.1} parent=63 // pred_check_branch
          %2946 = sbr.rel (%p2944) target = $region68
        $region67: #{tpu_custom_call.1} parent=63 // pred_region
          %s2947 = sand.u32 %s226, 1
          %s2948 = scalar_lea.sflag [#allocation3], %s2947
          %s2949 = sand.u32 %s226, 1
          %s2950 = smul.addr %s2949, 192
          %s2951 = scalar_lea.vmem [#allocation2], %s2950
          %2952 = dma.done %s2948, 3072
        $region68: #{tpu_custom_call.1} parent=63 // pred_fallthru
          _
      $region64: #{tpu_custom_call.1} parent=5 // pred_fallthru
        _
    $region6: #{tpu_custom_call.1} parent=1 // loop_footer
      %s22 = sadd.s32 1, %s18
    $region7: #{tpu_custom_call.1} parent=1 // loop_footer_branch
      %17 = sbr.rel target = $region3
    $region8: #{tpu_custom_call.1} parent=1 // loop_exit
      _
    %2953 = vsyncpa [#allocation3], 1
    %s2954 = scalar_lea.sflag [#allocation3], 1
    %2955 = vsyncpa %s2954, 1

</llo_original>
